<compile_context>
chip_gen: v7x
topology: tpu7x:2x2x1
jax: 0.10.0
libtpu: 0.0.40
codegen_flags: <defaults>
</compile_context>

<pallas_src>
import functools

import jax
import jax.numpy as jnp
from jax.experimental import pallas as pl
from jax.experimental.pallas import tpu as pltpu


def _round_up(x, m):
    return ((x + m - 1) // m) * m


# ---------------------------------------------------------------------------
# Fused matmul + bias + PReLU kernel (single K block: no accumulator, no
# pl.when — one MXU pass plus epilogue per grid step).
# ---------------------------------------------------------------------------
def _matmul_bias_prelu_kernel(x_ref, w_ref, b_ref, a_ref, o_ref):
    # x_ref: (tm, K)  w_ref: (K, N)  b_ref/a_ref: (1, N)  o_ref: (tm, N)
    acc = jnp.dot(x_ref[...], w_ref[...], preferred_element_type=jnp.float32)
    acc = acc + b_ref[...]                                   # bias (1,N) bcast
    o_ref[...] = jnp.where(acc >= 0.0, acc, a_ref[...] * acc).astype(o_ref.dtype)


def matmul_bias_prelu(x, w, bias2d, alpha2d, *, out_dtype=jnp.float32,
                      tm_max=1024):
    """out = prelu(x @ w + bias).

    x:[M,K] (compute dtype), w:[K,N] (compute dtype, pre-cast at init),
    bias2d/alpha2d:[1,N] f32.  K and N each occupy one block (block dim ==
    full array dim), so activations/weights/outputs are never zero-padded in
    the lane/contraction dims and there is no K-reduction grid axis.
    """
    M, K = x.shape
    Kw, N = w.shape
    assert Kw == K and bias2d.shape == (1, N) and alpha2d.shape == (1, N)

    tm = min(tm_max, _round_up(M, 8))
    Mp = _round_up(M, tm)
    if Mp != M:
        x = jnp.pad(x, ((0, Mp - M), (0, 0)))    # at most tm-1 dummy rows

    gm = Mp // tm
    x_item = jnp.dtype(x.dtype).itemsize
    w_item = jnp.dtype(w.dtype).itemsize
    o_item = jnp.dtype(out_dtype).itemsize
    cost = pl.CostEstimate(
        flops=2 * Mp * K * N,
        transcendentals=0,
        bytes_accessed=(Mp * K * x_item            # X streamed once
                        + gm * K * N * w_item      # W re-streamed per M block
                        + gm * 2 * N * 4           # bias + alpha per M block
                        + Mp * N * o_item),        # output written once
    )

    out = pl.pallas_call(
        _matmul_bias_prelu_kernel,
        out_shape=jax.ShapeDtypeStruct((Mp, N), out_dtype),
        grid_spec=pltpu.PrefetchScalarGridSpec(
            num_scalar_prefetch=0,
            grid=(gm,),
            in_specs=[
                pl.BlockSpec((tm, K), lambda i: (i, 0)),   # X row tile
                pl.BlockSpec((K, N), lambda i: (0, 0)),    # full weight
                pl.BlockSpec((1, N), lambda i: (0, 0)),    # bias
                pl.BlockSpec((1, N), lambda i: (0, 0)),    # PReLU alpha
            ],
            out_specs=pl.BlockSpec((tm, N), lambda i: (i, 0)),
        ),
        compiler_params=pltpu.CompilerParams(
            dimension_semantics=("parallel",),
        ),
        cost_estimate=cost,
    )(x, w, bias2d, alpha2d)
    return out[:M] if Mp != M else out


# ---------------------------------------------------------------------------
# Conv2d (same padding, stride 1) + PReLU via im2col + the fused matmul.
# The im2col lhs is built directly in the compute dtype (halves its HBM
# traffic on the bf16 path).
# TODO(synk): for very large H*W on bandwidth-poor v5e, replace the
# materialized im2col lhs with an in-kernel tap loop over a padded NHWC ref.
# ---------------------------------------------------------------------------
def conv2d_prelu(x_nhwc, w_mat, bias2d, alpha2d, *, k, pad, compute_dtype):
    B, H, W, Cin = x_nhwc.shape
    Cout = w_mat.shape[1]
    xc = x_nhwc.astype(compute_dtype)
    if k == 1 and pad == 0:
        lhs = xc.reshape(B * H * W, Cin)
    else:
        xp = jnp.pad(xc, ((0, 0), (pad, pad), (pad, pad), (0, 0)))
        taps = [xp[:, di:di + H, dj:dj + W, :]
                for di in range(k) for dj in range(k)]
        lhs = jnp.concatenate(taps, axis=-1).reshape(B * H * W, k * k * Cin)
    out = matmul_bias_prelu(lhs, w_mat, bias2d, alpha2d, out_dtype=jnp.float32)
    return out.reshape(B, H, W, Cout)


# ---------------------------------------------------------------------------
# ZeroPad2d([0,1,0,1]) + AvgPool2d(2, stride=1, ceil_mode=True,
# count_include_pad=False) -> fixed /4 average of a 2x2 window on the
# right/bottom zero-padded map.  Lane-dense layout: last dim is (W+1)*C.
# ---------------------------------------------------------------------------
def _avgpool2x2_kernel(x_ref, o_ref):
    # x_ref: (B, H+1, (W+1)*C)   o_ref: (B, H, W*C)
    H = o_ref.shape[1]
    WC = o_ref.shape[2]
    C = x_ref.shape[2] - WC
    xp = x_ref[...]
    o_ref[...] = 0.25 * (xp[:, :H, :WC] + xp[:, :H, C:C + WC]
                         + xp[:, 1:H + 1, :WC] + xp[:, 1:H + 1, C:C + WC])


def avg_pool_2x2_s1(x_nhwc):
    B, H, W, C = x_nhwc.shape
    xp = jnp.pad(x_nhwc, ((0, 0), (0, 1), (0, 1), (0, 0)))   # right/bottom zeros
    xp = xp.reshape(B, H + 1, (W + 1) * C)                   # lane-dense last dim
    out = pl.pallas_call(
        _avgpool2x2_kernel,
        out_shape=jax.ShapeDtypeStruct((B, H, W * C), x_nhwc.dtype),
        grid_spec=pltpu.PrefetchScalarGridSpec(
            num_scalar_prefetch=0,
            grid=(1,),                                        # single step; data is tiny
            in_specs=[pl.BlockSpec((B, H + 1, (W + 1) * C), lambda i: (0, 0, 0))],
            out_specs=pl.BlockSpec((B, H, W * C), lambda i: (0, 0, 0)),
        ),
    )(xp)
    return out.reshape(B, H, W, C)


# ---------------------------------------------------------------------------
# Parameters (PyTorch init: xavier_uniform weights, bias=0.1, PReLU alpha=0.25)
# and one-time matmul-layout / dtype / branch-fusion prep.
# ---------------------------------------------------------------------------
def init_pz_conv(key, cin, cout, k):
    fan_in, fan_out = cin * k * k, cout * k * k
    bound = (6.0 / (fan_in + fan_out)) ** 0.5
    w = jax.random.uniform(key, (cout, cin, k, k), minval=-bound, maxval=bound,
                           dtype=jnp.float32)
    return {"w": w,
            "b": jnp.full((cout,), 0.1, jnp.float32),
            "alpha": jnp.full((cout,), 0.25, jnp.float32)}


def _w_mat(w_oihw, dtype):
    cout, cin, kh, kw = w_oihw.shape
    return jnp.transpose(w_oihw, (2, 3, 1, 0)).reshape(kh * kw * cin, cout).astype(dtype)


def prepare_inception_params(params, *, without_kernel_5=False,
                             compute_dtype=jnp.float32):
    """One-time prep: pre-cast matmul-layout weights, (1,N) bias/alpha rows,
    and the four 1x1 branches (which all read the same input x) fused into a
    single [Cin, N_fused] matrix so the forward runs ONE pallas_call for them."""
    names_1x1 = (["s1_0", "s1_2", "s2_2"] if without_kernel_5
                 else ["s1_0", "s1_1", "s1_2", "s2_2"])
    w1 = jnp.concatenate([_w_mat(params[n]["w"], compute_dtype)
                          for n in names_1x1], axis=1)
    b1 = jnp.concatenate([params[n]["b"] for n in names_1x1]).reshape(1, -1)
    a1 = jnp.concatenate([params[n]["alpha"] for n in names_1x1]).reshape(1, -1)
    cols, off = {}, 0
    for n in names_1x1:
        c = params[n]["b"].shape[0]
        cols[n] = (off, off + c)
        off += c

    def branch(name):
        return {"w": _w_mat(params[name]["w"], compute_dtype),
                "b": params[name]["b"].reshape(1, -1),
                "a": params[name]["alpha"].reshape(1, -1)}

    prep = {"compute_dtype": compute_dtype,
            "fused1x1": {"w": w1, "b": b1, "a": a1, "cols": cols},
            "s2_0": branch("s2_0")}
    if not without_kernel_5:
        prep["s2_1"] = branch("s2_1")
    return prep


# ---------------------------------------------------------------------------
# PzInception forward (matches the PyTorch module's dataflow & concat order).
# ---------------------------------------------------------------------------
def pz_inception_forward(x_nchw, prep, *, without_kernel_5=False):
    cdt = prep["compute_dtype"]
    x = jnp.transpose(x_nchw, (0, 2, 3, 1))                  # NHWC internally
    B, H, W, Cin = x.shape
    M = B * H * W

    # ONE fused pallas_call for all 1x1 branches reading x.
    f = prep["fused1x1"]
    xm = x.reshape(M, Cin).astype(cdt)
    fused = matmul_bias_prelu(xm, f["w"], f["b"], f["a"], out_dtype=jnp.float32)

    def col(name):
        lo, hi = f["cols"][name]
        return fused[:, lo:hi].reshape(B, H, W, hi - lo)

    x_s2_2 = col("s2_2")                                      # direct output branch

    x_s2_0 = conv2d_prelu(col("s1_0"), prep["s2_0"]["w"], prep["s2_0"]["b"],
                          prep["s2_0"]["a"], k=3, pad=1, compute_dtype=cdt)

    x_pool0 = avg_pool_2x2_s1(col("s1_2"))

    if not without_kernel_5:
        x_s2_1 = conv2d_prelu(col("s1_1"), prep["s2_1"]["w"], prep["s2_1"]["b"],
                              prep["s2_1"]["a"], k=5, pad=2, compute_dtype=cdt)
        out = jnp.concatenate([x_s2_2, x_s2_1, x_s2_0, x_pool0], axis=-1)
    else:
        out = jnp.concatenate([x_s2_2, x_s2_0, x_pool0], axis=-1)
    return jnp.transpose(out, (0, 3, 1, 2))                   # back to NCHW


# ---------------------------------------------------------------------------
# Plain-JAX reference (correctness verification only).
# ---------------------------------------------------------------------------
def reference_forward(x_nchw, params, *, without_kernel_5=False):
    x = jnp.transpose(x_nchw, (0, 2, 3, 1))

    def conv_ref(name, inp, pad):
        p = params[name]
        w_hwio = jnp.transpose(p["w"], (2, 3, 1, 0))
        y = jax.lax.conv_general_dilated(
            inp, w_hwio, window_strides=(1, 1),
            padding=[(pad, pad), (pad, pad)],
            dimension_numbers=("NHWC", "HWIO", "NHWC"),
            precision=jax.lax.Precision.HIGHEST)
        y = y + p["b"]
        return jnp.where(y >= 0, y, p["alpha"] * y)

    s1_0 = conv_ref("s1_0", x, 0)
    s2_0 = conv_ref("s2_0", s1_0, 1)
    s1_2 = conv_ref("s1_2", x, 0)
    H, W = s1_2.shape[1], s1_2.shape[2]
    xp = jnp.pad(s1_2, ((0, 0), (0, 1), (0, 1), (0, 0)))
    pool0 = 0.25 * (xp[:, :H, :W] + xp[:, :H, 1:] + xp[:, 1:, :W] + xp[:, 1:, 1:])
    s2_2 = conv_ref("s2_2", x, 0)
    if not without_kernel_5:
        s1_1 = conv_ref("s1_1", x, 0)
        s2_1 = conv_ref("s2_1", s1_1, 2)
        out = jnp.concatenate([s2_2, s2_1, s2_0, pool0], axis=-1)
    else:
        out = jnp.concatenate([s2_2, s2_0, pool0], axis=-1)
    return jnp.transpose(out, (0, 3, 1, 2))


if __name__ == "__main__":
    B, Cin, H, W = 2, 4, 16, 16
    C1, C2 = 8, 12
    without_kernel_5 = False

    key = jax.random.PRNGKey(0)
    kx, k0, k1, k2, k3, k4, k5 = jax.random.split(key, 7)
    x = jax.random.normal(kx, (B, Cin, H, W), dtype=jnp.float32)

    params = {
        "s1_0": init_pz_conv(k0, Cin, C1, 1),
        "s2_0": init_pz_conv(k1, C1, C2, 3),
        "s1_2": init_pz_conv(k2, Cin, C1, 1),
        "s2_2": init_pz_conv(k3, Cin, C2, 1),
    }
    if not without_kernel_5:
        params["s1_1"] = init_pz_conv(k4, Cin, C1, 1)
        params["s2_1"] = init_pz_conv(k5, C1, C2, 5)

    ref = jax.block_until_ready(
        reference_forward(x, params, without_kernel_5=without_kernel_5))

    # f32 path (tight check).
    prep_f32 = prepare_inception_params(params, without_kernel_5=without_kernel_5,
                                        compute_dtype=jnp.float32)
    fwd = jax.jit(functools.partial(pz_inception_forward, prep=prep_f32,
                                    without_kernel_5=without_kernel_5))
    out = jax.block_until_ready(fwd(x))

    n_out = (3 * C2 + C1) if not without_kernel_5 else (2 * C2 + C1)
    assert out.shape == (B, n_out, H, W), out.shape
    assert jnp.allclose(out, ref, atol=1e-4, rtol=1e-4), \
        float(jnp.max(jnp.abs(out - ref)))

    # bf16 MXU path (v6e/v7x): bf16 X/W streamed, f32 accumulation in-kernel.
    prep_bf16 = prepare_inception_params(params, without_kernel_5=without_kernel_5,
                                         compute_dtype=jnp.bfloat16)
    fwd_bf16 = jax.jit(functools.partial(pz_inception_forward, prep=prep_bf16,
                                         without_kernel_5=without_kernel_5))
    out_bf16 = jax.block_until_ready(fwd_bf16(x))
    assert out_bf16.shape == out.shape
    assert jnp.allclose(out_bf16, ref, atol=0.2, rtol=0.1), \
        float(jnp.max(jnp.abs(out_bf16 - ref)))

    print("KERNEL_OK")
</pallas_src>

<mosaic_0001>
module attributes {stable_mosaic.version = 11 : i64} {
  func.func @_matmul_bias_prelu_kernel(%arg0: i32, %arg1: memref<512x4xf32, #tpu.memory_space<vmem>>, %arg2: memref<4x36xf32, #tpu.memory_space<vmem>>, %arg3: memref<1x36xf32, #tpu.memory_space<vmem>>, %arg4: memref<1x36xf32, #tpu.memory_space<vmem>>, %arg5: memref<512x36xf32, #tpu.memory_space<vmem>>) attributes {dimension_semantics = [#tpu.dimension_semantics<parallel>], iteration_bounds = array<i64: 1>, scalar_prefetch = 0 : i64, scratch_operands = 0 : i64, tpu.core_type = #tpu.core_type<tc>, window_params = [{transform_indices = @transform_0, window_bounds = array<i64: 512, 4>}, {pipeline_mode = #tpu.pipeline_mode<synchronous>, transform_indices = @transform_1, window_bounds = array<i64: 4, 36>}, {pipeline_mode = #tpu.pipeline_mode<synchronous>, transform_indices = @transform_2, window_bounds = array<i64: 1, 36>}, {pipeline_mode = #tpu.pipeline_mode<synchronous>, transform_indices = @transform_3, window_bounds = array<i64: 1, 36>}, {transform_indices = @transform_4, window_bounds = array<i64: 512, 36>}]} {
    %c0 = arith.constant 0 : index
    %c0_0 = arith.constant 0 : index
    %0 = vector.load %arg1[%c0, %c0_0] : memref<512x4xf32, #tpu.memory_space<vmem>>, vector<512x4xf32>
    %c0_1 = arith.constant 0 : index
    %c0_2 = arith.constant 0 : index
    %1 = vector.load %arg2[%c0_1, %c0_2] : memref<4x36xf32, #tpu.memory_space<vmem>>, vector<4x36xf32>
    %cst = arith.constant dense<0.000000e+00> : vector<512x36xf32>
    %2 = tpu.matmul %0, %1, %cst {dimension_numbers = #tpu.dot_dimension_numbers<[1], [0], [0], [1], [0, 0, 1, 1], [], []>} : vector<512x4xf32>, vector<4x36xf32>, vector<512x36xf32> -> vector<512x36xf32>
    %c0_3 = arith.constant 0 : index
    %c0_4 = arith.constant 0 : index
    %3 = vector.load %arg3[%c0_3, %c0_4] : memref<1x36xf32, #tpu.memory_space<vmem>>, vector<1x36xf32>
    %4 = vector.broadcast %3 : vector<1x36xf32> to vector<512x36xf32>
    %5 = arith.addf %2, %4 : vector<512x36xf32>
    %cst_5 = arith.constant 0.000000e+00 : f32
    %6 = vector.broadcast %cst_5 : f32 to vector<512x36xf32>
    %7 = arith.cmpf oge, %5, %6 : vector<512x36xf32>
    %c0_6 = arith.constant 0 : index
    %c0_7 = arith.constant 0 : index
    %8 = vector.load %arg4[%c0_6, %c0_7] : memref<1x36xf32, #tpu.memory_space<vmem>>, vector<1x36xf32>
    %9 = vector.broadcast %8 : vector<1x36xf32> to vector<512x36xf32>
    %10 = arith.mulf %9, %5 : vector<512x36xf32>
    %11 = arith.select %7, %5, %10 : vector<512x36xi1>, vector<512x36xf32>
    %c0_8 = arith.constant 0 : index
    %c0_9 = arith.constant 0 : index
    %12 = vector.load %arg5[%c0_8, %c0_9] : memref<512x36xf32, #tpu.memory_space<vmem>>, vector<512x36xf32>
    tpu.vector_store %arg5[%c0_8, %c0_9], %11 {strides = array<i32>} : memref<512x36xf32, #tpu.memory_space<vmem>>, vector<512x36xf32>,
    return
  }
  func.func @transform_0(%arg0: i32) -> (i32, i32) {
    %c0_i32 = arith.constant 0 : i32
    %c0_i32_0 = arith.constant 0 : i32
    return %arg0, %c0_i32 : i32, i32
  }
  func.func @transform_1(%arg0: i32) -> (i32, i32) {
    %c0_i32 = arith.constant 0 : i32
    %c0_i32_0 = arith.constant 0 : i32
    %c0_i32_1 = arith.constant 0 : i32
    return %c0_i32, %c0_i32_0 : i32, i32
  }
  func.func @transform_2(%arg0: i32) -> (i32, i32) {
    %c0_i32 = arith.constant 0 : i32
    %c0_i32_0 = arith.constant 0 : i32
    %c0_i32_1 = arith.constant 0 : i32
    return %c0_i32, %c0_i32_0 : i32, i32
  }
  func.func @transform_3(%arg0: i32) -> (i32, i32) {
    %c0_i32 = arith.constant 0 : i32
    %c0_i32_0 = arith.constant 0 : i32
    %c0_i32_1 = arith.constant 0 : i32
    return %c0_i32, %c0_i32_0 : i32, i32
  }
  func.func @transform_4(%arg0: i32) -> (i32, i32) {
    %c0_i32 = arith.constant 0 : i32
    %c0_i32_0 = arith.constant 0 : i32
    return %arg0, %c0_i32 : i32, i32
  }
}

module attributes {stable_mosaic.version = 11 : i64} {
  func.func @_matmul_bias_prelu_kernel(%arg0: i32, %arg1: memref<512x200xf32, #tpu.memory_space<vmem>>, %arg2: memref<200x12xf32, #tpu.memory_space<vmem>>, %arg3: memref<1x12xf32, #tpu.memory_space<vmem>>, %arg4: memref<1x12xf32, #tpu.memory_space<vmem>>, %arg5: memref<512x12xf32, #tpu.memory_space<vmem>>) attributes {dimension_semantics = [#tpu.dimension_semantics<parallel>], iteration_bounds = array<i64: 1>, scalar_prefetch = 0 : i64, scratch_operands = 0 : i64, tpu.core_type = #tpu.core_type<tc>, window_params = [{transform_indices = @transform_0, window_bounds = array<i64: 512, 200>}, {pipeline_mode = #tpu.pipeline_mode<synchronous>, transform_indices = @transform_1, window_bounds = array<i64: 200, 12>}, {pipeline_mode = #tpu.pipeline_mode<synchronous>, transform_indices = @transform_2, window_bounds = array<i64: 1, 12>}, {pipeline_mode = #tpu.pipeline_mode<synchronous>, transform_indices = @transform_3, window_bounds = array<i64: 1, 12>}, {transform_indices = @transform_4, window_bounds = array<i64: 512, 12>}]} {
    %c0 = arith.constant 0 : index
    %c0_0 = arith.constant 0 : index
    %0 = vector.load %arg1[%c0, %c0_0] : memref<512x200xf32, #tpu.memory_space<vmem>>, vector<512x200xf32>
    %c0_1 = arith.constant 0 : index
    %c0_2 = arith.constant 0 : index
    %1 = vector.load %arg2[%c0_1, %c0_2] : memref<200x12xf32, #tpu.memory_space<vmem>>, vector<200x12xf32>
    %cst = arith.constant dense<0.000000e+00> : vector<512x12xf32>
    %2 = tpu.matmul %0, %1, %cst {dimension_numbers = #tpu.dot_dimension_numbers<[1], [0], [0], [1], [0, 0, 1, 1], [], []>} : vector<512x200xf32>, vector<200x12xf32>, vector<512x12xf32> -> vector<512x12xf32>
    %c0_3 = arith.constant 0 : index
    %c0_4 = arith.constant 0 : index
    %3 = vector.load %arg3[%c0_3, %c0_4] : memref<1x12xf32, #tpu.memory_space<vmem>>, vector<1x12xf32>
    %4 = vector.broadcast %3 : vector<1x12xf32> to vector<512x12xf32>
    %5 = arith.addf %2, %4 : vector<512x12xf32>
    %cst_5 = arith.constant 0.000000e+00 : f32
    %6 = vector.broadcast %cst_5 : f32 to vector<512x12xf32>
    %7 = arith.cmpf oge, %5, %6 : vector<512x12xf32>
    %c0_6 = arith.constant 0 : index
    %c0_7 = arith.constant 0 : index
    %8 = vector.load %arg4[%c0_6, %c0_7] : memref<1x12xf32, #tpu.memory_space<vmem>>, vector<1x12xf32>
    %9 = vector.broadcast %8 : vector<1x12xf32> to vector<512x12xf32>
    %10 = arith.mulf %9, %5 : vector<512x12xf32>
    %11 = arith.select %7, %5, %10 : vector<512x12xi1>, vector<512x12xf32>
    %c0_8 = arith.constant 0 : index
    %c0_9 = arith.constant 0 : index
    %12 = vector.load %arg5[%c0_8, %c0_9] : memref<512x12xf32, #tpu.memory_space<vmem>>, vector<512x12xf32>
    tpu.vector_store %arg5[%c0_8, %c0_9], %11 {strides = array<i32>} : memref<512x12xf32, #tpu.memory_space<vmem>>, vector<512x12xf32>,
    return
  }
  func.func @transform_0(%arg0: i32) -> (i32, i32) {
    %c0_i32 = arith.constant 0 : i32
    %c0_i32_0 = arith.constant 0 : i32
    return %arg0, %c0_i32 : i32, i32
  }
  func.func @transform_1(%arg0: i32) -> (i32, i32) {
    %c0_i32 = arith.constant 0 : i32
    %c0_i32_0 = arith.constant 0 : i32
    %c0_i32_1 = arith.constant 0 : i32
    return %c0_i32, %c0_i32_0 : i32, i32
  }
  func.func @transform_2(%arg0: i32) -> (i32, i32) {
    %c0_i32 = arith.constant 0 : i32
    %c0_i32_0 = arith.constant 0 : i32
    %c0_i32_1 = arith.constant 0 : i32
    return %c0_i32, %c0_i32_0 : i32, i32
  }
  func.func @transform_3(%arg0: i32) -> (i32, i32) {
    %c0_i32 = arith.constant 0 : i32
    %c0_i32_0 = arith.constant 0 : i32
    %c0_i32_1 = arith.constant 0 : i32
    return %c0_i32, %c0_i32_0 : i32, i32
  }
  func.func @transform_4(%arg0: i32) -> (i32, i32) {
    %c0_i32 = arith.constant 0 : i32
    %c0_i32_0 = arith.constant 0 : i32
    return %arg0, %c0_i32 : i32, i32
  }
}

module attributes {stable_mosaic.version = 11 : i64} {
  func.func @_matmul_bias_prelu_kernel(%arg0: i32, %arg1: memref<512x72xf32, #tpu.memory_space<vmem>>, %arg2: memref<72x12xf32, #tpu.memory_space<vmem>>, %arg3: memref<1x12xf32, #tpu.memory_space<vmem>>, %arg4: memref<1x12xf32, #tpu.memory_space<vmem>>, %arg5: memref<512x12xf32, #tpu.memory_space<vmem>>) attributes {dimension_semantics = [#tpu.dimension_semantics<parallel>], iteration_bounds = array<i64: 1>, scalar_prefetch = 0 : i64, scratch_operands = 0 : i64, tpu.core_type = #tpu.core_type<tc>, window_params = [{transform_indices = @transform_0, window_bounds = array<i64: 512, 72>}, {pipeline_mode = #tpu.pipeline_mode<synchronous>, transform_indices = @transform_1, window_bounds = array<i64: 72, 12>}, {pipeline_mode = #tpu.pipeline_mode<synchronous>, transform_indices = @transform_2, window_bounds = array<i64: 1, 12>}, {pipeline_mode = #tpu.pipeline_mode<synchronous>, transform_indices = @transform_3, window_bounds = array<i64: 1, 12>}, {transform_indices = @transform_4, window_bounds = array<i64: 512, 12>}]} {
    %c0 = arith.constant 0 : index
    %c0_0 = arith.constant 0 : index
    %0 = vector.load %arg1[%c0, %c0_0] : memref<512x72xf32, #tpu.memory_space<vmem>>, vector<512x72xf32>
    %c0_1 = arith.constant 0 : index
    %c0_2 = arith.constant 0 : index
    %1 = vector.load %arg2[%c0_1, %c0_2] : memref<72x12xf32, #tpu.memory_space<vmem>>, vector<72x12xf32>
    %cst = arith.constant dense<0.000000e+00> : vector<512x12xf32>
    %2 = tpu.matmul %0, %1, %cst {dimension_numbers = #tpu.dot_dimension_numbers<[1], [0], [0], [1], [0, 0, 1, 1], [], []>} : vector<512x72xf32>, vector<72x12xf32>, vector<512x12xf32> -> vector<512x12xf32>
    %c0_3 = arith.constant 0 : index
    %c0_4 = arith.constant 0 : index
    %3 = vector.load %arg3[%c0_3, %c0_4] : memref<1x12xf32, #tpu.memory_space<vmem>>, vector<1x12xf32>
    %4 = vector.broadcast %3 : vector<1x12xf32> to vector<512x12xf32>
    %5 = arith.addf %2, %4 : vector<512x12xf32>
    %cst_5 = arith.constant 0.000000e+00 : f32
    %6 = vector.broadcast %cst_5 : f32 to vector<512x12xf32>
    %7 = arith.cmpf oge, %5, %6 : vector<512x12xf32>
    %c0_6 = arith.constant 0 : index
    %c0_7 = arith.constant 0 : index
    %8 = vector.load %arg4[%c0_6, %c0_7] : memref<1x12xf32, #tpu.memory_space<vmem>>, vector<1x12xf32>
    %9 = vector.broadcast %8 : vector<1x12xf32> to vector<512x12xf32>
    %10 = arith.mulf %9, %5 : vector<512x12xf32>
    %11 = arith.select %7, %5, %10 : vector<512x12xi1>, vector<512x12xf32>
    %c0_8 = arith.constant 0 : index
    %c0_9 = arith.constant 0 : index
    %12 = vector.load %arg5[%c0_8, %c0_9] : memref<512x12xf32, #tpu.memory_space<vmem>>, vector<512x12xf32>
    tpu.vector_store %arg5[%c0_8, %c0_9], %11 {strides = array<i32>} : memref<512x12xf32, #tpu.memory_space<vmem>>, vector<512x12xf32>,
    return
  }
  func.func @transform_0(%arg0: i32) -> (i32, i32) {
    %c0_i32 = arith.constant 0 : i32
    %c0_i32_0 = arith.constant 0 : i32
    return %arg0, %c0_i32 : i32, i32
  }
  func.func @transform_1(%arg0: i32) -> (i32, i32) {
    %c0_i32 = arith.constant 0 : i32
    %c0_i32_0 = arith.constant 0 : i32
    %c0_i32_1 = arith.constant 0 : i32
    return %c0_i32, %c0_i32_0 : i32, i32
  }
  func.func @transform_2(%arg0: i32) -> (i32, i32) {
    %c0_i32 = arith.constant 0 : i32
    %c0_i32_0 = arith.constant 0 : i32
    %c0_i32_1 = arith.constant 0 : i32
    return %c0_i32, %c0_i32_0 : i32, i32
  }
  func.func @transform_3(%arg0: i32) -> (i32, i32) {
    %c0_i32 = arith.constant 0 : i32
    %c0_i32_0 = arith.constant 0 : i32
    %c0_i32_1 = arith.constant 0 : i32
    return %c0_i32, %c0_i32_0 : i32, i32
  }
  func.func @transform_4(%arg0: i32) -> (i32, i32) {
    %c0_i32 = arith.constant 0 : i32
    %c0_i32_0 = arith.constant 0 : i32
    return %arg0, %c0_i32 : i32, i32
  }
}

module attributes {stable_mosaic.version = 11 : i64} {
  func.func @_avgpool2x2_kernel(%arg0: i32, %arg1: memref<2x17x136xf32, #tpu.memory_space<vmem>>, %arg2: memref<2x16x128xf32, #tpu.memory_space<vmem>>) attributes {dimension_semantics = [#tpu.dimension_semantics<arbitrary>], iteration_bounds = array<i64: 1>, scalar_prefetch = 0 : i64, scratch_operands = 0 : i64, tpu.core_type = #tpu.core_type<tc>, window_params = [{pipeline_mode = #tpu.pipeline_mode<synchronous>, transform_indices = @transform_0, window_bounds = array<i64: 2, 17, 136>}, {pipeline_mode = #tpu.pipeline_mode<synchronous>, transform_indices = @transform_1, window_bounds = array<i64: 2, 16, 128>}]} {
    %c0 = arith.constant 0 : index
    %c0_0 = arith.constant 0 : index
    %c0_1 = arith.constant 0 : index
    %0 = vector.load %arg1[%c0, %c0_0, %c0_1] : memref<2x17x136xf32, #tpu.memory_space<vmem>>, vector<2x17x136xf32>
    %1 = vector.extract_strided_slice %0 {offsets = [0, 0, 0], sizes = [2, 16, 128], strides = [1, 1, 1]} : vector<2x17x136xf32> to vector<2x16x128xf32>
    %2 = vector.extract_strided_slice %0 {offsets = [0, 0, 8], sizes = [2, 16, 128], strides = [1, 1, 1]} : vector<2x17x136xf32> to vector<2x16x128xf32>
    %3 = arith.addf %1, %2 : vector<2x16x128xf32>
    %4 = vector.extract_strided_slice %0 {offsets = [0, 1, 0], sizes = [2, 16, 128], strides = [1, 1, 1]} : vector<2x17x136xf32> to vector<2x16x128xf32>
    %5 = arith.addf %3, %4 : vector<2x16x128xf32>
    %6 = vector.extract_strided_slice %0 {offsets = [0, 1, 8], sizes = [2, 16, 128], strides = [1, 1, 1]} : vector<2x17x136xf32> to vector<2x16x128xf32>
    %7 = arith.addf %5, %6 : vector<2x16x128xf32>
    %cst = arith.constant 2.500000e-01 : f32
    %8 = vector.broadcast %cst : f32 to vector<2x16x128xf32>
    %9 = arith.mulf %8, %7 : vector<2x16x128xf32>
    %c0_2 = arith.constant 0 : index
    %c0_3 = arith.constant 0 : index
    %c0_4 = arith.constant 0 : index
    %10 = vector.load %arg2[%c0_2, %c0_3, %c0_4] : memref<2x16x128xf32, #tpu.memory_space<vmem>>, vector<2x16x128xf32>
    tpu.vector_store %arg2[%c0_2, %c0_3, %c0_4], %9 {strides = array<i32>} : memref<2x16x128xf32, #tpu.memory_space<vmem>>, vector<2x16x128xf32>,
    return
  }
  func.func @transform_0(%arg0: i32) -> (i32, i32, i32) {
    %c0_i32 = arith.constant 0 : i32
    %c0_i32_0 = arith.constant 0 : i32
    %c0_i32_1 = arith.constant 0 : i32
    %c0_i32_2 = arith.constant 0 : i32
    return %c0_i32, %c0_i32_0, %c0_i32_1 : i32, i32, i32
  }
  func.func @transform_1(%arg0: i32) -> (i32, i32, i32) {
    %c0_i32 = arith.constant 0 : i32
    %c0_i32_0 = arith.constant 0 : i32
    %c0_i32_1 = arith.constant 0 : i32
    %c0_i32_2 = arith.constant 0 : i32
    return %c0_i32, %c0_i32_0, %c0_i32_1 : i32, i32, i32
  }
}

</mosaic_0001>

<llo_original>
// kernel: pz_inception_forward.4
$region0: #{pz_inception_forward.4}
  #allocation0 [shape = 'u32[]', space=smem, size = 0x4, offset = 0x4, fixed_abs, tag = 'smem constant byte address 0x4 - core index']
  #allocation1 [shape = 'u32[144,128]{1,0:T(1,128)}', space=vmem, size = 0x12000, scoped, tag = 'internal scratch']
  %s0 = inlined_call_operand.vmem [shape: f32[512,4], index: 0, kind: input, shape index: {}]
  %s1 = inlined_call_operand.vmem [shape: f32[4,36], index: 1, kind: input, shape index: {}]
  %s2 = inlined_call_operand.vmem [shape: f32[1,36], index: 2, kind: input, shape index: {}]
  %s3 = inlined_call_operand.vmem [shape: f32[1,36], index: 3, kind: input, shape index: {}]
  %s4 = inlined_call_operand.vmem [shape: f32[512,36], index: 4, kind: output, shape index: {}]
  %s5 = sld [smem:[#allocation0]]
  $region26: #{pz_inception_forward.4} parent=0
    _
  %s7 = ssub.s32 1, %s5
  %s8 = scalar_select 0, %s7, %s5
  // Predicated region
  $region2: #{pz_inception_forward.4} parent=0 // pred_check
    _
  $region3: #{pz_inception_forward.4} parent=0 // pred_check_branch
    %10 = sbr.rel (0) target = $region5
  $region4: #{pz_inception_forward.4} parent=0 // pred_region
    _
  $region5: #{pz_inception_forward.4} parent=0 // pred_fallthru
    _
  // Predicated region
  $region6: #{pz_inception_forward.4} parent=0 // pred_check
    _
  $region7: #{pz_inception_forward.4} parent=0 // pred_check_branch
    %12 = sbr.rel (0) target = $region9
  $region8: #{pz_inception_forward.4} parent=0 // pred_region
    _
  $region9: #{pz_inception_forward.4} parent=0 // pred_fallthru
    _
  // Predicated region
  $region10: #{pz_inception_forward.4} parent=0 // pred_check
    _
  $region11: #{pz_inception_forward.4} parent=0 // pred_check_branch
    %14 = sbr.rel (0) target = $region13
  $region12: #{pz_inception_forward.4} parent=0 // pred_region
    _
  $region13: #{pz_inception_forward.4} parent=0 // pred_fallthru
    _
  // Predicated region
  $region14: #{pz_inception_forward.4} parent=0 // pred_check
    _
  $region15: #{pz_inception_forward.4} parent=0 // pred_check_branch
    %16 = sbr.rel (0) target = $region17
  $region16: #{pz_inception_forward.4} parent=0 // pred_region
    _
  $region17: #{pz_inception_forward.4} parent=0 // pred_fallthru
    _
  %v17 = vld [vmem:[%s0] sm:$0xff]
  %v18 = vld [vmem:[%s0 + $0x8] sm:$0xff]
  %v19 = vld [vmem:[%s0 + $0x10] sm:$0xff]
  %v20 = vld [vmem:[%s0 + $0x18] sm:$0xff]
  %v21 = vld [vmem:[%s0 + $0x20] sm:$0xff]
  %v22 = vld [vmem:[%s0 + $0x28] sm:$0xff]
  %v23 = vld [vmem:[%s0 + $0x30] sm:$0xff]
  %v24 = vld [vmem:[%s0 + $0x38] sm:$0xff]
  %v25 = vld [vmem:[%s0 + $0x40] sm:$0xff]
  %v26 = vld [vmem:[%s0 + $0x48] sm:$0xff]
  %v27 = vld [vmem:[%s0 + $0x50] sm:$0xff]
  %v28 = vld [vmem:[%s0 + $0x58] sm:$0xff]
  %v29 = vld [vmem:[%s0 + $0x60] sm:$0xff]
  %v30 = vld [vmem:[%s0 + $0x68] sm:$0xff]
  %v31 = vld [vmem:[%s0 + $0x70] sm:$0xff]
  %v32 = vld [vmem:[%s0 + $0x78] sm:$0xff]
  %v33 = vld [vmem:[%s0 + $0x80] sm:$0xff]
  %v34 = vld [vmem:[%s0 + $0x88] sm:$0xff]
  %v35 = vld [vmem:[%s0 + $0x90] sm:$0xff]
  %v36 = vld [vmem:[%s0 + $0x98] sm:$0xff]
  %v37 = vld [vmem:[%s0 + $0xa0] sm:$0xff]
  %v38 = vld [vmem:[%s0 + $0xa8] sm:$0xff]
  %v39 = vld [vmem:[%s0 + $0xb0] sm:$0xff]
  %v40 = vld [vmem:[%s0 + $0xb8] sm:$0xff]
  %v41 = vld [vmem:[%s0 + $0xc0] sm:$0xff]
  %v42 = vld [vmem:[%s0 + $0xc8] sm:$0xff]
  %v43 = vld [vmem:[%s0 + $0xd0] sm:$0xff]
  %v44 = vld [vmem:[%s0 + $0xd8] sm:$0xff]
  %v45 = vld [vmem:[%s0 + $0xe0] sm:$0xff]
  %v46 = vld [vmem:[%s0 + $0xe8] sm:$0xff]
  %v47 = vld [vmem:[%s0 + $0xf0] sm:$0xff]
  %v48 = vld [vmem:[%s0 + $0xf8] sm:$0xff]
  %v49 = vld [vmem:[%s0 + $0x100] sm:$0xff]
  %v50 = vld [vmem:[%s0 + $0x108] sm:$0xff]
  %v51 = vld [vmem:[%s0 + $0x110] sm:$0xff]
  %v52 = vld [vmem:[%s0 + $0x118] sm:$0xff]
  %v53 = vld [vmem:[%s0 + $0x120] sm:$0xff]
  %v54 = vld [vmem:[%s0 + $0x128] sm:$0xff]
  %v55 = vld [vmem:[%s0 + $0x130] sm:$0xff]
  %v56 = vld [vmem:[%s0 + $0x138] sm:$0xff]
  %v57 = vld [vmem:[%s0 + $0x140] sm:$0xff]
  %v58 = vld [vmem:[%s0 + $0x148] sm:$0xff]
  %v59 = vld [vmem:[%s0 + $0x150] sm:$0xff]
  %v60 = vld [vmem:[%s0 + $0x158] sm:$0xff]
  %v61 = vld [vmem:[%s0 + $0x160] sm:$0xff]
  %v62 = vld [vmem:[%s0 + $0x168] sm:$0xff]
  %v63 = vld [vmem:[%s0 + $0x170] sm:$0xff]
  %v64 = vld [vmem:[%s0 + $0x178] sm:$0xff]
  %v65 = vld [vmem:[%s0 + $0x180] sm:$0xff]
  %v66 = vld [vmem:[%s0 + $0x188] sm:$0xff]
  %v67 = vld [vmem:[%s0 + $0x190] sm:$0xff]
  %v68 = vld [vmem:[%s0 + $0x198] sm:$0xff]
  %v69 = vld [vmem:[%s0 + $0x1a0] sm:$0xff]
  %v70 = vld [vmem:[%s0 + $0x1a8] sm:$0xff]
  %v71 = vld [vmem:[%s0 + $0x1b0] sm:$0xff]
  %v72 = vld [vmem:[%s0 + $0x1b8] sm:$0xff]
  %v73 = vld [vmem:[%s0 + $0x1c0] sm:$0xff]
  %v74 = vld [vmem:[%s0 + $0x1c8] sm:$0xff]
  %v75 = vld [vmem:[%s0 + $0x1d0] sm:$0xff]
  %v76 = vld [vmem:[%s0 + $0x1d8] sm:$0xff]
  %v77 = vld [vmem:[%s0 + $0x1e0] sm:$0xff]
  %v78 = vld [vmem:[%s0 + $0x1e8] sm:$0xff]
  %v79 = vld [vmem:[%s0 + $0x1f0] sm:$0xff]
  %v80 = vld [vmem:[%s0 + $0x1f8] sm:$0xff]
  %v81 = vld [vmem:[%s1] sm:$0xf]
  %v82 = vld [vmem:[%s2] sm:$0x1]
  %v84 = vlaneseq
  %v85 = vshrl.u32 %v84, 7
  %v86 = vsub.s32 0, %v85
  %v87 = vrot.slane %v82, %v86
  %vm89 = vcmask 31744
  %v91 = vsel %vm89, %v17, 0
  %v94 = vsel %vm89, %v18, 0
  %v97 = vsel %vm89, %v19, 0
  %v100 = vsel %vm89, %v20, 0
  %v103 = vsel %vm89, %v21, 0
  %v106 = vsel %vm89, %v22, 0
  %v109 = vsel %vm89, %v23, 0
  %v112 = vsel %vm89, %v24, 0
  %v115 = vsel %vm89, %v25, 0
  %v118 = vsel %vm89, %v26, 0
  %v121 = vsel %vm89, %v27, 0
  %v124 = vsel %vm89, %v28, 0
  %v127 = vsel %vm89, %v29, 0
  %v130 = vsel %vm89, %v30, 0
  %v133 = vsel %vm89, %v31, 0
  %v136 = vsel %vm89, %v32, 0
  %v139 = vsel %vm89, %v33, 0
  %v142 = vsel %vm89, %v34, 0
  %v145 = vsel %vm89, %v35, 0
  %v148 = vsel %vm89, %v36, 0
  %v151 = vsel %vm89, %v37, 0
  %v154 = vsel %vm89, %v38, 0
  %v157 = vsel %vm89, %v39, 0
  %v160 = vsel %vm89, %v40, 0
  %v163 = vsel %vm89, %v41, 0
  %v166 = vsel %vm89, %v42, 0
  %v169 = vsel %vm89, %v43, 0
  %v172 = vsel %vm89, %v44, 0
  %v175 = vsel %vm89, %v45, 0
  %v178 = vsel %vm89, %v46, 0
  %v181 = vsel %vm89, %v47, 0
  %v184 = vsel %vm89, %v48, 0
  %v187 = vsel %vm89, %v49, 0
  %v190 = vsel %vm89, %v50, 0
  %v193 = vsel %vm89, %v51, 0
  %v196 = vsel %vm89, %v52, 0
  %v199 = vsel %vm89, %v53, 0
  %v202 = vsel %vm89, %v54, 0
  %v205 = vsel %vm89, %v55, 0
  %v208 = vsel %vm89, %v56, 0
  %v211 = vsel %vm89, %v57, 0
  %v214 = vsel %vm89, %v58, 0
  %v217 = vsel %vm89, %v59, 0
  %v220 = vsel %vm89, %v60, 0
  %v223 = vsel %vm89, %v61, 0
  %v226 = vsel %vm89, %v62, 0
  %v229 = vsel %vm89, %v63, 0
  %v232 = vsel %vm89, %v64, 0
  %v235 = vsel %vm89, %v65, 0
  %v238 = vsel %vm89, %v66, 0
  %v241 = vsel %vm89, %v67, 0
  %v244 = vsel %vm89, %v68, 0
  %v247 = vsel %vm89, %v69, 0
  %v250 = vsel %vm89, %v70, 0
  %v253 = vsel %vm89, %v71, 0
  %v256 = vsel %vm89, %v72, 0
  %v259 = vsel %vm89, %v73, 0
  %v262 = vsel %vm89, %v74, 0
  %v265 = vsel %vm89, %v75, 0
  %v268 = vsel %vm89, %v76, 0
  %v271 = vsel %vm89, %v77, 0
  %v274 = vsel %vm89, %v78, 0
  %v277 = vsel %vm89, %v79, 0
  %v280 = vsel %vm89, %v80, 0
  %vm282 = vcmask 1043456
  %v284 = vsel %vm282, %v81, 0
  %286 = vmatprep.subr.mxu0 0.0
  %287 = vmatpush1.msra.mxu0 %v284
  %288 = vmatprep.subr.mxu0 0.0
  %289 = vmatpush1.msra.mxu0 0.0
  %290 = vmatprep.subr.mxu0 0.0
  %291 = vmatpush1.msra.mxu0 0.0
  %292 = vmatprep.subr.mxu0 0.0
  %293 = vmatpush1.msra.mxu0 0.0
  %294 = vmatprep.subr.mxu0 0.0
  %295 = vmatpush1.msra.mxu0 0.0
  %296 = vmatprep.subr.mxu0 0.0
  %297 = vmatpush1.msra.mxu0 0.0
  %298 = vmatprep.subr.mxu0 0.0
  %299 = vmatpush1.msra.mxu0 0.0
  %300 = vmatprep.subr.mxu0 0.0
  %301 = vmatpush1.msra.mxu0 0.0
  %302 = vmatprep.subr.mxu0 0.0
  %303 = vmatpush1.msra.mxu0 0.0
  %304 = vmatprep.subr.mxu0 0.0
  %305 = vmatpush1.msra.mxu0 0.0
  %306 = vmatprep.subr.mxu0 0.0
  %307 = vmatpush1.msra.mxu0 0.0
  %308 = vmatprep.subr.mxu0 0.0
  %309 = vmatpush1.msra.mxu0 0.0
  %310 = vmatprep.subr.mxu0 0.0
  %311 = vmatpush1.msra.mxu0 0.0
  %312 = vmatprep.subr.mxu0 0.0
  %313 = vmatpush1.msra.mxu0 0.0
  %314 = vmatprep.subr.mxu0 0.0
  %315 = vmatpush1.msra.mxu0 0.0
  %316 = vmatprep.subr.mxu0 0.0
  %317 = vmatpush1.msra.mxu0 0.0
  %318 = vmatprep.subr.mxu0 0.0
  %319 = vmatpush1.msra.mxu0 0.0
  %320 = vmatprep.subr.mxu0 0.0
  %321 = vmatpush1.msra.mxu0 0.0
  %322 = vmatprep.subr.mxu0 0.0
  %323 = vmatpush1.msra.mxu0 0.0
  %324 = vmatprep.subr.mxu0 0.0
  %325 = vmatpush1.msra.mxu0 0.0
  %326 = vmatprep.subr.mxu0 0.0
  %327 = vmatpush1.msra.mxu0 0.0
  %328 = vmatprep.subr.mxu0 0.0
  %329 = vmatpush1.msra.mxu0 0.0
  %330 = vmatprep.subr.mxu0 0.0
  %331 = vmatpush1.msra.mxu0 0.0
  %332 = vmatprep.subr.mxu0 0.0
  %333 = vmatpush1.msra.mxu0 0.0
  %334 = vmatprep.subr.mxu0 0.0
  %335 = vmatpush1.msra.mxu0 0.0
  %336 = vmatprep.subr.mxu0 0.0
  %337 = vmatpush1.msra.mxu0 0.0
  %338 = vmatprep.subr.mxu0 0.0
  %339 = vmatpush1.msra.mxu0 0.0
  %340 = vmatprep.subr.mxu0 0.0
  %341 = vmatpush1.msra.mxu0 0.0
  %342 = vmatprep.subr.mxu0 0.0
  %343 = vmatpush1.msra.mxu0 0.0
  %344 = vmatprep.subr.mxu0 0.0
  %345 = vmatpush1.msra.mxu0 0.0
  %346 = vmatprep.subr.mxu0 0.0
  %347 = vmatpush1.msra.mxu0 0.0
  %348 = vmatprep.subr.mxu0 0.0
  %349 = vmatpush1.msra.mxu0 0.0
  %350 = vmatprep.mubr.f32.mxu0 0.0
  %351 = vmatmul.mubr.f32.gmra.mrb[0].mxu0 %v91
  %v352 = vpop.f32.mrb[0].mxu0
  %v353 = vadd.f32 %v87, %v352
  %v354 = vpop.f32.mrb[0].mxu0
  %355 = vmatprep.mubr.f32.mxu0 0.0
  %356 = vmatmul.mubr.f32.gmra.mrb[0].mxu0 %v94
  %v357 = vpop.f32.mrb[0].mxu0
  %v358 = vadd.f32 %v87, %v357
  %v359 = vpop.f32.mrb[0].mxu0
  %360 = vmatprep.mubr.f32.mxu0 0.0
  %361 = vmatmul.mubr.f32.gmra.mrb[0].mxu0 %v97
  %v362 = vpop.f32.mrb[0].mxu0
  %v363 = vadd.f32 %v87, %v362
  %v364 = vpop.f32.mrb[0].mxu0
  %365 = vmatprep.mubr.f32.mxu0 0.0
  %366 = vmatmul.mubr.f32.gmra.mrb[0].mxu0 %v100
  %v367 = vpop.f32.mrb[0].mxu0
  %v368 = vadd.f32 %v87, %v367
  %v369 = vpop.f32.mrb[0].mxu0
  %370 = vmatprep.mubr.f32.mxu0 0.0
  %371 = vmatmul.mubr.f32.gmra.mrb[0].mxu0 %v103
  %v372 = vpop.f32.mrb[0].mxu0
  %v373 = vadd.f32 %v87, %v372
  %v374 = vpop.f32.mrb[0].mxu0
  %375 = vmatprep.mubr.f32.mxu0 0.0
  %376 = vmatmul.mubr.f32.gmra.mrb[0].mxu0 %v106
  %v377 = vpop.f32.mrb[0].mxu0
  %v378 = vadd.f32 %v87, %v377
  %v379 = vpop.f32.mrb[0].mxu0
  %380 = vmatprep.mubr.f32.mxu0 0.0
  %381 = vmatmul.mubr.f32.gmra.mrb[0].mxu0 %v109
  %v382 = vpop.f32.mrb[0].mxu0
  %v383 = vadd.f32 %v87, %v382
  %v384 = vpop.f32.mrb[0].mxu0
  %385 = vmatprep.mubr.f32.mxu0 0.0
  %386 = vmatmul.mubr.f32.gmra.mrb[0].mxu0 %v112
  %v387 = vpop.f32.mrb[0].mxu0
  %v388 = vadd.f32 %v87, %v387
  %v389 = vpop.f32.mrb[0].mxu0
  %390 = vmatprep.mubr.f32.mxu0 0.0
  %391 = vmatmul.mubr.f32.gmra.mrb[0].mxu0 %v115
  %v392 = vpop.f32.mrb[0].mxu0
  %v393 = vadd.f32 %v87, %v392
  %v394 = vpop.f32.mrb[0].mxu0
  %395 = vmatprep.mubr.f32.mxu0 0.0
  %396 = vmatmul.mubr.f32.gmra.mrb[0].mxu0 %v118
  %v397 = vpop.f32.mrb[0].mxu0
  %v398 = vadd.f32 %v87, %v397
  %v399 = vpop.f32.mrb[0].mxu0
  %400 = vmatprep.mubr.f32.mxu0 0.0
  %401 = vmatmul.mubr.f32.gmra.mrb[0].mxu0 %v121
  %v402 = vpop.f32.mrb[0].mxu0
  %v403 = vadd.f32 %v87, %v402
  %v404 = vpop.f32.mrb[0].mxu0
  %405 = vmatprep.mubr.f32.mxu0 0.0
  %406 = vmatmul.mubr.f32.gmra.mrb[0].mxu0 %v124
  %v407 = vpop.f32.mrb[0].mxu0
  %v408 = vadd.f32 %v87, %v407
  %v409 = vpop.f32.mrb[0].mxu0
  %410 = vmatprep.mubr.f32.mxu0 0.0
  %411 = vmatmul.mubr.f32.gmra.mrb[0].mxu0 %v127
  %v412 = vpop.f32.mrb[0].mxu0
  %v413 = vadd.f32 %v87, %v412
  %v414 = vpop.f32.mrb[0].mxu0
  %415 = vmatprep.mubr.f32.mxu0 0.0
  %416 = vmatmul.mubr.f32.gmra.mrb[0].mxu0 %v130
  %v417 = vpop.f32.mrb[0].mxu0
  %v418 = vadd.f32 %v87, %v417
  %v419 = vpop.f32.mrb[0].mxu0
  %420 = vmatprep.mubr.f32.mxu0 0.0
  %421 = vmatmul.mubr.f32.gmra.mrb[0].mxu0 %v133
  %v422 = vpop.f32.mrb[0].mxu0
  %v423 = vadd.f32 %v87, %v422
  %v424 = vpop.f32.mrb[0].mxu0
  %425 = vmatprep.mubr.f32.mxu0 0.0
  %426 = vmatmul.mubr.f32.gmra.mrb[0].mxu0 %v136
  %v427 = vpop.f32.mrb[0].mxu0
  %v428 = vadd.f32 %v87, %v427
  %v429 = vpop.f32.mrb[0].mxu0
  %430 = vmatprep.mubr.f32.mxu0 0.0
  %431 = vmatmul.mubr.f32.gmra.mrb[0].mxu0 %v139
  %v432 = vpop.f32.mrb[0].mxu0
  %v433 = vadd.f32 %v87, %v432
  %v434 = vpop.f32.mrb[0].mxu0
  %435 = vmatprep.mubr.f32.mxu0 0.0
  %436 = vmatmul.mubr.f32.gmra.mrb[0].mxu0 %v142
  %v437 = vpop.f32.mrb[0].mxu0
  %v438 = vadd.f32 %v87, %v437
  %v439 = vpop.f32.mrb[0].mxu0
  %440 = vmatprep.mubr.f32.mxu0 0.0
  %441 = vmatmul.mubr.f32.gmra.mrb[0].mxu0 %v145
  %v442 = vpop.f32.mrb[0].mxu0
  %v443 = vadd.f32 %v87, %v442
  %v444 = vpop.f32.mrb[0].mxu0
  %445 = vmatprep.mubr.f32.mxu0 0.0
  %446 = vmatmul.mubr.f32.gmra.mrb[0].mxu0 %v148
  %v447 = vpop.f32.mrb[0].mxu0
  %v448 = vadd.f32 %v87, %v447
  %v449 = vpop.f32.mrb[0].mxu0
  %450 = vmatprep.mubr.f32.mxu0 0.0
  %451 = vmatmul.mubr.f32.gmra.mrb[0].mxu0 %v151
  %v452 = vpop.f32.mrb[0].mxu0
  %v453 = vadd.f32 %v87, %v452
  %v454 = vpop.f32.mrb[0].mxu0
  %455 = vmatprep.mubr.f32.mxu0 0.0
  %456 = vmatmul.mubr.f32.gmra.mrb[0].mxu0 %v154
  %v457 = vpop.f32.mrb[0].mxu0
  %v458 = vadd.f32 %v87, %v457
  %v459 = vpop.f32.mrb[0].mxu0
  %460 = vmatprep.mubr.f32.mxu0 0.0
  %461 = vmatmul.mubr.f32.gmra.mrb[0].mxu0 %v157
  %v462 = vpop.f32.mrb[0].mxu0
  %v463 = vadd.f32 %v87, %v462
  %v464 = vpop.f32.mrb[0].mxu0
  %465 = vmatprep.mubr.f32.mxu0 0.0
  %466 = vmatmul.mubr.f32.gmra.mrb[0].mxu0 %v160
  %v467 = vpop.f32.mrb[0].mxu0
  %v468 = vadd.f32 %v87, %v467
  %v469 = vpop.f32.mrb[0].mxu0
  %470 = vmatprep.mubr.f32.mxu0 0.0
  %471 = vmatmul.mubr.f32.gmra.mrb[0].mxu0 %v163
  %v472 = vpop.f32.mrb[0].mxu0
  %v473 = vadd.f32 %v87, %v472
  %v474 = vpop.f32.mrb[0].mxu0
  %475 = vmatprep.mubr.f32.mxu0 0.0
  %476 = vmatmul.mubr.f32.gmra.mrb[0].mxu0 %v166
  %v477 = vpop.f32.mrb[0].mxu0
  %v478 = vadd.f32 %v87, %v477
  %v479 = vpop.f32.mrb[0].mxu0
  %480 = vmatprep.mubr.f32.mxu0 0.0
  %481 = vmatmul.mubr.f32.gmra.mrb[0].mxu0 %v169
  %v482 = vpop.f32.mrb[0].mxu0
  %v483 = vadd.f32 %v87, %v482
  %v484 = vpop.f32.mrb[0].mxu0
  %485 = vmatprep.mubr.f32.mxu0 0.0
  %486 = vmatmul.mubr.f32.gmra.mrb[0].mxu0 %v172
  %v487 = vpop.f32.mrb[0].mxu0
  %v488 = vadd.f32 %v87, %v487
  %v489 = vpop.f32.mrb[0].mxu0
  %490 = vmatprep.mubr.f32.mxu0 0.0
  %491 = vmatmul.mubr.f32.gmra.mrb[0].mxu0 %v175
  %v492 = vpop.f32.mrb[0].mxu0
  %v493 = vadd.f32 %v87, %v492
  %v494 = vpop.f32.mrb[0].mxu0
  %495 = vmatprep.mubr.f32.mxu0 0.0
  %496 = vmatmul.mubr.f32.gmra.mrb[0].mxu0 %v178
  %v497 = vpop.f32.mrb[0].mxu0
  %v498 = vadd.f32 %v87, %v497
  %v499 = vpop.f32.mrb[0].mxu0
  %500 = vmatprep.mubr.f32.mxu0 0.0
  %501 = vmatmul.mubr.f32.gmra.mrb[0].mxu0 %v181
  %v502 = vpop.f32.mrb[0].mxu0
  %v503 = vadd.f32 %v87, %v502
  %v504 = vpop.f32.mrb[0].mxu0
  %505 = vmatprep.mubr.f32.mxu0 0.0
  %506 = vmatmul.mubr.f32.gmra.mrb[0].mxu0 %v184
  %v507 = vpop.f32.mrb[0].mxu0
  %v508 = vadd.f32 %v87, %v507
  %v509 = vpop.f32.mrb[0].mxu0
  %510 = vmatprep.mubr.f32.mxu0 0.0
  %511 = vmatmul.mubr.f32.gmra.mrb[0].mxu0 %v187
  %v512 = vpop.f32.mrb[0].mxu0
  %v513 = vadd.f32 %v87, %v512
  %v514 = vpop.f32.mrb[0].mxu0
  %515 = vmatprep.mubr.f32.mxu0 0.0
  %516 = vmatmul.mubr.f32.gmra.mrb[0].mxu0 %v190
  %v517 = vpop.f32.mrb[0].mxu0
  %v518 = vadd.f32 %v87, %v517
  %v519 = vpop.f32.mrb[0].mxu0
  %520 = vmatprep.mubr.f32.mxu0 0.0
  %521 = vmatmul.mubr.f32.gmra.mrb[0].mxu0 %v193
  %v522 = vpop.f32.mrb[0].mxu0
  %v523 = vadd.f32 %v87, %v522
  %v524 = vpop.f32.mrb[0].mxu0
  %525 = vmatprep.mubr.f32.mxu0 0.0
  %526 = vmatmul.mubr.f32.gmra.mrb[0].mxu0 %v196
  %v527 = vpop.f32.mrb[0].mxu0
  %v528 = vadd.f32 %v87, %v527
  %v529 = vpop.f32.mrb[0].mxu0
  %530 = vmatprep.mubr.f32.mxu0 0.0
  %531 = vmatmul.mubr.f32.gmra.mrb[0].mxu0 %v199
  %v532 = vpop.f32.mrb[0].mxu0
  %v533 = vadd.f32 %v87, %v532
  %v534 = vpop.f32.mrb[0].mxu0
  %535 = vmatprep.mubr.f32.mxu0 0.0
  %536 = vmatmul.mubr.f32.gmra.mrb[0].mxu0 %v202
  %v537 = vpop.f32.mrb[0].mxu0
  %v538 = vadd.f32 %v87, %v537
  %v539 = vpop.f32.mrb[0].mxu0
  %540 = vmatprep.mubr.f32.mxu0 0.0
  %541 = vmatmul.mubr.f32.gmra.mrb[0].mxu0 %v205
  %v542 = vpop.f32.mrb[0].mxu0
  %v543 = vadd.f32 %v87, %v542
  %v544 = vpop.f32.mrb[0].mxu0
  %545 = vmatprep.mubr.f32.mxu0 0.0
  %546 = vmatmul.mubr.f32.gmra.mrb[0].mxu0 %v208
  %v547 = vpop.f32.mrb[0].mxu0
  %v548 = vadd.f32 %v87, %v547
  %v549 = vpop.f32.mrb[0].mxu0
  %550 = vmatprep.mubr.f32.mxu0 0.0
  %551 = vmatmul.mubr.f32.gmra.mrb[0].mxu0 %v211
  %v552 = vpop.f32.mrb[0].mxu0
  %v553 = vadd.f32 %v87, %v552
  %v554 = vpop.f32.mrb[0].mxu0
  %555 = vmatprep.mubr.f32.mxu0 0.0
  %556 = vmatmul.mubr.f32.gmra.mrb[0].mxu0 %v214
  %v557 = vpop.f32.mrb[0].mxu0
  %v558 = vadd.f32 %v87, %v557
  %v559 = vpop.f32.mrb[0].mxu0
  %560 = vmatprep.mubr.f32.mxu0 0.0
  %561 = vmatmul.mubr.f32.gmra.mrb[0].mxu0 %v217
  %v562 = vpop.f32.mrb[0].mxu0
  %v563 = vadd.f32 %v87, %v562
  %v564 = vpop.f32.mrb[0].mxu0
  %565 = vmatprep.mubr.f32.mxu0 0.0
  %566 = vmatmul.mubr.f32.gmra.mrb[0].mxu0 %v220
  %v567 = vpop.f32.mrb[0].mxu0
  %v568 = vadd.f32 %v87, %v567
  %v569 = vpop.f32.mrb[0].mxu0
  %570 = vmatprep.mubr.f32.mxu0 0.0
  %571 = vmatmul.mubr.f32.gmra.mrb[0].mxu0 %v223
  %v572 = vpop.f32.mrb[0].mxu0
  %v573 = vadd.f32 %v87, %v572
  %v574 = vpop.f32.mrb[0].mxu0
  %575 = vmatprep.mubr.f32.mxu0 0.0
  %576 = vmatmul.mubr.f32.gmra.mrb[0].mxu0 %v226
  %v577 = vpop.f32.mrb[0].mxu0
  %v578 = vadd.f32 %v87, %v577
  %v579 = vpop.f32.mrb[0].mxu0
  %580 = vmatprep.mubr.f32.mxu0 0.0
  %581 = vmatmul.mubr.f32.gmra.mrb[0].mxu0 %v229
  %v582 = vpop.f32.mrb[0].mxu0
  %v583 = vadd.f32 %v87, %v582
  %v584 = vpop.f32.mrb[0].mxu0
  %585 = vmatprep.mubr.f32.mxu0 0.0
  %586 = vmatmul.mubr.f32.gmra.mrb[0].mxu0 %v232
  %v587 = vpop.f32.mrb[0].mxu0
  %v588 = vadd.f32 %v87, %v587
  %v589 = vpop.f32.mrb[0].mxu0
  %590 = vmatprep.mubr.f32.mxu0 0.0
  %591 = vmatmul.mubr.f32.gmra.mrb[0].mxu0 %v235
  %v592 = vpop.f32.mrb[0].mxu0
  %v593 = vadd.f32 %v87, %v592
  %v594 = vpop.f32.mrb[0].mxu0
  %595 = vmatprep.mubr.f32.mxu0 0.0
  %596 = vmatmul.mubr.f32.gmra.mrb[0].mxu0 %v238
  %v597 = vpop.f32.mrb[0].mxu0
  %v598 = vadd.f32 %v87, %v597
  %v599 = vpop.f32.mrb[0].mxu0
  %600 = vmatprep.mubr.f32.mxu0 0.0
  %601 = vmatmul.mubr.f32.gmra.mrb[0].mxu0 %v241
  %v602 = vpop.f32.mrb[0].mxu0
  %v603 = vadd.f32 %v87, %v602
  %v604 = vpop.f32.mrb[0].mxu0
  %605 = vmatprep.mubr.f32.mxu0 0.0
  %606 = vmatmul.mubr.f32.gmra.mrb[0].mxu0 %v244
  %v607 = vpop.f32.mrb[0].mxu0
  %v608 = vadd.f32 %v87, %v607
  %v609 = vpop.f32.mrb[0].mxu0
  %610 = vmatprep.mubr.f32.mxu0 0.0
  %611 = vmatmul.mubr.f32.gmra.mrb[0].mxu0 %v247
  %v612 = vpop.f32.mrb[0].mxu0
  %v613 = vadd.f32 %v87, %v612
  %v614 = vpop.f32.mrb[0].mxu0
  %615 = vmatprep.mubr.f32.mxu0 0.0
  %616 = vmatmul.mubr.f32.gmra.mrb[0].mxu0 %v250
  %v617 = vpop.f32.mrb[0].mxu0
  %v618 = vadd.f32 %v87, %v617
  %v619 = vpop.f32.mrb[0].mxu0
  %620 = vmatprep.mubr.f32.mxu0 0.0
  %621 = vmatmul.mubr.f32.gmra.mrb[0].mxu0 %v253
  %v622 = vpop.f32.mrb[0].mxu0
  %v623 = vadd.f32 %v87, %v622
  %v624 = vpop.f32.mrb[0].mxu0
  %625 = vmatprep.mubr.f32.mxu0 0.0
  %626 = vmatmul.mubr.f32.gmra.mrb[0].mxu0 %v256
  %v627 = vpop.f32.mrb[0].mxu0
  %v628 = vadd.f32 %v87, %v627
  %v629 = vpop.f32.mrb[0].mxu0
  %630 = vmatprep.mubr.f32.mxu0 0.0
  %631 = vmatmul.mubr.f32.gmra.mrb[0].mxu0 %v259
  %v632 = vpop.f32.mrb[0].mxu0
  %v633 = vadd.f32 %v87, %v632
  %v634 = vpop.f32.mrb[0].mxu0
  %635 = vmatprep.mubr.f32.mxu0 0.0
  %636 = vmatmul.mubr.f32.gmra.mrb[0].mxu0 %v262
  %v637 = vpop.f32.mrb[0].mxu0
  %v638 = vadd.f32 %v87, %v637
  %v639 = vpop.f32.mrb[0].mxu0
  %640 = vmatprep.mubr.f32.mxu0 0.0
  %641 = vmatmul.mubr.f32.gmra.mrb[0].mxu0 %v265
  %v642 = vpop.f32.mrb[0].mxu0
  %v643 = vadd.f32 %v87, %v642
  %v644 = vpop.f32.mrb[0].mxu0
  %645 = vmatprep.mubr.f32.mxu0 0.0
  %646 = vmatmul.mubr.f32.gmra.mrb[0].mxu0 %v268
  %v647 = vpop.f32.mrb[0].mxu0
  %v648 = vadd.f32 %v87, %v647
  %v649 = vpop.f32.mrb[0].mxu0
  %650 = vmatprep.mubr.f32.mxu0 0.0
  %651 = vmatmul.mubr.f32.gmra.mrb[0].mxu0 %v271
  %v652 = vpop.f32.mrb[0].mxu0
  %v653 = vadd.f32 %v87, %v652
  %v654 = vpop.f32.mrb[0].mxu0
  %655 = vmatprep.mubr.f32.mxu0 0.0
  %656 = vmatmul.mubr.f32.gmra.mrb[0].mxu0 %v274
  %v657 = vpop.f32.mrb[0].mxu0
  %v658 = vadd.f32 %v87, %v657
  %v659 = vpop.f32.mrb[0].mxu0
  %660 = vmatprep.mubr.f32.mxu0 0.0
  %661 = vmatmul.mubr.f32.gmra.mrb[0].mxu0 %v277
  %v662 = vpop.f32.mrb[0].mxu0
  %v663 = vadd.f32 %v87, %v662
  %v664 = vpop.f32.mrb[0].mxu0
  %665 = vmatprep.mubr.f32.mxu0 0.0
  %666 = vmatmul.mubr.f32.gmra.mrb[0].mxu0 %v280
  %v667 = vpop.f32.mrb[0].mxu0
  %v668 = vadd.f32 %v87, %v667
  %v669 = vpop.f32.mrb[0].mxu0
  %670 = vdwg.mxu0
  %vm671 = vcmp.ge.f32.partialorder %v353, 0.0
  %vm672 = vcmp.ge.f32.partialorder %v358, 0.0
  %vm673 = vcmp.ge.f32.partialorder %v363, 0.0
  %vm674 = vcmp.ge.f32.partialorder %v368, 0.0
  %vm675 = vcmp.ge.f32.partialorder %v373, 0.0
  %vm676 = vcmp.ge.f32.partialorder %v378, 0.0
  %vm677 = vcmp.ge.f32.partialorder %v383, 0.0
  %vm678 = vcmp.ge.f32.partialorder %v388, 0.0
  %vm679 = vcmp.ge.f32.partialorder %v393, 0.0
  %vm680 = vcmp.ge.f32.partialorder %v398, 0.0
  %vm681 = vcmp.ge.f32.partialorder %v403, 0.0
  %vm682 = vcmp.ge.f32.partialorder %v408, 0.0
  %vm683 = vcmp.ge.f32.partialorder %v413, 0.0
  %vm684 = vcmp.ge.f32.partialorder %v418, 0.0
  %vm685 = vcmp.ge.f32.partialorder %v423, 0.0
  %vm686 = vcmp.ge.f32.partialorder %v428, 0.0
  %vm687 = vcmp.ge.f32.partialorder %v433, 0.0
  %vm688 = vcmp.ge.f32.partialorder %v438, 0.0
  %vm689 = vcmp.ge.f32.partialorder %v443, 0.0
  %vm690 = vcmp.ge.f32.partialorder %v448, 0.0
  %vm691 = vcmp.ge.f32.partialorder %v453, 0.0
  %vm692 = vcmp.ge.f32.partialorder %v458, 0.0
  %vm693 = vcmp.ge.f32.partialorder %v463, 0.0
  %vm694 = vcmp.ge.f32.partialorder %v468, 0.0
  %vm695 = vcmp.ge.f32.partialorder %v473, 0.0
  %vm696 = vcmp.ge.f32.partialorder %v478, 0.0
  %vm697 = vcmp.ge.f32.partialorder %v483, 0.0
  %vm698 = vcmp.ge.f32.partialorder %v488, 0.0
  %vm699 = vcmp.ge.f32.partialorder %v493, 0.0
  %vm700 = vcmp.ge.f32.partialorder %v498, 0.0
  %vm701 = vcmp.ge.f32.partialorder %v503, 0.0
  %vm702 = vcmp.ge.f32.partialorder %v508, 0.0
  %vm703 = vcmp.ge.f32.partialorder %v513, 0.0
  %vm704 = vcmp.ge.f32.partialorder %v518, 0.0
  %vm705 = vcmp.ge.f32.partialorder %v523, 0.0
  %vm706 = vcmp.ge.f32.partialorder %v528, 0.0
  %vm707 = vcmp.ge.f32.partialorder %v533, 0.0
  %vm708 = vcmp.ge.f32.partialorder %v538, 0.0
  %vm709 = vcmp.ge.f32.partialorder %v543, 0.0
  %vm710 = vcmp.ge.f32.partialorder %v548, 0.0
  %vm711 = vcmp.ge.f32.partialorder %v553, 0.0
  %vm712 = vcmp.ge.f32.partialorder %v558, 0.0
  %vm713 = vcmp.ge.f32.partialorder %v563, 0.0
  %vm714 = vcmp.ge.f32.partialorder %v568, 0.0
  %vm715 = vcmp.ge.f32.partialorder %v573, 0.0
  %vm716 = vcmp.ge.f32.partialorder %v578, 0.0
  %vm717 = vcmp.ge.f32.partialorder %v583, 0.0
  %vm718 = vcmp.ge.f32.partialorder %v588, 0.0
  %vm719 = vcmp.ge.f32.partialorder %v593, 0.0
  %vm720 = vcmp.ge.f32.partialorder %v598, 0.0
  %vm721 = vcmp.ge.f32.partialorder %v603, 0.0
  %vm722 = vcmp.ge.f32.partialorder %v608, 0.0
  %vm723 = vcmp.ge.f32.partialorder %v613, 0.0
  %vm724 = vcmp.ge.f32.partialorder %v618, 0.0
  %vm725 = vcmp.ge.f32.partialorder %v623, 0.0
  %vm726 = vcmp.ge.f32.partialorder %v628, 0.0
  %vm727 = vcmp.ge.f32.partialorder %v633, 0.0
  %vm728 = vcmp.ge.f32.partialorder %v638, 0.0
  %vm729 = vcmp.ge.f32.partialorder %v643, 0.0
  %vm730 = vcmp.ge.f32.partialorder %v648, 0.0
  %vm731 = vcmp.ge.f32.partialorder %v653, 0.0
  %vm732 = vcmp.ge.f32.partialorder %v658, 0.0
  %vm733 = vcmp.ge.f32.partialorder %v663, 0.0
  %vm734 = vcmp.ge.f32.partialorder %v668, 0.0
  %v735 = vld [vmem:[%s3] sm:$0x1]
  %v737 = vlaneseq
  %v738 = vshrl.u32 %v737, 7
  %v739 = vsub.s32 0, %v738
  %v740 = vrot.slane %v735, %v739
  %v742 = vmul.f32 %v740, %v353
  %v743 = vmul.f32 %v740, %v358
  %v744 = vmul.f32 %v740, %v363
  %v745 = vmul.f32 %v740, %v368
  %v746 = vmul.f32 %v740, %v373
  %v747 = vmul.f32 %v740, %v378
  %v748 = vmul.f32 %v740, %v383
  %v749 = vmul.f32 %v740, %v388
  %v750 = vmul.f32 %v740, %v393
  %v751 = vmul.f32 %v740, %v398
  %v752 = vmul.f32 %v740, %v403
  %v753 = vmul.f32 %v740, %v408
  %v754 = vmul.f32 %v740, %v413
  %v755 = vmul.f32 %v740, %v418
  %v756 = vmul.f32 %v740, %v423
  %v757 = vmul.f32 %v740, %v428
  %v758 = vmul.f32 %v740, %v433
  %v759 = vmul.f32 %v740, %v438
  %v760 = vmul.f32 %v740, %v443
  %v761 = vmul.f32 %v740, %v448
  %v762 = vmul.f32 %v740, %v453
  %v763 = vmul.f32 %v740, %v458
  %v764 = vmul.f32 %v740, %v463
  %v765 = vmul.f32 %v740, %v468
  %v766 = vmul.f32 %v740, %v473
  %v767 = vmul.f32 %v740, %v478
  %v768 = vmul.f32 %v740, %v483
  %v769 = vmul.f32 %v740, %v488
  %v770 = vmul.f32 %v740, %v493
  %v771 = vmul.f32 %v740, %v498
  %v772 = vmul.f32 %v740, %v503
  %v773 = vmul.f32 %v740, %v508
  %v774 = vmul.f32 %v740, %v513
  %v775 = vmul.f32 %v740, %v518
  %v776 = vmul.f32 %v740, %v523
  %v777 = vmul.f32 %v740, %v528
  %v778 = vmul.f32 %v740, %v533
  %v779 = vmul.f32 %v740, %v538
  %v780 = vmul.f32 %v740, %v543
  %v781 = vmul.f32 %v740, %v548
  %v782 = vmul.f32 %v740, %v553
  %v783 = vmul.f32 %v740, %v558
  %v784 = vmul.f32 %v740, %v563
  %v785 = vmul.f32 %v740, %v568
  %v786 = vmul.f32 %v740, %v573
  %v787 = vmul.f32 %v740, %v578
  %v788 = vmul.f32 %v740, %v583
  %v789 = vmul.f32 %v740, %v588
  %v790 = vmul.f32 %v740, %v593
  %v791 = vmul.f32 %v740, %v598
  %v792 = vmul.f32 %v740, %v603
  %v793 = vmul.f32 %v740, %v608
  %v794 = vmul.f32 %v740, %v613
  %v795 = vmul.f32 %v740, %v618
  %v796 = vmul.f32 %v740, %v623
  %v797 = vmul.f32 %v740, %v628
  %v798 = vmul.f32 %v740, %v633
  %v799 = vmul.f32 %v740, %v638
  %v800 = vmul.f32 %v740, %v643
  %v801 = vmul.f32 %v740, %v648
  %v802 = vmul.f32 %v740, %v653
  %v803 = vmul.f32 %v740, %v658
  %v804 = vmul.f32 %v740, %v663
  %v805 = vmul.f32 %v740, %v668
  %v806 = vsel %vm671, %v353, %v742
  %v807 = vsel %vm672, %v358, %v743
  %v808 = vsel %vm673, %v363, %v744
  %v809 = vsel %vm674, %v368, %v745
  %v810 = vsel %vm675, %v373, %v746
  %v811 = vsel %vm676, %v378, %v747
  %v812 = vsel %vm677, %v383, %v748
  %v813 = vsel %vm678, %v388, %v749
  %v814 = vsel %vm679, %v393, %v750
  %v815 = vsel %vm680, %v398, %v751
  %v816 = vsel %vm681, %v403, %v752
  %v817 = vsel %vm682, %v408, %v753
  %v818 = vsel %vm683, %v413, %v754
  %v819 = vsel %vm684, %v418, %v755
  %v820 = vsel %vm685, %v423, %v756
  %v821 = vsel %vm686, %v428, %v757
  %v822 = vsel %vm687, %v433, %v758
  %v823 = vsel %vm688, %v438, %v759
  %v824 = vsel %vm689, %v443, %v760
  %v825 = vsel %vm690, %v448, %v761
  %v826 = vsel %vm691, %v453, %v762
  %v827 = vsel %vm692, %v458, %v763
  %v828 = vsel %vm693, %v463, %v764
  %v829 = vsel %vm694, %v468, %v765
  %v830 = vsel %vm695, %v473, %v766
  %v831 = vsel %vm696, %v478, %v767
  %v832 = vsel %vm697, %v483, %v768
  %v833 = vsel %vm698, %v488, %v769
  %v834 = vsel %vm699, %v493, %v770
  %v835 = vsel %vm700, %v498, %v771
  %v836 = vsel %vm701, %v503, %v772
  %v837 = vsel %vm702, %v508, %v773
  %v838 = vsel %vm703, %v513, %v774
  %v839 = vsel %vm704, %v518, %v775
  %v840 = vsel %vm705, %v523, %v776
  %v841 = vsel %vm706, %v528, %v777
  %v842 = vsel %vm707, %v533, %v778
  %v843 = vsel %vm708, %v538, %v779
  %v844 = vsel %vm709, %v543, %v780
  %v845 = vsel %vm710, %v548, %v781
  %v846 = vsel %vm711, %v553, %v782
  %v847 = vsel %vm712, %v558, %v783
  %v848 = vsel %vm713, %v563, %v784
  %v849 = vsel %vm714, %v568, %v785
  %v850 = vsel %vm715, %v573, %v786
  %v851 = vsel %vm716, %v578, %v787
  %v852 = vsel %vm717, %v583, %v788
  %v853 = vsel %vm718, %v588, %v789
  %v854 = vsel %vm719, %v593, %v790
  %v855 = vsel %vm720, %v598, %v791
  %v856 = vsel %vm721, %v603, %v792
  %v857 = vsel %vm722, %v608, %v793
  %v858 = vsel %vm723, %v613, %v794
  %v859 = vsel %vm724, %v618, %v795
  %v860 = vsel %vm725, %v623, %v796
  %v861 = vsel %vm726, %v628, %v797
  %v862 = vsel %vm727, %v633, %v798
  %v863 = vsel %vm728, %v638, %v799
  %v864 = vsel %vm729, %v643, %v800
  %v865 = vsel %vm730, %v648, %v801
  %v866 = vsel %vm731, %v653, %v802
  %v867 = vsel %vm732, %v658, %v803
  %v868 = vsel %vm733, %v663, %v804
  %v869 = vsel %vm734, %v668, %v805
  %vm870 = vcmask 293888
  %871 = vst.msk [vmem:[%s4] sm:$0xff] %vm870, %v806
  %872 = vst.msk [vmem:[%s4 + $0x8] sm:$0xff] %vm870, %v807
  %873 = vst.msk [vmem:[%s4 + $0x10] sm:$0xff] %vm870, %v808
  %874 = vst.msk [vmem:[%s4 + $0x18] sm:$0xff] %vm870, %v809
  %875 = vst.msk [vmem:[%s4 + $0x20] sm:$0xff] %vm870, %v810
  %876 = vst.msk [vmem:[%s4 + $0x28] sm:$0xff] %vm870, %v811
  %877 = vst.msk [vmem:[%s4 + $0x30] sm:$0xff] %vm870, %v812
  %878 = vst.msk [vmem:[%s4 + $0x38] sm:$0xff] %vm870, %v813
  %879 = vst.msk [vmem:[%s4 + $0x40] sm:$0xff] %vm870, %v814
  %880 = vst.msk [vmem:[%s4 + $0x48] sm:$0xff] %vm870, %v815
  %881 = vst.msk [vmem:[%s4 + $0x50] sm:$0xff] %vm870, %v816
  %882 = vst.msk [vmem:[%s4 + $0x58] sm:$0xff] %vm870, %v817
  %883 = vst.msk [vmem:[%s4 + $0x60] sm:$0xff] %vm870, %v818
  %884 = vst.msk [vmem:[%s4 + $0x68] sm:$0xff] %vm870, %v819
  %885 = vst.msk [vmem:[%s4 + $0x70] sm:$0xff] %vm870, %v820
  %886 = vst.msk [vmem:[%s4 + $0x78] sm:$0xff] %vm870, %v821
  %887 = vst.msk [vmem:[%s4 + $0x80] sm:$0xff] %vm870, %v822
  %888 = vst.msk [vmem:[%s4 + $0x88] sm:$0xff] %vm870, %v823
  %889 = vst.msk [vmem:[%s4 + $0x90] sm:$0xff] %vm870, %v824
  %890 = vst.msk [vmem:[%s4 + $0x98] sm:$0xff] %vm870, %v825
  %891 = vst.msk [vmem:[%s4 + $0xa0] sm:$0xff] %vm870, %v826
  %892 = vst.msk [vmem:[%s4 + $0xa8] sm:$0xff] %vm870, %v827
  %893 = vst.msk [vmem:[%s4 + $0xb0] sm:$0xff] %vm870, %v828
  %894 = vst.msk [vmem:[%s4 + $0xb8] sm:$0xff] %vm870, %v829
  %895 = vst.msk [vmem:[%s4 + $0xc0] sm:$0xff] %vm870, %v830
  %896 = vst.msk [vmem:[%s4 + $0xc8] sm:$0xff] %vm870, %v831
  %897 = vst.msk [vmem:[%s4 + $0xd0] sm:$0xff] %vm870, %v832
  %898 = vst.msk [vmem:[%s4 + $0xd8] sm:$0xff] %vm870, %v833
  %899 = vst.msk [vmem:[%s4 + $0xe0] sm:$0xff] %vm870, %v834
  %900 = vst.msk [vmem:[%s4 + $0xe8] sm:$0xff] %vm870, %v835
  %901 = vst.msk [vmem:[%s4 + $0xf0] sm:$0xff] %vm870, %v836
  %902 = vst.msk [vmem:[%s4 + $0xf8] sm:$0xff] %vm870, %v837
  %903 = vst.msk [vmem:[%s4 + $0x100] sm:$0xff] %vm870, %v838
  %904 = vst.msk [vmem:[%s4 + $0x108] sm:$0xff] %vm870, %v839
  %905 = vst.msk [vmem:[%s4 + $0x110] sm:$0xff] %vm870, %v840
  %906 = vst.msk [vmem:[%s4 + $0x118] sm:$0xff] %vm870, %v841
  %907 = vst.msk [vmem:[%s4 + $0x120] sm:$0xff] %vm870, %v842
  %908 = vst.msk [vmem:[%s4 + $0x128] sm:$0xff] %vm870, %v843
  %909 = vst.msk [vmem:[%s4 + $0x130] sm:$0xff] %vm870, %v844
  %910 = vst.msk [vmem:[%s4 + $0x138] sm:$0xff] %vm870, %v845
  %911 = vst.msk [vmem:[%s4 + $0x140] sm:$0xff] %vm870, %v846
  %912 = vst.msk [vmem:[%s4 + $0x148] sm:$0xff] %vm870, %v847
  %913 = vst.msk [vmem:[%s4 + $0x150] sm:$0xff] %vm870, %v848
  %914 = vst.msk [vmem:[%s4 + $0x158] sm:$0xff] %vm870, %v849
  %915 = vst.msk [vmem:[%s4 + $0x160] sm:$0xff] %vm870, %v850
  %916 = vst.msk [vmem:[%s4 + $0x168] sm:$0xff] %vm870, %v851
  %917 = vst.msk [vmem:[%s4 + $0x170] sm:$0xff] %vm870, %v852
  %918 = vst.msk [vmem:[%s4 + $0x178] sm:$0xff] %vm870, %v853
  %919 = vst.msk [vmem:[%s4 + $0x180] sm:$0xff] %vm870, %v854
  %920 = vst.msk [vmem:[%s4 + $0x188] sm:$0xff] %vm870, %v855
  %921 = vst.msk [vmem:[%s4 + $0x190] sm:$0xff] %vm870, %v856
  %922 = vst.msk [vmem:[%s4 + $0x198] sm:$0xff] %vm870, %v857
  %923 = vst.msk [vmem:[%s4 + $0x1a0] sm:$0xff] %vm870, %v858
  %924 = vst.msk [vmem:[%s4 + $0x1a8] sm:$0xff] %vm870, %v859
  %925 = vst.msk [vmem:[%s4 + $0x1b0] sm:$0xff] %vm870, %v860
  %926 = vst.msk [vmem:[%s4 + $0x1b8] sm:$0xff] %vm870, %v861
  %927 = vst.msk [vmem:[%s4 + $0x1c0] sm:$0xff] %vm870, %v862
  %928 = vst.msk [vmem:[%s4 + $0x1c8] sm:$0xff] %vm870, %v863
  %929 = vst.msk [vmem:[%s4 + $0x1d0] sm:$0xff] %vm870, %v864
  %930 = vst.msk [vmem:[%s4 + $0x1d8] sm:$0xff] %vm870, %v865
  %931 = vst.msk [vmem:[%s4 + $0x1e0] sm:$0xff] %vm870, %v866
  %932 = vst.msk [vmem:[%s4 + $0x1e8] sm:$0xff] %vm870, %v867
  %933 = vst.msk [vmem:[%s4 + $0x1f0] sm:$0xff] %vm870, %v868
  %934 = vst.msk [vmem:[%s4 + $0x1f8] sm:$0xff] %vm870, %v869
  // Predicated region
  $region18: #{pz_inception_forward.4} parent=0 // pred_check
    _
  $region19: #{pz_inception_forward.4} parent=0 // pred_check_branch
    %936 = sbr.rel (0) target = $region21
  $region20: #{pz_inception_forward.4} parent=0 // pred_region
    _
  $region21: #{pz_inception_forward.4} parent=0 // pred_fallthru
    _
  // Predicated region
  $region22: #{pz_inception_forward.4} parent=0 // pred_check
    _
  $region23: #{pz_inception_forward.4} parent=0 // pred_check_branch
    %938 = sbr.rel (0) target = $region25
  $region24: #{pz_inception_forward.4} parent=0 // pred_region
    _
  $region25: #{pz_inception_forward.4} parent=0 // pred_fallthru
    _

// kernel: pz_inception_forward.7
$region0: #{pz_inception_forward.7}
  #allocation0 [shape = 'u32[]', space=smem, size = 0x4, offset = 0x4, fixed_abs, tag = 'smem constant byte address 0x4 - core index']
  #allocation1 [shape = 'u32[144,128]{1,0:T(1,128)}', space=vmem, size = 0x12000, scoped, tag = 'internal scratch']
  %s0 = inlined_call_operand.vmem [shape: f32[512,200], index: 0, kind: input, shape index: {}]
  %s1 = inlined_call_operand.vmem [shape: f32[200,12], index: 1, kind: input, shape index: {}]
  %s2 = inlined_call_operand.vmem [shape: f32[1,12], index: 2, kind: input, shape index: {}]
  %s3 = inlined_call_operand.vmem [shape: f32[1,12], index: 3, kind: input, shape index: {}]
  %s4 = inlined_call_operand.vmem [shape: f32[512,12], index: 4, kind: output, shape index: {}]
  %s5 = sld [smem:[#allocation0]]
  $region26: #{pz_inception_forward.7} parent=0
    _
  %s7 = ssub.s32 1, %s5
  %s8 = scalar_select 0, %s7, %s5
  // Predicated region
  $region2: #{pz_inception_forward.7} parent=0 // pred_check
    _
  $region3: #{pz_inception_forward.7} parent=0 // pred_check_branch
    %10 = sbr.rel (0) target = $region5
  $region4: #{pz_inception_forward.7} parent=0 // pred_region
    _
  $region5: #{pz_inception_forward.7} parent=0 // pred_fallthru
    _
  // Predicated region
  $region6: #{pz_inception_forward.7} parent=0 // pred_check
    _
  $region7: #{pz_inception_forward.7} parent=0 // pred_check_branch
    %12 = sbr.rel (0) target = $region9
  $region8: #{pz_inception_forward.7} parent=0 // pred_region
    _
  $region9: #{pz_inception_forward.7} parent=0 // pred_fallthru
    _
  // Predicated region
  $region10: #{pz_inception_forward.7} parent=0 // pred_check
    _
  $region11: #{pz_inception_forward.7} parent=0 // pred_check_branch
    %14 = sbr.rel (0) target = $region13
  $region12: #{pz_inception_forward.7} parent=0 // pred_region
    _
  $region13: #{pz_inception_forward.7} parent=0 // pred_fallthru
    _
  // Predicated region
  $region14: #{pz_inception_forward.7} parent=0 // pred_check
    _
  $region15: #{pz_inception_forward.7} parent=0 // pred_check_branch
    %16 = sbr.rel (0) target = $region17
  $region16: #{pz_inception_forward.7} parent=0 // pred_region
    _
  $region17: #{pz_inception_forward.7} parent=0 // pred_fallthru
    _
  %v17 = vld [vmem:[%s0] sm:$0xff]
  %v18 = vld [vmem:[%s0 + $0x8] sm:$0xff]
  %v19 = vld [vmem:[%s0 + $0x10] sm:$0xff]
  %v20 = vld [vmem:[%s0 + $0x18] sm:$0xff]
  %v21 = vld [vmem:[%s0 + $0x20] sm:$0xff]
  %v22 = vld [vmem:[%s0 + $0x28] sm:$0xff]
  %v23 = vld [vmem:[%s0 + $0x30] sm:$0xff]
  %v24 = vld [vmem:[%s0 + $0x38] sm:$0xff]
  %v25 = vld [vmem:[%s0 + $0x40] sm:$0xff]
  %v26 = vld [vmem:[%s0 + $0x48] sm:$0xff]
  %v27 = vld [vmem:[%s0 + $0x50] sm:$0xff]
  %v28 = vld [vmem:[%s0 + $0x58] sm:$0xff]
  %v29 = vld [vmem:[%s0 + $0x60] sm:$0xff]
  %v30 = vld [vmem:[%s0 + $0x68] sm:$0xff]
  %v31 = vld [vmem:[%s0 + $0x70] sm:$0xff]
  %v32 = vld [vmem:[%s0 + $0x78] sm:$0xff]
  %v33 = vld [vmem:[%s0 + $0x80] sm:$0xff]
  %v34 = vld [vmem:[%s0 + $0x88] sm:$0xff]
  %v35 = vld [vmem:[%s0 + $0x90] sm:$0xff]
  %v36 = vld [vmem:[%s0 + $0x98] sm:$0xff]
  %v37 = vld [vmem:[%s0 + $0xa0] sm:$0xff]
  %v38 = vld [vmem:[%s0 + $0xa8] sm:$0xff]
  %v39 = vld [vmem:[%s0 + $0xb0] sm:$0xff]
  %v40 = vld [vmem:[%s0 + $0xb8] sm:$0xff]
  %v41 = vld [vmem:[%s0 + $0xc0] sm:$0xff]
  %v42 = vld [vmem:[%s0 + $0xc8] sm:$0xff]
  %v43 = vld [vmem:[%s0 + $0xd0] sm:$0xff]
  %v44 = vld [vmem:[%s0 + $0xd8] sm:$0xff]
  %v45 = vld [vmem:[%s0 + $0xe0] sm:$0xff]
  %v46 = vld [vmem:[%s0 + $0xe8] sm:$0xff]
  %v47 = vld [vmem:[%s0 + $0xf0] sm:$0xff]
  %v48 = vld [vmem:[%s0 + $0xf8] sm:$0xff]
  %v49 = vld [vmem:[%s0 + $0x100] sm:$0xff]
  %v50 = vld [vmem:[%s0 + $0x108] sm:$0xff]
  %v51 = vld [vmem:[%s0 + $0x110] sm:$0xff]
  %v52 = vld [vmem:[%s0 + $0x118] sm:$0xff]
  %v53 = vld [vmem:[%s0 + $0x120] sm:$0xff]
  %v54 = vld [vmem:[%s0 + $0x128] sm:$0xff]
  %v55 = vld [vmem:[%s0 + $0x130] sm:$0xff]
  %v56 = vld [vmem:[%s0 + $0x138] sm:$0xff]
  %v57 = vld [vmem:[%s0 + $0x140] sm:$0xff]
  %v58 = vld [vmem:[%s0 + $0x148] sm:$0xff]
  %v59 = vld [vmem:[%s0 + $0x150] sm:$0xff]
  %v60 = vld [vmem:[%s0 + $0x158] sm:$0xff]
  %v61 = vld [vmem:[%s0 + $0x160] sm:$0xff]
  %v62 = vld [vmem:[%s0 + $0x168] sm:$0xff]
  %v63 = vld [vmem:[%s0 + $0x170] sm:$0xff]
  %v64 = vld [vmem:[%s0 + $0x178] sm:$0xff]
  %v65 = vld [vmem:[%s0 + $0x180] sm:$0xff]
  %v66 = vld [vmem:[%s0 + $0x188] sm:$0xff]
  %v67 = vld [vmem:[%s0 + $0x190] sm:$0xff]
  %v68 = vld [vmem:[%s0 + $0x198] sm:$0xff]
  %v69 = vld [vmem:[%s0 + $0x1a0] sm:$0xff]
  %v70 = vld [vmem:[%s0 + $0x1a8] sm:$0xff]
  %v71 = vld [vmem:[%s0 + $0x1b0] sm:$0xff]
  %v72 = vld [vmem:[%s0 + $0x1b8] sm:$0xff]
  %v73 = vld [vmem:[%s0 + $0x1c0] sm:$0xff]
  %v74 = vld [vmem:[%s0 + $0x1c8] sm:$0xff]
  %v75 = vld [vmem:[%s0 + $0x1d0] sm:$0xff]
  %v76 = vld [vmem:[%s0 + $0x1d8] sm:$0xff]
  %v77 = vld [vmem:[%s0 + $0x1e0] sm:$0xff]
  %v78 = vld [vmem:[%s0 + $0x1e8] sm:$0xff]
  %v79 = vld [vmem:[%s0 + $0x1f0] sm:$0xff]
  %v80 = vld [vmem:[%s0 + $0x1f8] sm:$0xff]
  %v81 = vld [vmem:[%s0 + $0x200] sm:$0xff]
  %v82 = vld [vmem:[%s0 + $0x208] sm:$0xff]
  %v83 = vld [vmem:[%s0 + $0x210] sm:$0xff]
  %v84 = vld [vmem:[%s0 + $0x218] sm:$0xff]
  %v85 = vld [vmem:[%s0 + $0x220] sm:$0xff]
  %v86 = vld [vmem:[%s0 + $0x228] sm:$0xff]
  %v87 = vld [vmem:[%s0 + $0x230] sm:$0xff]
  %v88 = vld [vmem:[%s0 + $0x238] sm:$0xff]
  %v89 = vld [vmem:[%s0 + $0x240] sm:$0xff]
  %v90 = vld [vmem:[%s0 + $0x248] sm:$0xff]
  %v91 = vld [vmem:[%s0 + $0x250] sm:$0xff]
  %v92 = vld [vmem:[%s0 + $0x258] sm:$0xff]
  %v93 = vld [vmem:[%s0 + $0x260] sm:$0xff]
  %v94 = vld [vmem:[%s0 + $0x268] sm:$0xff]
  %v95 = vld [vmem:[%s0 + $0x270] sm:$0xff]
  %v96 = vld [vmem:[%s0 + $0x278] sm:$0xff]
  %v97 = vld [vmem:[%s0 + $0x280] sm:$0xff]
  %v98 = vld [vmem:[%s0 + $0x288] sm:$0xff]
  %v99 = vld [vmem:[%s0 + $0x290] sm:$0xff]
  %v100 = vld [vmem:[%s0 + $0x298] sm:$0xff]
  %v101 = vld [vmem:[%s0 + $0x2a0] sm:$0xff]
  %v102 = vld [vmem:[%s0 + $0x2a8] sm:$0xff]
  %v103 = vld [vmem:[%s0 + $0x2b0] sm:$0xff]
  %v104 = vld [vmem:[%s0 + $0x2b8] sm:$0xff]
  %v105 = vld [vmem:[%s0 + $0x2c0] sm:$0xff]
  %v106 = vld [vmem:[%s0 + $0x2c8] sm:$0xff]
  %v107 = vld [vmem:[%s0 + $0x2d0] sm:$0xff]
  %v108 = vld [vmem:[%s0 + $0x2d8] sm:$0xff]
  %v109 = vld [vmem:[%s0 + $0x2e0] sm:$0xff]
  %v110 = vld [vmem:[%s0 + $0x2e8] sm:$0xff]
  %v111 = vld [vmem:[%s0 + $0x2f0] sm:$0xff]
  %v112 = vld [vmem:[%s0 + $0x2f8] sm:$0xff]
  %v113 = vld [vmem:[%s0 + $0x300] sm:$0xff]
  %v114 = vld [vmem:[%s0 + $0x308] sm:$0xff]
  %v115 = vld [vmem:[%s0 + $0x310] sm:$0xff]
  %v116 = vld [vmem:[%s0 + $0x318] sm:$0xff]
  %v117 = vld [vmem:[%s0 + $0x320] sm:$0xff]
  %v118 = vld [vmem:[%s0 + $0x328] sm:$0xff]
  %v119 = vld [vmem:[%s0 + $0x330] sm:$0xff]
  %v120 = vld [vmem:[%s0 + $0x338] sm:$0xff]
  %v121 = vld [vmem:[%s0 + $0x340] sm:$0xff]
  %v122 = vld [vmem:[%s0 + $0x348] sm:$0xff]
  %v123 = vld [vmem:[%s0 + $0x350] sm:$0xff]
  %v124 = vld [vmem:[%s0 + $0x358] sm:$0xff]
  %v125 = vld [vmem:[%s0 + $0x360] sm:$0xff]
  %v126 = vld [vmem:[%s0 + $0x368] sm:$0xff]
  %v127 = vld [vmem:[%s0 + $0x370] sm:$0xff]
  %v128 = vld [vmem:[%s0 + $0x378] sm:$0xff]
  %v129 = vld [vmem:[%s0 + $0x380] sm:$0xff]
  %v130 = vld [vmem:[%s0 + $0x388] sm:$0xff]
  %v131 = vld [vmem:[%s0 + $0x390] sm:$0xff]
  %v132 = vld [vmem:[%s0 + $0x398] sm:$0xff]
  %v133 = vld [vmem:[%s0 + $0x3a0] sm:$0xff]
  %v134 = vld [vmem:[%s0 + $0x3a8] sm:$0xff]
  %v135 = vld [vmem:[%s0 + $0x3b0] sm:$0xff]
  %v136 = vld [vmem:[%s0 + $0x3b8] sm:$0xff]
  %v137 = vld [vmem:[%s0 + $0x3c0] sm:$0xff]
  %v138 = vld [vmem:[%s0 + $0x3c8] sm:$0xff]
  %v139 = vld [vmem:[%s0 + $0x3d0] sm:$0xff]
  %v140 = vld [vmem:[%s0 + $0x3d8] sm:$0xff]
  %v141 = vld [vmem:[%s0 + $0x3e0] sm:$0xff]
  %v142 = vld [vmem:[%s0 + $0x3e8] sm:$0xff]
  %v143 = vld [vmem:[%s0 + $0x3f0] sm:$0xff]
  %v144 = vld [vmem:[%s0 + $0x3f8] sm:$0xff]
  %v145 = vld [vmem:[%s1] sm:$0xff]
  %v146 = vld [vmem:[%s1 + $0x8] sm:$0xff]
  %v147 = vld [vmem:[%s1 + $0x10] sm:$0xff]
  %v148 = vld [vmem:[%s1 + $0x18] sm:$0xff]
  %v149 = vld [vmem:[%s1 + $0x20] sm:$0xff]
  %v150 = vld [vmem:[%s1 + $0x28] sm:$0xff]
  %v151 = vld [vmem:[%s1 + $0x30] sm:$0xff]
  %v152 = vld [vmem:[%s1 + $0x38] sm:$0xff]
  %v153 = vld [vmem:[%s1 + $0x40] sm:$0xff]
  %v154 = vld [vmem:[%s1 + $0x48] sm:$0xff]
  %v155 = vld [vmem:[%s1 + $0x50] sm:$0xff]
  %v156 = vld [vmem:[%s1 + $0x58] sm:$0xff]
  %v157 = vld [vmem:[%s1 + $0x60] sm:$0xff]
  %v158 = vld [vmem:[%s1 + $0x68] sm:$0xff]
  %v159 = vld [vmem:[%s1 + $0x70] sm:$0xff]
  %v160 = vld [vmem:[%s1 + $0x78] sm:$0xff]
  %v161 = vld [vmem:[%s1 + $0x80] sm:$0xff]
  %v162 = vld [vmem:[%s1 + $0x88] sm:$0xff]
  %v163 = vld [vmem:[%s1 + $0x90] sm:$0xff]
  %v164 = vld [vmem:[%s1 + $0x98] sm:$0xff]
  %v165 = vld [vmem:[%s1 + $0xa0] sm:$0xff]
  %v166 = vld [vmem:[%s1 + $0xa8] sm:$0xff]
  %v167 = vld [vmem:[%s1 + $0xb0] sm:$0xff]
  %v168 = vld [vmem:[%s1 + $0xb8] sm:$0xff]
  %v169 = vld [vmem:[%s1 + $0xc0] sm:$0xff]
  %v170 = vld [vmem:[%s2] sm:$0x1]
  %v172 = vlaneseq
  %v173 = vshrl.u32 %v172, 7
  %v174 = vsub.s32 0, %v173
  %v175 = vrot.slane %v170, %v174
  %vm177 = vcmask 588800
  %v179 = vsel %vm177, %v18, 0
  %v182 = vsel %vm177, %v20, 0
  %v185 = vsel %vm177, %v22, 0
  %v188 = vsel %vm177, %v24, 0
  %v191 = vsel %vm177, %v26, 0
  %v194 = vsel %vm177, %v28, 0
  %v197 = vsel %vm177, %v30, 0
  %v200 = vsel %vm177, %v32, 0
  %v203 = vsel %vm177, %v34, 0
  %v206 = vsel %vm177, %v36, 0
  %v209 = vsel %vm177, %v38, 0
  %v212 = vsel %vm177, %v40, 0
  %v215 = vsel %vm177, %v42, 0
  %v218 = vsel %vm177, %v44, 0
  %v221 = vsel %vm177, %v46, 0
  %v224 = vsel %vm177, %v48, 0
  %v227 = vsel %vm177, %v50, 0
  %v230 = vsel %vm177, %v52, 0
  %v233 = vsel %vm177, %v54, 0
  %v236 = vsel %vm177, %v56, 0
  %v239 = vsel %vm177, %v58, 0
  %v242 = vsel %vm177, %v60, 0
  %v245 = vsel %vm177, %v62, 0
  %v248 = vsel %vm177, %v64, 0
  %v251 = vsel %vm177, %v66, 0
  %v254 = vsel %vm177, %v68, 0
  %v257 = vsel %vm177, %v70, 0
  %v260 = vsel %vm177, %v72, 0
  %v263 = vsel %vm177, %v74, 0
  %v266 = vsel %vm177, %v76, 0
  %v269 = vsel %vm177, %v78, 0
  %v272 = vsel %vm177, %v80, 0
  %v275 = vsel %vm177, %v82, 0
  %v278 = vsel %vm177, %v84, 0
  %v281 = vsel %vm177, %v86, 0
  %v284 = vsel %vm177, %v88, 0
  %v287 = vsel %vm177, %v90, 0
  %v290 = vsel %vm177, %v92, 0
  %v293 = vsel %vm177, %v94, 0
  %v296 = vsel %vm177, %v96, 0
  %v299 = vsel %vm177, %v98, 0
  %v302 = vsel %vm177, %v100, 0
  %v305 = vsel %vm177, %v102, 0
  %v308 = vsel %vm177, %v104, 0
  %v311 = vsel %vm177, %v106, 0
  %v314 = vsel %vm177, %v108, 0
  %v317 = vsel %vm177, %v110, 0
  %v320 = vsel %vm177, %v112, 0
  %v323 = vsel %vm177, %v114, 0
  %v326 = vsel %vm177, %v116, 0
  %v329 = vsel %vm177, %v118, 0
  %v332 = vsel %vm177, %v120, 0
  %v335 = vsel %vm177, %v122, 0
  %v338 = vsel %vm177, %v124, 0
  %v341 = vsel %vm177, %v126, 0
  %v344 = vsel %vm177, %v128, 0
  %v347 = vsel %vm177, %v130, 0
  %v350 = vsel %vm177, %v132, 0
  %v353 = vsel %vm177, %v134, 0
  %v356 = vsel %vm177, %v136, 0
  %v359 = vsel %vm177, %v138, 0
  %v362 = vsel %vm177, %v140, 0
  %v365 = vsel %vm177, %v142, 0
  %v368 = vsel %vm177, %v144, 0
  %370 = vmatprep.subr.mxu0 0.0
  %371 = vmatpush1.msra.mxu0 %v145
  %372 = vmatprep.subr.mxu0 0.0
  %373 = vmatpush1.msra.mxu0 %v146
  %374 = vmatprep.subr.mxu0 0.0
  %375 = vmatpush1.msra.mxu0 %v147
  %376 = vmatprep.subr.mxu0 0.0
  %377 = vmatpush1.msra.mxu0 %v148
  %378 = vmatprep.subr.mxu0 0.0
  %379 = vmatpush1.msra.mxu0 %v149
  %380 = vmatprep.subr.mxu0 0.0
  %381 = vmatpush1.msra.mxu0 %v150
  %382 = vmatprep.subr.mxu0 0.0
  %383 = vmatpush1.msra.mxu0 %v151
  %384 = vmatprep.subr.mxu0 0.0
  %385 = vmatpush1.msra.mxu0 %v152
  %386 = vmatprep.subr.mxu0 0.0
  %387 = vmatpush1.msra.mxu0 %v153
  %388 = vmatprep.subr.mxu0 0.0
  %389 = vmatpush1.msra.mxu0 %v154
  %390 = vmatprep.subr.mxu0 0.0
  %391 = vmatpush1.msra.mxu0 %v155
  %392 = vmatprep.subr.mxu0 0.0
  %393 = vmatpush1.msra.mxu0 %v156
  %394 = vmatprep.subr.mxu0 0.0
  %395 = vmatpush1.msra.mxu0 %v157
  %396 = vmatprep.subr.mxu0 0.0
  %397 = vmatpush1.msra.mxu0 %v158
  %398 = vmatprep.subr.mxu0 0.0
  %399 = vmatpush1.msra.mxu0 %v159
  %400 = vmatprep.subr.mxu0 0.0
  %401 = vmatpush1.msra.mxu0 %v160
  %402 = vmatprep.subr.mxu0 0.0
  %403 = vmatpush1.msra.mxu0 %v161
  %404 = vmatprep.subr.mxu0 0.0
  %405 = vmatpush1.msra.mxu0 %v162
  %406 = vmatprep.subr.mxu0 0.0
  %407 = vmatpush1.msra.mxu0 %v163
  %408 = vmatprep.subr.mxu0 0.0
  %409 = vmatpush1.msra.mxu0 %v164
  %410 = vmatprep.subr.mxu0 0.0
  %411 = vmatpush1.msra.mxu0 %v165
  %412 = vmatprep.subr.mxu0 0.0
  %413 = vmatpush1.msra.mxu0 %v166
  %414 = vmatprep.subr.mxu0 0.0
  %415 = vmatpush1.msra.mxu0 %v167
  %416 = vmatprep.subr.mxu0 0.0
  %417 = vmatpush1.msra.mxu0 %v168
  %418 = vmatprep.subr.mxu0 0.0
  %419 = vmatpush1.msra.mxu0 %v169
  %420 = vmatprep.subr.mxu0 0.0
  %421 = vmatpush1.msra.mxu0 0.0
  %422 = vmatprep.subr.mxu0 0.0
  %423 = vmatpush1.msra.mxu0 0.0
  %424 = vmatprep.subr.mxu0 0.0
  %425 = vmatpush1.msra.mxu0 0.0
  %426 = vmatprep.subr.mxu0 0.0
  %427 = vmatpush1.msra.mxu0 0.0
  %428 = vmatprep.subr.mxu0 0.0
  %429 = vmatpush1.msra.mxu0 0.0
  %430 = vmatprep.subr.mxu0 0.0
  %431 = vmatpush1.msra.mxu0 0.0
  %432 = vmatprep.subr.mxu0 0.0
  %433 = vmatpush1.msra.mxu0 0.0
  %434 = vmatprep.mubr.f32.mxu0 %v179
  %435 = vmatmul.mubr.f32.gmra.mrb[0].mxu0 %v17
  %v436 = vpop.f32.mrb[0].mxu0
  %v437 = vadd.f32 %v175, %v436
  %v438 = vpop.f32.mrb[0].mxu0
  %439 = vmatprep.mubr.f32.mxu0 %v182
  %440 = vmatmul.mubr.f32.gmra.mrb[0].mxu0 %v19
  %v441 = vpop.f32.mrb[0].mxu0
  %v442 = vadd.f32 %v175, %v441
  %v443 = vpop.f32.mrb[0].mxu0
  %444 = vmatprep.mubr.f32.mxu0 %v185
  %445 = vmatmul.mubr.f32.gmra.mrb[0].mxu0 %v21
  %v446 = vpop.f32.mrb[0].mxu0
  %v447 = vadd.f32 %v175, %v446
  %v448 = vpop.f32.mrb[0].mxu0
  %449 = vmatprep.mubr.f32.mxu0 %v188
  %450 = vmatmul.mubr.f32.gmra.mrb[0].mxu0 %v23
  %v451 = vpop.f32.mrb[0].mxu0
  %v452 = vadd.f32 %v175, %v451
  %v453 = vpop.f32.mrb[0].mxu0
  %454 = vmatprep.mubr.f32.mxu0 %v191
  %455 = vmatmul.mubr.f32.gmra.mrb[0].mxu0 %v25
  %v456 = vpop.f32.mrb[0].mxu0
  %v457 = vadd.f32 %v175, %v456
  %v458 = vpop.f32.mrb[0].mxu0
  %459 = vmatprep.mubr.f32.mxu0 %v194
  %460 = vmatmul.mubr.f32.gmra.mrb[0].mxu0 %v27
  %v461 = vpop.f32.mrb[0].mxu0
  %v462 = vadd.f32 %v175, %v461
  %v463 = vpop.f32.mrb[0].mxu0
  %464 = vmatprep.mubr.f32.mxu0 %v197
  %465 = vmatmul.mubr.f32.gmra.mrb[0].mxu0 %v29
  %v466 = vpop.f32.mrb[0].mxu0
  %v467 = vadd.f32 %v175, %v466
  %v468 = vpop.f32.mrb[0].mxu0
  %469 = vmatprep.mubr.f32.mxu0 %v200
  %470 = vmatmul.mubr.f32.gmra.mrb[0].mxu0 %v31
  %v471 = vpop.f32.mrb[0].mxu0
  %v472 = vadd.f32 %v175, %v471
  %v473 = vpop.f32.mrb[0].mxu0
  %474 = vmatprep.mubr.f32.mxu0 %v203
  %475 = vmatmul.mubr.f32.gmra.mrb[0].mxu0 %v33
  %v476 = vpop.f32.mrb[0].mxu0
  %v477 = vadd.f32 %v175, %v476
  %v478 = vpop.f32.mrb[0].mxu0
  %479 = vmatprep.mubr.f32.mxu0 %v206
  %480 = vmatmul.mubr.f32.gmra.mrb[0].mxu0 %v35
  %v481 = vpop.f32.mrb[0].mxu0
  %v482 = vadd.f32 %v175, %v481
  %v483 = vpop.f32.mrb[0].mxu0
  %484 = vmatprep.mubr.f32.mxu0 %v209
  %485 = vmatmul.mubr.f32.gmra.mrb[0].mxu0 %v37
  %v486 = vpop.f32.mrb[0].mxu0
  %v487 = vadd.f32 %v175, %v486
  %v488 = vpop.f32.mrb[0].mxu0
  %489 = vmatprep.mubr.f32.mxu0 %v212
  %490 = vmatmul.mubr.f32.gmra.mrb[0].mxu0 %v39
  %v491 = vpop.f32.mrb[0].mxu0
  %v492 = vadd.f32 %v175, %v491
  %v493 = vpop.f32.mrb[0].mxu0
  %494 = vmatprep.mubr.f32.mxu0 %v215
  %495 = vmatmul.mubr.f32.gmra.mrb[0].mxu0 %v41
  %v496 = vpop.f32.mrb[0].mxu0
  %v497 = vadd.f32 %v175, %v496
  %v498 = vpop.f32.mrb[0].mxu0
  %499 = vmatprep.mubr.f32.mxu0 %v218
  %500 = vmatmul.mubr.f32.gmra.mrb[0].mxu0 %v43
  %v501 = vpop.f32.mrb[0].mxu0
  %v502 = vadd.f32 %v175, %v501
  %v503 = vpop.f32.mrb[0].mxu0
  %504 = vmatprep.mubr.f32.mxu0 %v221
  %505 = vmatmul.mubr.f32.gmra.mrb[0].mxu0 %v45
  %v506 = vpop.f32.mrb[0].mxu0
  %v507 = vadd.f32 %v175, %v506
  %v508 = vpop.f32.mrb[0].mxu0
  %509 = vmatprep.mubr.f32.mxu0 %v224
  %510 = vmatmul.mubr.f32.gmra.mrb[0].mxu0 %v47
  %v511 = vpop.f32.mrb[0].mxu0
  %v512 = vadd.f32 %v175, %v511
  %v513 = vpop.f32.mrb[0].mxu0
  %514 = vmatprep.mubr.f32.mxu0 %v227
  %515 = vmatmul.mubr.f32.gmra.mrb[0].mxu0 %v49
  %v516 = vpop.f32.mrb[0].mxu0
  %v517 = vadd.f32 %v175, %v516
  %v518 = vpop.f32.mrb[0].mxu0
  %519 = vmatprep.mubr.f32.mxu0 %v230
  %520 = vmatmul.mubr.f32.gmra.mrb[0].mxu0 %v51
  %v521 = vpop.f32.mrb[0].mxu0
  %v522 = vadd.f32 %v175, %v521
  %v523 = vpop.f32.mrb[0].mxu0
  %524 = vmatprep.mubr.f32.mxu0 %v233
  %525 = vmatmul.mubr.f32.gmra.mrb[0].mxu0 %v53
  %v526 = vpop.f32.mrb[0].mxu0
  %v527 = vadd.f32 %v175, %v526
  %v528 = vpop.f32.mrb[0].mxu0
  %529 = vmatprep.mubr.f32.mxu0 %v236
  %530 = vmatmul.mubr.f32.gmra.mrb[0].mxu0 %v55
  %v531 = vpop.f32.mrb[0].mxu0
  %v532 = vadd.f32 %v175, %v531
  %v533 = vpop.f32.mrb[0].mxu0
  %534 = vmatprep.mubr.f32.mxu0 %v239
  %535 = vmatmul.mubr.f32.gmra.mrb[0].mxu0 %v57
  %v536 = vpop.f32.mrb[0].mxu0
  %v537 = vadd.f32 %v175, %v536
  %v538 = vpop.f32.mrb[0].mxu0
  %539 = vmatprep.mubr.f32.mxu0 %v242
  %540 = vmatmul.mubr.f32.gmra.mrb[0].mxu0 %v59
  %v541 = vpop.f32.mrb[0].mxu0
  %v542 = vadd.f32 %v175, %v541
  %v543 = vpop.f32.mrb[0].mxu0
  %544 = vmatprep.mubr.f32.mxu0 %v245
  %545 = vmatmul.mubr.f32.gmra.mrb[0].mxu0 %v61
  %v546 = vpop.f32.mrb[0].mxu0
  %v547 = vadd.f32 %v175, %v546
  %v548 = vpop.f32.mrb[0].mxu0
  %549 = vmatprep.mubr.f32.mxu0 %v248
  %550 = vmatmul.mubr.f32.gmra.mrb[0].mxu0 %v63
  %v551 = vpop.f32.mrb[0].mxu0
  %v552 = vadd.f32 %v175, %v551
  %v553 = vpop.f32.mrb[0].mxu0
  %554 = vmatprep.mubr.f32.mxu0 %v251
  %555 = vmatmul.mubr.f32.gmra.mrb[0].mxu0 %v65
  %v556 = vpop.f32.mrb[0].mxu0
  %v557 = vadd.f32 %v175, %v556
  %v558 = vpop.f32.mrb[0].mxu0
  %559 = vmatprep.mubr.f32.mxu0 %v254
  %560 = vmatmul.mubr.f32.gmra.mrb[0].mxu0 %v67
  %v561 = vpop.f32.mrb[0].mxu0
  %v562 = vadd.f32 %v175, %v561
  %v563 = vpop.f32.mrb[0].mxu0
  %564 = vmatprep.mubr.f32.mxu0 %v257
  %565 = vmatmul.mubr.f32.gmra.mrb[0].mxu0 %v69
  %v566 = vpop.f32.mrb[0].mxu0
  %v567 = vadd.f32 %v175, %v566
  %v568 = vpop.f32.mrb[0].mxu0
  %569 = vmatprep.mubr.f32.mxu0 %v260
  %570 = vmatmul.mubr.f32.gmra.mrb[0].mxu0 %v71
  %v571 = vpop.f32.mrb[0].mxu0
  %v572 = vadd.f32 %v175, %v571
  %v573 = vpop.f32.mrb[0].mxu0
  %574 = vmatprep.mubr.f32.mxu0 %v263
  %575 = vmatmul.mubr.f32.gmra.mrb[0].mxu0 %v73
  %v576 = vpop.f32.mrb[0].mxu0
  %v577 = vadd.f32 %v175, %v576
  %v578 = vpop.f32.mrb[0].mxu0
  %579 = vmatprep.mubr.f32.mxu0 %v266
  %580 = vmatmul.mubr.f32.gmra.mrb[0].mxu0 %v75
  %v581 = vpop.f32.mrb[0].mxu0
  %v582 = vadd.f32 %v175, %v581
  %v583 = vpop.f32.mrb[0].mxu0
  %584 = vmatprep.mubr.f32.mxu0 %v269
  %585 = vmatmul.mubr.f32.gmra.mrb[0].mxu0 %v77
  %v586 = vpop.f32.mrb[0].mxu0
  %v587 = vadd.f32 %v175, %v586
  %v588 = vpop.f32.mrb[0].mxu0
  %589 = vmatprep.mubr.f32.mxu0 %v272
  %590 = vmatmul.mubr.f32.gmra.mrb[0].mxu0 %v79
  %v591 = vpop.f32.mrb[0].mxu0
  %v592 = vadd.f32 %v175, %v591
  %v593 = vpop.f32.mrb[0].mxu0
  %594 = vmatprep.mubr.f32.mxu0 %v275
  %595 = vmatmul.mubr.f32.gmra.mrb[0].mxu0 %v81
  %v596 = vpop.f32.mrb[0].mxu0
  %v597 = vadd.f32 %v175, %v596
  %v598 = vpop.f32.mrb[0].mxu0
  %599 = vmatprep.mubr.f32.mxu0 %v278
  %600 = vmatmul.mubr.f32.gmra.mrb[0].mxu0 %v83
  %v601 = vpop.f32.mrb[0].mxu0
  %v602 = vadd.f32 %v175, %v601
  %v603 = vpop.f32.mrb[0].mxu0
  %604 = vmatprep.mubr.f32.mxu0 %v281
  %605 = vmatmul.mubr.f32.gmra.mrb[0].mxu0 %v85
  %v606 = vpop.f32.mrb[0].mxu0
  %v607 = vadd.f32 %v175, %v606
  %v608 = vpop.f32.mrb[0].mxu0
  %609 = vmatprep.mubr.f32.mxu0 %v284
  %610 = vmatmul.mubr.f32.gmra.mrb[0].mxu0 %v87
  %v611 = vpop.f32.mrb[0].mxu0
  %v612 = vadd.f32 %v175, %v611
  %v613 = vpop.f32.mrb[0].mxu0
  %614 = vmatprep.mubr.f32.mxu0 %v287
  %615 = vmatmul.mubr.f32.gmra.mrb[0].mxu0 %v89
  %v616 = vpop.f32.mrb[0].mxu0
  %v617 = vadd.f32 %v175, %v616
  %v618 = vpop.f32.mrb[0].mxu0
  %619 = vmatprep.mubr.f32.mxu0 %v290
  %620 = vmatmul.mubr.f32.gmra.mrb[0].mxu0 %v91
  %v621 = vpop.f32.mrb[0].mxu0
  %v622 = vadd.f32 %v175, %v621
  %v623 = vpop.f32.mrb[0].mxu0
  %624 = vmatprep.mubr.f32.mxu0 %v293
  %625 = vmatmul.mubr.f32.gmra.mrb[0].mxu0 %v93
  %v626 = vpop.f32.mrb[0].mxu0
  %v627 = vadd.f32 %v175, %v626
  %v628 = vpop.f32.mrb[0].mxu0
  %629 = vmatprep.mubr.f32.mxu0 %v296
  %630 = vmatmul.mubr.f32.gmra.mrb[0].mxu0 %v95
  %v631 = vpop.f32.mrb[0].mxu0
  %v632 = vadd.f32 %v175, %v631
  %v633 = vpop.f32.mrb[0].mxu0
  %634 = vmatprep.mubr.f32.mxu0 %v299
  %635 = vmatmul.mubr.f32.gmra.mrb[0].mxu0 %v97
  %v636 = vpop.f32.mrb[0].mxu0
  %v637 = vadd.f32 %v175, %v636
  %v638 = vpop.f32.mrb[0].mxu0
  %639 = vmatprep.mubr.f32.mxu0 %v302
  %640 = vmatmul.mubr.f32.gmra.mrb[0].mxu0 %v99
  %v641 = vpop.f32.mrb[0].mxu0
  %v642 = vadd.f32 %v175, %v641
  %v643 = vpop.f32.mrb[0].mxu0
  %644 = vmatprep.mubr.f32.mxu0 %v305
  %645 = vmatmul.mubr.f32.gmra.mrb[0].mxu0 %v101
  %v646 = vpop.f32.mrb[0].mxu0
  %v647 = vadd.f32 %v175, %v646
  %v648 = vpop.f32.mrb[0].mxu0
  %649 = vmatprep.mubr.f32.mxu0 %v308
  %650 = vmatmul.mubr.f32.gmra.mrb[0].mxu0 %v103
  %v651 = vpop.f32.mrb[0].mxu0
  %v652 = vadd.f32 %v175, %v651
  %v653 = vpop.f32.mrb[0].mxu0
  %654 = vmatprep.mubr.f32.mxu0 %v311
  %655 = vmatmul.mubr.f32.gmra.mrb[0].mxu0 %v105
  %v656 = vpop.f32.mrb[0].mxu0
  %v657 = vadd.f32 %v175, %v656
  %v658 = vpop.f32.mrb[0].mxu0
  %659 = vmatprep.mubr.f32.mxu0 %v314
  %660 = vmatmul.mubr.f32.gmra.mrb[0].mxu0 %v107
  %v661 = vpop.f32.mrb[0].mxu0
  %v662 = vadd.f32 %v175, %v661
  %v663 = vpop.f32.mrb[0].mxu0
  %664 = vmatprep.mubr.f32.mxu0 %v317
  %665 = vmatmul.mubr.f32.gmra.mrb[0].mxu0 %v109
  %v666 = vpop.f32.mrb[0].mxu0
  %v667 = vadd.f32 %v175, %v666
  %v668 = vpop.f32.mrb[0].mxu0
  %669 = vmatprep.mubr.f32.mxu0 %v320
  %670 = vmatmul.mubr.f32.gmra.mrb[0].mxu0 %v111
  %v671 = vpop.f32.mrb[0].mxu0
  %v672 = vadd.f32 %v175, %v671
  %v673 = vpop.f32.mrb[0].mxu0
  %674 = vmatprep.mubr.f32.mxu0 %v323
  %675 = vmatmul.mubr.f32.gmra.mrb[0].mxu0 %v113
  %v676 = vpop.f32.mrb[0].mxu0
  %v677 = vadd.f32 %v175, %v676
  %v678 = vpop.f32.mrb[0].mxu0
  %679 = vmatprep.mubr.f32.mxu0 %v326
  %680 = vmatmul.mubr.f32.gmra.mrb[0].mxu0 %v115
  %v681 = vpop.f32.mrb[0].mxu0
  %v682 = vadd.f32 %v175, %v681
  %v683 = vpop.f32.mrb[0].mxu0
  %684 = vmatprep.mubr.f32.mxu0 %v329
  %685 = vmatmul.mubr.f32.gmra.mrb[0].mxu0 %v117
  %v686 = vpop.f32.mrb[0].mxu0
  %v687 = vadd.f32 %v175, %v686
  %v688 = vpop.f32.mrb[0].mxu0
  %689 = vmatprep.mubr.f32.mxu0 %v332
  %690 = vmatmul.mubr.f32.gmra.mrb[0].mxu0 %v119
  %v691 = vpop.f32.mrb[0].mxu0
  %v692 = vadd.f32 %v175, %v691
  %v693 = vpop.f32.mrb[0].mxu0
  %694 = vmatprep.mubr.f32.mxu0 %v335
  %695 = vmatmul.mubr.f32.gmra.mrb[0].mxu0 %v121
  %v696 = vpop.f32.mrb[0].mxu0
  %v697 = vadd.f32 %v175, %v696
  %v698 = vpop.f32.mrb[0].mxu0
  %699 = vmatprep.mubr.f32.mxu0 %v338
  %700 = vmatmul.mubr.f32.gmra.mrb[0].mxu0 %v123
  %v701 = vpop.f32.mrb[0].mxu0
  %v702 = vadd.f32 %v175, %v701
  %v703 = vpop.f32.mrb[0].mxu0
  %704 = vmatprep.mubr.f32.mxu0 %v341
  %705 = vmatmul.mubr.f32.gmra.mrb[0].mxu0 %v125
  %v706 = vpop.f32.mrb[0].mxu0
  %v707 = vadd.f32 %v175, %v706
  %v708 = vpop.f32.mrb[0].mxu0
  %709 = vmatprep.mubr.f32.mxu0 %v344
  %710 = vmatmul.mubr.f32.gmra.mrb[0].mxu0 %v127
  %v711 = vpop.f32.mrb[0].mxu0
  %v712 = vadd.f32 %v175, %v711
  %v713 = vpop.f32.mrb[0].mxu0
  %714 = vmatprep.mubr.f32.mxu0 %v347
  %715 = vmatmul.mubr.f32.gmra.mrb[0].mxu0 %v129
  %v716 = vpop.f32.mrb[0].mxu0
  %v717 = vadd.f32 %v175, %v716
  %v718 = vpop.f32.mrb[0].mxu0
  %719 = vmatprep.mubr.f32.mxu0 %v350
  %720 = vmatmul.mubr.f32.gmra.mrb[0].mxu0 %v131
  %v721 = vpop.f32.mrb[0].mxu0
  %v722 = vadd.f32 %v175, %v721
  %v723 = vpop.f32.mrb[0].mxu0
  %724 = vmatprep.mubr.f32.mxu0 %v353
  %725 = vmatmul.mubr.f32.gmra.mrb[0].mxu0 %v133
  %v726 = vpop.f32.mrb[0].mxu0
  %v727 = vadd.f32 %v175, %v726
  %v728 = vpop.f32.mrb[0].mxu0
  %729 = vmatprep.mubr.f32.mxu0 %v356
  %730 = vmatmul.mubr.f32.gmra.mrb[0].mxu0 %v135
  %v731 = vpop.f32.mrb[0].mxu0
  %v732 = vadd.f32 %v175, %v731
  %v733 = vpop.f32.mrb[0].mxu0
  %734 = vmatprep.mubr.f32.mxu0 %v359
  %735 = vmatmul.mubr.f32.gmra.mrb[0].mxu0 %v137
  %v736 = vpop.f32.mrb[0].mxu0
  %v737 = vadd.f32 %v175, %v736
  %v738 = vpop.f32.mrb[0].mxu0
  %739 = vmatprep.mubr.f32.mxu0 %v362
  %740 = vmatmul.mubr.f32.gmra.mrb[0].mxu0 %v139
  %v741 = vpop.f32.mrb[0].mxu0
  %v742 = vadd.f32 %v175, %v741
  %v743 = vpop.f32.mrb[0].mxu0
  %744 = vmatprep.mubr.f32.mxu0 %v365
  %745 = vmatmul.mubr.f32.gmra.mrb[0].mxu0 %v141
  %v746 = vpop.f32.mrb[0].mxu0
  %v747 = vadd.f32 %v175, %v746
  %v748 = vpop.f32.mrb[0].mxu0
  %749 = vmatprep.mubr.f32.mxu0 %v368
  %750 = vmatmul.mubr.f32.gmra.mrb[0].mxu0 %v143
  %v751 = vpop.f32.mrb[0].mxu0
  %v752 = vadd.f32 %v175, %v751
  %v753 = vpop.f32.mrb[0].mxu0
  %754 = vdwg.mxu0
  %vm755 = vcmp.ge.f32.partialorder %v437, 0.0
  %vm756 = vcmp.ge.f32.partialorder %v442, 0.0
  %vm757 = vcmp.ge.f32.partialorder %v447, 0.0
  %vm758 = vcmp.ge.f32.partialorder %v452, 0.0
  %vm759 = vcmp.ge.f32.partialorder %v457, 0.0
  %vm760 = vcmp.ge.f32.partialorder %v462, 0.0
  %vm761 = vcmp.ge.f32.partialorder %v467, 0.0
  %vm762 = vcmp.ge.f32.partialorder %v472, 0.0
  %vm763 = vcmp.ge.f32.partialorder %v477, 0.0
  %vm764 = vcmp.ge.f32.partialorder %v482, 0.0
  %vm765 = vcmp.ge.f32.partialorder %v487, 0.0
  %vm766 = vcmp.ge.f32.partialorder %v492, 0.0
  %vm767 = vcmp.ge.f32.partialorder %v497, 0.0
  %vm768 = vcmp.ge.f32.partialorder %v502, 0.0
  %vm769 = vcmp.ge.f32.partialorder %v507, 0.0
  %vm770 = vcmp.ge.f32.partialorder %v512, 0.0
  %vm771 = vcmp.ge.f32.partialorder %v517, 0.0
  %vm772 = vcmp.ge.f32.partialorder %v522, 0.0
  %vm773 = vcmp.ge.f32.partialorder %v527, 0.0
  %vm774 = vcmp.ge.f32.partialorder %v532, 0.0
  %vm775 = vcmp.ge.f32.partialorder %v537, 0.0
  %vm776 = vcmp.ge.f32.partialorder %v542, 0.0
  %vm777 = vcmp.ge.f32.partialorder %v547, 0.0
  %vm778 = vcmp.ge.f32.partialorder %v552, 0.0
  %vm779 = vcmp.ge.f32.partialorder %v557, 0.0
  %vm780 = vcmp.ge.f32.partialorder %v562, 0.0
  %vm781 = vcmp.ge.f32.partialorder %v567, 0.0
  %vm782 = vcmp.ge.f32.partialorder %v572, 0.0
  %vm783 = vcmp.ge.f32.partialorder %v577, 0.0
  %vm784 = vcmp.ge.f32.partialorder %v582, 0.0
  %vm785 = vcmp.ge.f32.partialorder %v587, 0.0
  %vm786 = vcmp.ge.f32.partialorder %v592, 0.0
  %vm787 = vcmp.ge.f32.partialorder %v597, 0.0
  %vm788 = vcmp.ge.f32.partialorder %v602, 0.0
  %vm789 = vcmp.ge.f32.partialorder %v607, 0.0
  %vm790 = vcmp.ge.f32.partialorder %v612, 0.0
  %vm791 = vcmp.ge.f32.partialorder %v617, 0.0
  %vm792 = vcmp.ge.f32.partialorder %v622, 0.0
  %vm793 = vcmp.ge.f32.partialorder %v627, 0.0
  %vm794 = vcmp.ge.f32.partialorder %v632, 0.0
  %vm795 = vcmp.ge.f32.partialorder %v637, 0.0
  %vm796 = vcmp.ge.f32.partialorder %v642, 0.0
  %vm797 = vcmp.ge.f32.partialorder %v647, 0.0
  %vm798 = vcmp.ge.f32.partialorder %v652, 0.0
  %vm799 = vcmp.ge.f32.partialorder %v657, 0.0
  %vm800 = vcmp.ge.f32.partialorder %v662, 0.0
  %vm801 = vcmp.ge.f32.partialorder %v667, 0.0
  %vm802 = vcmp.ge.f32.partialorder %v672, 0.0
  %vm803 = vcmp.ge.f32.partialorder %v677, 0.0
  %vm804 = vcmp.ge.f32.partialorder %v682, 0.0
  %vm805 = vcmp.ge.f32.partialorder %v687, 0.0
  %vm806 = vcmp.ge.f32.partialorder %v692, 0.0
  %vm807 = vcmp.ge.f32.partialorder %v697, 0.0
  %vm808 = vcmp.ge.f32.partialorder %v702, 0.0
  %vm809 = vcmp.ge.f32.partialorder %v707, 0.0
  %vm810 = vcmp.ge.f32.partialorder %v712, 0.0
  %vm811 = vcmp.ge.f32.partialorder %v717, 0.0
  %vm812 = vcmp.ge.f32.partialorder %v722, 0.0
  %vm813 = vcmp.ge.f32.partialorder %v727, 0.0
  %vm814 = vcmp.ge.f32.partialorder %v732, 0.0
  %vm815 = vcmp.ge.f32.partialorder %v737, 0.0
  %vm816 = vcmp.ge.f32.partialorder %v742, 0.0
  %vm817 = vcmp.ge.f32.partialorder %v747, 0.0
  %vm818 = vcmp.ge.f32.partialorder %v752, 0.0
  %v819 = vld [vmem:[%s3] sm:$0x1]
  %v821 = vlaneseq
  %v822 = vshrl.u32 %v821, 7
  %v823 = vsub.s32 0, %v822
  %v824 = vrot.slane %v819, %v823
  %v826 = vmul.f32 %v824, %v437
  %v827 = vmul.f32 %v824, %v442
  %v828 = vmul.f32 %v824, %v447
  %v829 = vmul.f32 %v824, %v452
  %v830 = vmul.f32 %v824, %v457
  %v831 = vmul.f32 %v824, %v462
  %v832 = vmul.f32 %v824, %v467
  %v833 = vmul.f32 %v824, %v472
  %v834 = vmul.f32 %v824, %v477
  %v835 = vmul.f32 %v824, %v482
  %v836 = vmul.f32 %v824, %v487
  %v837 = vmul.f32 %v824, %v492
  %v838 = vmul.f32 %v824, %v497
  %v839 = vmul.f32 %v824, %v502
  %v840 = vmul.f32 %v824, %v507
  %v841 = vmul.f32 %v824, %v512
  %v842 = vmul.f32 %v824, %v517
  %v843 = vmul.f32 %v824, %v522
  %v844 = vmul.f32 %v824, %v527
  %v845 = vmul.f32 %v824, %v532
  %v846 = vmul.f32 %v824, %v537
  %v847 = vmul.f32 %v824, %v542
  %v848 = vmul.f32 %v824, %v547
  %v849 = vmul.f32 %v824, %v552
  %v850 = vmul.f32 %v824, %v557
  %v851 = vmul.f32 %v824, %v562
  %v852 = vmul.f32 %v824, %v567
  %v853 = vmul.f32 %v824, %v572
  %v854 = vmul.f32 %v824, %v577
  %v855 = vmul.f32 %v824, %v582
  %v856 = vmul.f32 %v824, %v587
  %v857 = vmul.f32 %v824, %v592
  %v858 = vmul.f32 %v824, %v597
  %v859 = vmul.f32 %v824, %v602
  %v860 = vmul.f32 %v824, %v607
  %v861 = vmul.f32 %v824, %v612
  %v862 = vmul.f32 %v824, %v617
  %v863 = vmul.f32 %v824, %v622
  %v864 = vmul.f32 %v824, %v627
  %v865 = vmul.f32 %v824, %v632
  %v866 = vmul.f32 %v824, %v637
  %v867 = vmul.f32 %v824, %v642
  %v868 = vmul.f32 %v824, %v647
  %v869 = vmul.f32 %v824, %v652
  %v870 = vmul.f32 %v824, %v657
  %v871 = vmul.f32 %v824, %v662
  %v872 = vmul.f32 %v824, %v667
  %v873 = vmul.f32 %v824, %v672
  %v874 = vmul.f32 %v824, %v677
  %v875 = vmul.f32 %v824, %v682
  %v876 = vmul.f32 %v824, %v687
  %v877 = vmul.f32 %v824, %v692
  %v878 = vmul.f32 %v824, %v697
  %v879 = vmul.f32 %v824, %v702
  %v880 = vmul.f32 %v824, %v707
  %v881 = vmul.f32 %v824, %v712
  %v882 = vmul.f32 %v824, %v717
  %v883 = vmul.f32 %v824, %v722
  %v884 = vmul.f32 %v824, %v727
  %v885 = vmul.f32 %v824, %v732
  %v886 = vmul.f32 %v824, %v737
  %v887 = vmul.f32 %v824, %v742
  %v888 = vmul.f32 %v824, %v747
  %v889 = vmul.f32 %v824, %v752
  %v890 = vsel %vm755, %v437, %v826
  %v891 = vsel %vm756, %v442, %v827
  %v892 = vsel %vm757, %v447, %v828
  %v893 = vsel %vm758, %v452, %v829
  %v894 = vsel %vm759, %v457, %v830
  %v895 = vsel %vm760, %v462, %v831
  %v896 = vsel %vm761, %v467, %v832
  %v897 = vsel %vm762, %v472, %v833
  %v898 = vsel %vm763, %v477, %v834
  %v899 = vsel %vm764, %v482, %v835
  %v900 = vsel %vm765, %v487, %v836
  %v901 = vsel %vm766, %v492, %v837
  %v902 = vsel %vm767, %v497, %v838
  %v903 = vsel %vm768, %v502, %v839
  %v904 = vsel %vm769, %v507, %v840
  %v905 = vsel %vm770, %v512, %v841
  %v906 = vsel %vm771, %v517, %v842
  %v907 = vsel %vm772, %v522, %v843
  %v908 = vsel %vm773, %v527, %v844
  %v909 = vsel %vm774, %v532, %v845
  %v910 = vsel %vm775, %v537, %v846
  %v911 = vsel %vm776, %v542, %v847
  %v912 = vsel %vm777, %v547, %v848
  %v913 = vsel %vm778, %v552, %v849
  %v914 = vsel %vm779, %v557, %v850
  %v915 = vsel %vm780, %v562, %v851
  %v916 = vsel %vm781, %v567, %v852
  %v917 = vsel %vm782, %v572, %v853
  %v918 = vsel %vm783, %v577, %v854
  %v919 = vsel %vm784, %v582, %v855
  %v920 = vsel %vm785, %v587, %v856
  %v921 = vsel %vm786, %v592, %v857
  %v922 = vsel %vm787, %v597, %v858
  %v923 = vsel %vm788, %v602, %v859
  %v924 = vsel %vm789, %v607, %v860
  %v925 = vsel %vm790, %v612, %v861
  %v926 = vsel %vm791, %v617, %v862
  %v927 = vsel %vm792, %v622, %v863
  %v928 = vsel %vm793, %v627, %v864
  %v929 = vsel %vm794, %v632, %v865
  %v930 = vsel %vm795, %v637, %v866
  %v931 = vsel %vm796, %v642, %v867
  %v932 = vsel %vm797, %v647, %v868
  %v933 = vsel %vm798, %v652, %v869
  %v934 = vsel %vm799, %v657, %v870
  %v935 = vsel %vm800, %v662, %v871
  %v936 = vsel %vm801, %v667, %v872
  %v937 = vsel %vm802, %v672, %v873
  %v938 = vsel %vm803, %v677, %v874
  %v939 = vsel %vm804, %v682, %v875
  %v940 = vsel %vm805, %v687, %v876
  %v941 = vsel %vm806, %v692, %v877
  %v942 = vsel %vm807, %v697, %v878
  %v943 = vsel %vm808, %v702, %v879
  %v944 = vsel %vm809, %v707, %v880
  %v945 = vsel %vm810, %v712, %v881
  %v946 = vsel %vm811, %v717, %v882
  %v947 = vsel %vm812, %v722, %v883
  %v948 = vsel %vm813, %v727, %v884
  %v949 = vsel %vm814, %v732, %v885
  %v950 = vsel %vm815, %v737, %v886
  %v951 = vsel %vm816, %v742, %v887
  %v952 = vsel %vm817, %v747, %v888
  %v953 = vsel %vm818, %v752, %v889
  %vm954 = vcmask 97280
  %955 = vst.msk [vmem:[%s4] sm:$0xff] %vm954, %v890
  %956 = vst.msk [vmem:[%s4 + $0x8] sm:$0xff] %vm954, %v891
  %957 = vst.msk [vmem:[%s4 + $0x10] sm:$0xff] %vm954, %v892
  %958 = vst.msk [vmem:[%s4 + $0x18] sm:$0xff] %vm954, %v893
  %959 = vst.msk [vmem:[%s4 + $0x20] sm:$0xff] %vm954, %v894
  %960 = vst.msk [vmem:[%s4 + $0x28] sm:$0xff] %vm954, %v895
  %961 = vst.msk [vmem:[%s4 + $0x30] sm:$0xff] %vm954, %v896
  %962 = vst.msk [vmem:[%s4 + $0x38] sm:$0xff] %vm954, %v897
  %963 = vst.msk [vmem:[%s4 + $0x40] sm:$0xff] %vm954, %v898
  %964 = vst.msk [vmem:[%s4 + $0x48] sm:$0xff] %vm954, %v899
  %965 = vst.msk [vmem:[%s4 + $0x50] sm:$0xff] %vm954, %v900
  %966 = vst.msk [vmem:[%s4 + $0x58] sm:$0xff] %vm954, %v901
  %967 = vst.msk [vmem:[%s4 + $0x60] sm:$0xff] %vm954, %v902
  %968 = vst.msk [vmem:[%s4 + $0x68] sm:$0xff] %vm954, %v903
  %969 = vst.msk [vmem:[%s4 + $0x70] sm:$0xff] %vm954, %v904
  %970 = vst.msk [vmem:[%s4 + $0x78] sm:$0xff] %vm954, %v905
  %971 = vst.msk [vmem:[%s4 + $0x80] sm:$0xff] %vm954, %v906
  %972 = vst.msk [vmem:[%s4 + $0x88] sm:$0xff] %vm954, %v907
  %973 = vst.msk [vmem:[%s4 + $0x90] sm:$0xff] %vm954, %v908
  %974 = vst.msk [vmem:[%s4 + $0x98] sm:$0xff] %vm954, %v909
  %975 = vst.msk [vmem:[%s4 + $0xa0] sm:$0xff] %vm954, %v910
  %976 = vst.msk [vmem:[%s4 + $0xa8] sm:$0xff] %vm954, %v911
  %977 = vst.msk [vmem:[%s4 + $0xb0] sm:$0xff] %vm954, %v912
  %978 = vst.msk [vmem:[%s4 + $0xb8] sm:$0xff] %vm954, %v913
  %979 = vst.msk [vmem:[%s4 + $0xc0] sm:$0xff] %vm954, %v914
  %980 = vst.msk [vmem:[%s4 + $0xc8] sm:$0xff] %vm954, %v915
  %981 = vst.msk [vmem:[%s4 + $0xd0] sm:$0xff] %vm954, %v916
  %982 = vst.msk [vmem:[%s4 + $0xd8] sm:$0xff] %vm954, %v917
  %983 = vst.msk [vmem:[%s4 + $0xe0] sm:$0xff] %vm954, %v918
  %984 = vst.msk [vmem:[%s4 + $0xe8] sm:$0xff] %vm954, %v919
  %985 = vst.msk [vmem:[%s4 + $0xf0] sm:$0xff] %vm954, %v920
  %986 = vst.msk [vmem:[%s4 + $0xf8] sm:$0xff] %vm954, %v921
  %987 = vst.msk [vmem:[%s4 + $0x100] sm:$0xff] %vm954, %v922
  %988 = vst.msk [vmem:[%s4 + $0x108] sm:$0xff] %vm954, %v923
  %989 = vst.msk [vmem:[%s4 + $0x110] sm:$0xff] %vm954, %v924
  %990 = vst.msk [vmem:[%s4 + $0x118] sm:$0xff] %vm954, %v925
  %991 = vst.msk [vmem:[%s4 + $0x120] sm:$0xff] %vm954, %v926
  %992 = vst.msk [vmem:[%s4 + $0x128] sm:$0xff] %vm954, %v927
  %993 = vst.msk [vmem:[%s4 + $0x130] sm:$0xff] %vm954, %v928
  %994 = vst.msk [vmem:[%s4 + $0x138] sm:$0xff] %vm954, %v929
  %995 = vst.msk [vmem:[%s4 + $0x140] sm:$0xff] %vm954, %v930
  %996 = vst.msk [vmem:[%s4 + $0x148] sm:$0xff] %vm954, %v931
  %997 = vst.msk [vmem:[%s4 + $0x150] sm:$0xff] %vm954, %v932
  %998 = vst.msk [vmem:[%s4 + $0x158] sm:$0xff] %vm954, %v933
  %999 = vst.msk [vmem:[%s4 + $0x160] sm:$0xff] %vm954, %v934
  %1000 = vst.msk [vmem:[%s4 + $0x168] sm:$0xff] %vm954, %v935
  %1001 = vst.msk [vmem:[%s4 + $0x170] sm:$0xff] %vm954, %v936
  %1002 = vst.msk [vmem:[%s4 + $0x178] sm:$0xff] %vm954, %v937
  %1003 = vst.msk [vmem:[%s4 + $0x180] sm:$0xff] %vm954, %v938
  %1004 = vst.msk [vmem:[%s4 + $0x188] sm:$0xff] %vm954, %v939
  %1005 = vst.msk [vmem:[%s4 + $0x190] sm:$0xff] %vm954, %v940
  %1006 = vst.msk [vmem:[%s4 + $0x198] sm:$0xff] %vm954, %v941
  %1007 = vst.msk [vmem:[%s4 + $0x1a0] sm:$0xff] %vm954, %v942
  %1008 = vst.msk [vmem:[%s4 + $0x1a8] sm:$0xff] %vm954, %v943
  %1009 = vst.msk [vmem:[%s4 + $0x1b0] sm:$0xff] %vm954, %v944
  %1010 = vst.msk [vmem:[%s4 + $0x1b8] sm:$0xff] %vm954, %v945
  %1011 = vst.msk [vmem:[%s4 + $0x1c0] sm:$0xff] %vm954, %v946
  %1012 = vst.msk [vmem:[%s4 + $0x1c8] sm:$0xff] %vm954, %v947
  %1013 = vst.msk [vmem:[%s4 + $0x1d0] sm:$0xff] %vm954, %v948
  %1014 = vst.msk [vmem:[%s4 + $0x1d8] sm:$0xff] %vm954, %v949
  %1015 = vst.msk [vmem:[%s4 + $0x1e0] sm:$0xff] %vm954, %v950
  %1016 = vst.msk [vmem:[%s4 + $0x1e8] sm:$0xff] %vm954, %v951
  %1017 = vst.msk [vmem:[%s4 + $0x1f0] sm:$0xff] %vm954, %v952
  %1018 = vst.msk [vmem:[%s4 + $0x1f8] sm:$0xff] %vm954, %v953
  // Predicated region
  $region18: #{pz_inception_forward.7} parent=0 // pred_check
    _
  $region19: #{pz_inception_forward.7} parent=0 // pred_check_branch
    %1020 = sbr.rel (0) target = $region21
  $region20: #{pz_inception_forward.7} parent=0 // pred_region
    _
  $region21: #{pz_inception_forward.7} parent=0 // pred_fallthru
    _
  // Predicated region
  $region22: #{pz_inception_forward.7} parent=0 // pred_check
    _
  $region23: #{pz_inception_forward.7} parent=0 // pred_check_branch
    %1022 = sbr.rel (0) target = $region25
  $region24: #{pz_inception_forward.7} parent=0 // pred_region
    _
  $region25: #{pz_inception_forward.7} parent=0 // pred_fallthru
    _

// kernel: pz_inception_forward.5
$region0: #{pz_inception_forward.5}
  #allocation0 [shape = 'u32[]', space=smem, size = 0x4, offset = 0x4, fixed_abs, tag = 'smem constant byte address 0x4 - core index']
  #allocation1 [shape = 'u32[144,128]{1,0:T(1,128)}', space=vmem, size = 0x12000, scoped, tag = 'internal scratch']
  %s0 = inlined_call_operand.vmem [shape: f32[512,72], index: 0, kind: input, shape index: {}]
  %s1 = inlined_call_operand.vmem [shape: f32[72,12], index: 1, kind: input, shape index: {}]
  %s2 = inlined_call_operand.vmem [shape: f32[1,12], index: 2, kind: input, shape index: {}]
  %s3 = inlined_call_operand.vmem [shape: f32[1,12], index: 3, kind: input, shape index: {}]
  %s4 = inlined_call_operand.vmem [shape: f32[512,12], index: 4, kind: output, shape index: {}]
  %s5 = sld [smem:[#allocation0]]
  $region26: #{pz_inception_forward.5} parent=0
    _
  %s7 = ssub.s32 1, %s5
  %s8 = scalar_select 0, %s7, %s5
  // Predicated region
  $region2: #{pz_inception_forward.5} parent=0 // pred_check
    _
  $region3: #{pz_inception_forward.5} parent=0 // pred_check_branch
    %10 = sbr.rel (0) target = $region5
  $region4: #{pz_inception_forward.5} parent=0 // pred_region
    _
  $region5: #{pz_inception_forward.5} parent=0 // pred_fallthru
    _
  // Predicated region
  $region6: #{pz_inception_forward.5} parent=0 // pred_check
    _
  $region7: #{pz_inception_forward.5} parent=0 // pred_check_branch
    %12 = sbr.rel (0) target = $region9
  $region8: #{pz_inception_forward.5} parent=0 // pred_region
    _
  $region9: #{pz_inception_forward.5} parent=0 // pred_fallthru
    _
  // Predicated region
  $region10: #{pz_inception_forward.5} parent=0 // pred_check
    _
  $region11: #{pz_inception_forward.5} parent=0 // pred_check_branch
    %14 = sbr.rel (0) target = $region13
  $region12: #{pz_inception_forward.5} parent=0 // pred_region
    _
  $region13: #{pz_inception_forward.5} parent=0 // pred_fallthru
    _
  // Predicated region
  $region14: #{pz_inception_forward.5} parent=0 // pred_check
    _
  $region15: #{pz_inception_forward.5} parent=0 // pred_check_branch
    %16 = sbr.rel (0) target = $region17
  $region16: #{pz_inception_forward.5} parent=0 // pred_region
    _
  $region17: #{pz_inception_forward.5} parent=0 // pred_fallthru
    _
  %v17 = vld [vmem:[%s0] sm:$0xff]
  %v18 = vld [vmem:[%s0 + $0x8] sm:$0xff]
  %v19 = vld [vmem:[%s0 + $0x10] sm:$0xff]
  %v20 = vld [vmem:[%s0 + $0x18] sm:$0xff]
  %v21 = vld [vmem:[%s0 + $0x20] sm:$0xff]
  %v22 = vld [vmem:[%s0 + $0x28] sm:$0xff]
  %v23 = vld [vmem:[%s0 + $0x30] sm:$0xff]
  %v24 = vld [vmem:[%s0 + $0x38] sm:$0xff]
  %v25 = vld [vmem:[%s0 + $0x40] sm:$0xff]
  %v26 = vld [vmem:[%s0 + $0x48] sm:$0xff]
  %v27 = vld [vmem:[%s0 + $0x50] sm:$0xff]
  %v28 = vld [vmem:[%s0 + $0x58] sm:$0xff]
  %v29 = vld [vmem:[%s0 + $0x60] sm:$0xff]
  %v30 = vld [vmem:[%s0 + $0x68] sm:$0xff]
  %v31 = vld [vmem:[%s0 + $0x70] sm:$0xff]
  %v32 = vld [vmem:[%s0 + $0x78] sm:$0xff]
  %v33 = vld [vmem:[%s0 + $0x80] sm:$0xff]
  %v34 = vld [vmem:[%s0 + $0x88] sm:$0xff]
  %v35 = vld [vmem:[%s0 + $0x90] sm:$0xff]
  %v36 = vld [vmem:[%s0 + $0x98] sm:$0xff]
  %v37 = vld [vmem:[%s0 + $0xa0] sm:$0xff]
  %v38 = vld [vmem:[%s0 + $0xa8] sm:$0xff]
  %v39 = vld [vmem:[%s0 + $0xb0] sm:$0xff]
  %v40 = vld [vmem:[%s0 + $0xb8] sm:$0xff]
  %v41 = vld [vmem:[%s0 + $0xc0] sm:$0xff]
  %v42 = vld [vmem:[%s0 + $0xc8] sm:$0xff]
  %v43 = vld [vmem:[%s0 + $0xd0] sm:$0xff]
  %v44 = vld [vmem:[%s0 + $0xd8] sm:$0xff]
  %v45 = vld [vmem:[%s0 + $0xe0] sm:$0xff]
  %v46 = vld [vmem:[%s0 + $0xe8] sm:$0xff]
  %v47 = vld [vmem:[%s0 + $0xf0] sm:$0xff]
  %v48 = vld [vmem:[%s0 + $0xf8] sm:$0xff]
  %v49 = vld [vmem:[%s0 + $0x100] sm:$0xff]
  %v50 = vld [vmem:[%s0 + $0x108] sm:$0xff]
  %v51 = vld [vmem:[%s0 + $0x110] sm:$0xff]
  %v52 = vld [vmem:[%s0 + $0x118] sm:$0xff]
  %v53 = vld [vmem:[%s0 + $0x120] sm:$0xff]
  %v54 = vld [vmem:[%s0 + $0x128] sm:$0xff]
  %v55 = vld [vmem:[%s0 + $0x130] sm:$0xff]
  %v56 = vld [vmem:[%s0 + $0x138] sm:$0xff]
  %v57 = vld [vmem:[%s0 + $0x140] sm:$0xff]
  %v58 = vld [vmem:[%s0 + $0x148] sm:$0xff]
  %v59 = vld [vmem:[%s0 + $0x150] sm:$0xff]
  %v60 = vld [vmem:[%s0 + $0x158] sm:$0xff]
  %v61 = vld [vmem:[%s0 + $0x160] sm:$0xff]
  %v62 = vld [vmem:[%s0 + $0x168] sm:$0xff]
  %v63 = vld [vmem:[%s0 + $0x170] sm:$0xff]
  %v64 = vld [vmem:[%s0 + $0x178] sm:$0xff]
  %v65 = vld [vmem:[%s0 + $0x180] sm:$0xff]
  %v66 = vld [vmem:[%s0 + $0x188] sm:$0xff]
  %v67 = vld [vmem:[%s0 + $0x190] sm:$0xff]
  %v68 = vld [vmem:[%s0 + $0x198] sm:$0xff]
  %v69 = vld [vmem:[%s0 + $0x1a0] sm:$0xff]
  %v70 = vld [vmem:[%s0 + $0x1a8] sm:$0xff]
  %v71 = vld [vmem:[%s0 + $0x1b0] sm:$0xff]
  %v72 = vld [vmem:[%s0 + $0x1b8] sm:$0xff]
  %v73 = vld [vmem:[%s0 + $0x1c0] sm:$0xff]
  %v74 = vld [vmem:[%s0 + $0x1c8] sm:$0xff]
  %v75 = vld [vmem:[%s0 + $0x1d0] sm:$0xff]
  %v76 = vld [vmem:[%s0 + $0x1d8] sm:$0xff]
  %v77 = vld [vmem:[%s0 + $0x1e0] sm:$0xff]
  %v78 = vld [vmem:[%s0 + $0x1e8] sm:$0xff]
  %v79 = vld [vmem:[%s0 + $0x1f0] sm:$0xff]
  %v80 = vld [vmem:[%s0 + $0x1f8] sm:$0xff]
  %v81 = vld [vmem:[%s1] sm:$0xff]
  %v82 = vld [vmem:[%s1 + $0x8] sm:$0xff]
  %v83 = vld [vmem:[%s1 + $0x10] sm:$0xff]
  %v84 = vld [vmem:[%s1 + $0x18] sm:$0xff]
  %v85 = vld [vmem:[%s1 + $0x20] sm:$0xff]
  %v86 = vld [vmem:[%s1 + $0x28] sm:$0xff]
  %v87 = vld [vmem:[%s1 + $0x30] sm:$0xff]
  %v88 = vld [vmem:[%s1 + $0x38] sm:$0xff]
  %v89 = vld [vmem:[%s1 + $0x40] sm:$0xff]
  %v90 = vld [vmem:[%s2] sm:$0x1]
  %v92 = vlaneseq
  %v93 = vshrl.u32 %v92, 7
  %v94 = vsub.s32 0, %v93
  %v95 = vrot.slane %v90, %v94
  %vm97 = vcmask 588800
  %v99 = vsel %vm97, %v17, 0
  %v102 = vsel %vm97, %v18, 0
  %v105 = vsel %vm97, %v19, 0
  %v108 = vsel %vm97, %v20, 0
  %v111 = vsel %vm97, %v21, 0
  %v114 = vsel %vm97, %v22, 0
  %v117 = vsel %vm97, %v23, 0
  %v120 = vsel %vm97, %v24, 0
  %v123 = vsel %vm97, %v25, 0
  %v126 = vsel %vm97, %v26, 0
  %v129 = vsel %vm97, %v27, 0
  %v132 = vsel %vm97, %v28, 0
  %v135 = vsel %vm97, %v29, 0
  %v138 = vsel %vm97, %v30, 0
  %v141 = vsel %vm97, %v31, 0
  %v144 = vsel %vm97, %v32, 0
  %v147 = vsel %vm97, %v33, 0
  %v150 = vsel %vm97, %v34, 0
  %v153 = vsel %vm97, %v35, 0
  %v156 = vsel %vm97, %v36, 0
  %v159 = vsel %vm97, %v37, 0
  %v162 = vsel %vm97, %v38, 0
  %v165 = vsel %vm97, %v39, 0
  %v168 = vsel %vm97, %v40, 0
  %v171 = vsel %vm97, %v41, 0
  %v174 = vsel %vm97, %v42, 0
  %v177 = vsel %vm97, %v43, 0
  %v180 = vsel %vm97, %v44, 0
  %v183 = vsel %vm97, %v45, 0
  %v186 = vsel %vm97, %v46, 0
  %v189 = vsel %vm97, %v47, 0
  %v192 = vsel %vm97, %v48, 0
  %v195 = vsel %vm97, %v49, 0
  %v198 = vsel %vm97, %v50, 0
  %v201 = vsel %vm97, %v51, 0
  %v204 = vsel %vm97, %v52, 0
  %v207 = vsel %vm97, %v53, 0
  %v210 = vsel %vm97, %v54, 0
  %v213 = vsel %vm97, %v55, 0
  %v216 = vsel %vm97, %v56, 0
  %v219 = vsel %vm97, %v57, 0
  %v222 = vsel %vm97, %v58, 0
  %v225 = vsel %vm97, %v59, 0
  %v228 = vsel %vm97, %v60, 0
  %v231 = vsel %vm97, %v61, 0
  %v234 = vsel %vm97, %v62, 0
  %v237 = vsel %vm97, %v63, 0
  %v240 = vsel %vm97, %v64, 0
  %v243 = vsel %vm97, %v65, 0
  %v246 = vsel %vm97, %v66, 0
  %v249 = vsel %vm97, %v67, 0
  %v252 = vsel %vm97, %v68, 0
  %v255 = vsel %vm97, %v69, 0
  %v258 = vsel %vm97, %v70, 0
  %v261 = vsel %vm97, %v71, 0
  %v264 = vsel %vm97, %v72, 0
  %v267 = vsel %vm97, %v73, 0
  %v270 = vsel %vm97, %v74, 0
  %v273 = vsel %vm97, %v75, 0
  %v276 = vsel %vm97, %v76, 0
  %v279 = vsel %vm97, %v77, 0
  %v282 = vsel %vm97, %v78, 0
  %v285 = vsel %vm97, %v79, 0
  %v288 = vsel %vm97, %v80, 0
  %290 = vmatprep.subr.mxu0 0.0
  %291 = vmatpush1.msra.mxu0 %v81
  %292 = vmatprep.subr.mxu0 0.0
  %293 = vmatpush1.msra.mxu0 %v82
  %294 = vmatprep.subr.mxu0 0.0
  %295 = vmatpush1.msra.mxu0 %v83
  %296 = vmatprep.subr.mxu0 0.0
  %297 = vmatpush1.msra.mxu0 %v84
  %298 = vmatprep.subr.mxu0 0.0
  %299 = vmatpush1.msra.mxu0 %v85
  %300 = vmatprep.subr.mxu0 0.0
  %301 = vmatpush1.msra.mxu0 %v86
  %302 = vmatprep.subr.mxu0 0.0
  %303 = vmatpush1.msra.mxu0 %v87
  %304 = vmatprep.subr.mxu0 0.0
  %305 = vmatpush1.msra.mxu0 %v88
  %306 = vmatprep.subr.mxu0 0.0
  %307 = vmatpush1.msra.mxu0 %v89
  %308 = vmatprep.subr.mxu0 0.0
  %309 = vmatpush1.msra.mxu0 0.0
  %310 = vmatprep.subr.mxu0 0.0
  %311 = vmatpush1.msra.mxu0 0.0
  %312 = vmatprep.subr.mxu0 0.0
  %313 = vmatpush1.msra.mxu0 0.0
  %314 = vmatprep.subr.mxu0 0.0
  %315 = vmatpush1.msra.mxu0 0.0
  %316 = vmatprep.subr.mxu0 0.0
  %317 = vmatpush1.msra.mxu0 0.0
  %318 = vmatprep.subr.mxu0 0.0
  %319 = vmatpush1.msra.mxu0 0.0
  %320 = vmatprep.subr.mxu0 0.0
  %321 = vmatpush1.msra.mxu0 0.0
  %322 = vmatprep.subr.mxu0 0.0
  %323 = vmatpush1.msra.mxu0 0.0
  %324 = vmatprep.subr.mxu0 0.0
  %325 = vmatpush1.msra.mxu0 0.0
  %326 = vmatprep.subr.mxu0 0.0
  %327 = vmatpush1.msra.mxu0 0.0
  %328 = vmatprep.subr.mxu0 0.0
  %329 = vmatpush1.msra.mxu0 0.0
  %330 = vmatprep.subr.mxu0 0.0
  %331 = vmatpush1.msra.mxu0 0.0
  %332 = vmatprep.subr.mxu0 0.0
  %333 = vmatpush1.msra.mxu0 0.0
  %334 = vmatprep.subr.mxu0 0.0
  %335 = vmatpush1.msra.mxu0 0.0
  %336 = vmatprep.subr.mxu0 0.0
  %337 = vmatpush1.msra.mxu0 0.0
  %338 = vmatprep.subr.mxu0 0.0
  %339 = vmatpush1.msra.mxu0 0.0
  %340 = vmatprep.subr.mxu0 0.0
  %341 = vmatpush1.msra.mxu0 0.0
  %342 = vmatprep.subr.mxu0 0.0
  %343 = vmatpush1.msra.mxu0 0.0
  %344 = vmatprep.subr.mxu0 0.0
  %345 = vmatpush1.msra.mxu0 0.0
  %346 = vmatprep.subr.mxu0 0.0
  %347 = vmatpush1.msra.mxu0 0.0
  %348 = vmatprep.subr.mxu0 0.0
  %349 = vmatpush1.msra.mxu0 0.0
  %350 = vmatprep.subr.mxu0 0.0
  %351 = vmatpush1.msra.mxu0 0.0
  %352 = vmatprep.subr.mxu0 0.0
  %353 = vmatpush1.msra.mxu0 0.0
  %354 = vmatprep.mubr.f32.mxu0 0.0
  %355 = vmatmul.mubr.f32.gmra.mrb[0].mxu0 %v99
  %v356 = vpop.f32.mrb[0].mxu0
  %v357 = vadd.f32 %v95, %v356
  %v358 = vpop.f32.mrb[0].mxu0
  %359 = vmatprep.mubr.f32.mxu0 0.0
  %360 = vmatmul.mubr.f32.gmra.mrb[0].mxu0 %v102
  %v361 = vpop.f32.mrb[0].mxu0
  %v362 = vadd.f32 %v95, %v361
  %v363 = vpop.f32.mrb[0].mxu0
  %364 = vmatprep.mubr.f32.mxu0 0.0
  %365 = vmatmul.mubr.f32.gmra.mrb[0].mxu0 %v105
  %v366 = vpop.f32.mrb[0].mxu0
  %v367 = vadd.f32 %v95, %v366
  %v368 = vpop.f32.mrb[0].mxu0
  %369 = vmatprep.mubr.f32.mxu0 0.0
  %370 = vmatmul.mubr.f32.gmra.mrb[0].mxu0 %v108
  %v371 = vpop.f32.mrb[0].mxu0
  %v372 = vadd.f32 %v95, %v371
  %v373 = vpop.f32.mrb[0].mxu0
  %374 = vmatprep.mubr.f32.mxu0 0.0
  %375 = vmatmul.mubr.f32.gmra.mrb[0].mxu0 %v111
  %v376 = vpop.f32.mrb[0].mxu0
  %v377 = vadd.f32 %v95, %v376
  %v378 = vpop.f32.mrb[0].mxu0
  %379 = vmatprep.mubr.f32.mxu0 0.0
  %380 = vmatmul.mubr.f32.gmra.mrb[0].mxu0 %v114
  %v381 = vpop.f32.mrb[0].mxu0
  %v382 = vadd.f32 %v95, %v381
  %v383 = vpop.f32.mrb[0].mxu0
  %384 = vmatprep.mubr.f32.mxu0 0.0
  %385 = vmatmul.mubr.f32.gmra.mrb[0].mxu0 %v117
  %v386 = vpop.f32.mrb[0].mxu0
  %v387 = vadd.f32 %v95, %v386
  %v388 = vpop.f32.mrb[0].mxu0
  %389 = vmatprep.mubr.f32.mxu0 0.0
  %390 = vmatmul.mubr.f32.gmra.mrb[0].mxu0 %v120
  %v391 = vpop.f32.mrb[0].mxu0
  %v392 = vadd.f32 %v95, %v391
  %v393 = vpop.f32.mrb[0].mxu0
  %394 = vmatprep.mubr.f32.mxu0 0.0
  %395 = vmatmul.mubr.f32.gmra.mrb[0].mxu0 %v123
  %v396 = vpop.f32.mrb[0].mxu0
  %v397 = vadd.f32 %v95, %v396
  %v398 = vpop.f32.mrb[0].mxu0
  %399 = vmatprep.mubr.f32.mxu0 0.0
  %400 = vmatmul.mubr.f32.gmra.mrb[0].mxu0 %v126
  %v401 = vpop.f32.mrb[0].mxu0
  %v402 = vadd.f32 %v95, %v401
  %v403 = vpop.f32.mrb[0].mxu0
  %404 = vmatprep.mubr.f32.mxu0 0.0
  %405 = vmatmul.mubr.f32.gmra.mrb[0].mxu0 %v129
  %v406 = vpop.f32.mrb[0].mxu0
  %v407 = vadd.f32 %v95, %v406
  %v408 = vpop.f32.mrb[0].mxu0
  %409 = vmatprep.mubr.f32.mxu0 0.0
  %410 = vmatmul.mubr.f32.gmra.mrb[0].mxu0 %v132
  %v411 = vpop.f32.mrb[0].mxu0
  %v412 = vadd.f32 %v95, %v411
  %v413 = vpop.f32.mrb[0].mxu0
  %414 = vmatprep.mubr.f32.mxu0 0.0
  %415 = vmatmul.mubr.f32.gmra.mrb[0].mxu0 %v135
  %v416 = vpop.f32.mrb[0].mxu0
  %v417 = vadd.f32 %v95, %v416
  %v418 = vpop.f32.mrb[0].mxu0
  %419 = vmatprep.mubr.f32.mxu0 0.0
  %420 = vmatmul.mubr.f32.gmra.mrb[0].mxu0 %v138
  %v421 = vpop.f32.mrb[0].mxu0
  %v422 = vadd.f32 %v95, %v421
  %v423 = vpop.f32.mrb[0].mxu0
  %424 = vmatprep.mubr.f32.mxu0 0.0
  %425 = vmatmul.mubr.f32.gmra.mrb[0].mxu0 %v141
  %v426 = vpop.f32.mrb[0].mxu0
  %v427 = vadd.f32 %v95, %v426
  %v428 = vpop.f32.mrb[0].mxu0
  %429 = vmatprep.mubr.f32.mxu0 0.0
  %430 = vmatmul.mubr.f32.gmra.mrb[0].mxu0 %v144
  %v431 = vpop.f32.mrb[0].mxu0
  %v432 = vadd.f32 %v95, %v431
  %v433 = vpop.f32.mrb[0].mxu0
  %434 = vmatprep.mubr.f32.mxu0 0.0
  %435 = vmatmul.mubr.f32.gmra.mrb[0].mxu0 %v147
  %v436 = vpop.f32.mrb[0].mxu0
  %v437 = vadd.f32 %v95, %v436
  %v438 = vpop.f32.mrb[0].mxu0
  %439 = vmatprep.mubr.f32.mxu0 0.0
  %440 = vmatmul.mubr.f32.gmra.mrb[0].mxu0 %v150
  %v441 = vpop.f32.mrb[0].mxu0
  %v442 = vadd.f32 %v95, %v441
  %v443 = vpop.f32.mrb[0].mxu0
  %444 = vmatprep.mubr.f32.mxu0 0.0
  %445 = vmatmul.mubr.f32.gmra.mrb[0].mxu0 %v153
  %v446 = vpop.f32.mrb[0].mxu0
  %v447 = vadd.f32 %v95, %v446
  %v448 = vpop.f32.mrb[0].mxu0
  %449 = vmatprep.mubr.f32.mxu0 0.0
  %450 = vmatmul.mubr.f32.gmra.mrb[0].mxu0 %v156
  %v451 = vpop.f32.mrb[0].mxu0
  %v452 = vadd.f32 %v95, %v451
  %v453 = vpop.f32.mrb[0].mxu0
  %454 = vmatprep.mubr.f32.mxu0 0.0
  %455 = vmatmul.mubr.f32.gmra.mrb[0].mxu0 %v159
  %v456 = vpop.f32.mrb[0].mxu0
  %v457 = vadd.f32 %v95, %v456
  %v458 = vpop.f32.mrb[0].mxu0
  %459 = vmatprep.mubr.f32.mxu0 0.0
  %460 = vmatmul.mubr.f32.gmra.mrb[0].mxu0 %v162
  %v461 = vpop.f32.mrb[0].mxu0
  %v462 = vadd.f32 %v95, %v461
  %v463 = vpop.f32.mrb[0].mxu0
  %464 = vmatprep.mubr.f32.mxu0 0.0
  %465 = vmatmul.mubr.f32.gmra.mrb[0].mxu0 %v165
  %v466 = vpop.f32.mrb[0].mxu0
  %v467 = vadd.f32 %v95, %v466
  %v468 = vpop.f32.mrb[0].mxu0
  %469 = vmatprep.mubr.f32.mxu0 0.0
  %470 = vmatmul.mubr.f32.gmra.mrb[0].mxu0 %v168
  %v471 = vpop.f32.mrb[0].mxu0
  %v472 = vadd.f32 %v95, %v471
  %v473 = vpop.f32.mrb[0].mxu0
  %474 = vmatprep.mubr.f32.mxu0 0.0
  %475 = vmatmul.mubr.f32.gmra.mrb[0].mxu0 %v171
  %v476 = vpop.f32.mrb[0].mxu0
  %v477 = vadd.f32 %v95, %v476
  %v478 = vpop.f32.mrb[0].mxu0
  %479 = vmatprep.mubr.f32.mxu0 0.0
  %480 = vmatmul.mubr.f32.gmra.mrb[0].mxu0 %v174
  %v481 = vpop.f32.mrb[0].mxu0
  %v482 = vadd.f32 %v95, %v481
  %v483 = vpop.f32.mrb[0].mxu0
  %484 = vmatprep.mubr.f32.mxu0 0.0
  %485 = vmatmul.mubr.f32.gmra.mrb[0].mxu0 %v177
  %v486 = vpop.f32.mrb[0].mxu0
  %v487 = vadd.f32 %v95, %v486
  %v488 = vpop.f32.mrb[0].mxu0
  %489 = vmatprep.mubr.f32.mxu0 0.0
  %490 = vmatmul.mubr.f32.gmra.mrb[0].mxu0 %v180
  %v491 = vpop.f32.mrb[0].mxu0
  %v492 = vadd.f32 %v95, %v491
  %v493 = vpop.f32.mrb[0].mxu0
  %494 = vmatprep.mubr.f32.mxu0 0.0
  %495 = vmatmul.mubr.f32.gmra.mrb[0].mxu0 %v183
  %v496 = vpop.f32.mrb[0].mxu0
  %v497 = vadd.f32 %v95, %v496
  %v498 = vpop.f32.mrb[0].mxu0
  %499 = vmatprep.mubr.f32.mxu0 0.0
  %500 = vmatmul.mubr.f32.gmra.mrb[0].mxu0 %v186
  %v501 = vpop.f32.mrb[0].mxu0
  %v502 = vadd.f32 %v95, %v501
  %v503 = vpop.f32.mrb[0].mxu0
  %504 = vmatprep.mubr.f32.mxu0 0.0
  %505 = vmatmul.mubr.f32.gmra.mrb[0].mxu0 %v189
  %v506 = vpop.f32.mrb[0].mxu0
  %v507 = vadd.f32 %v95, %v506
  %v508 = vpop.f32.mrb[0].mxu0
  %509 = vmatprep.mubr.f32.mxu0 0.0
  %510 = vmatmul.mubr.f32.gmra.mrb[0].mxu0 %v192
  %v511 = vpop.f32.mrb[0].mxu0
  %v512 = vadd.f32 %v95, %v511
  %v513 = vpop.f32.mrb[0].mxu0
  %514 = vmatprep.mubr.f32.mxu0 0.0
  %515 = vmatmul.mubr.f32.gmra.mrb[0].mxu0 %v195
  %v516 = vpop.f32.mrb[0].mxu0
  %v517 = vadd.f32 %v95, %v516
  %v518 = vpop.f32.mrb[0].mxu0
  %519 = vmatprep.mubr.f32.mxu0 0.0
  %520 = vmatmul.mubr.f32.gmra.mrb[0].mxu0 %v198
  %v521 = vpop.f32.mrb[0].mxu0
  %v522 = vadd.f32 %v95, %v521
  %v523 = vpop.f32.mrb[0].mxu0
  %524 = vmatprep.mubr.f32.mxu0 0.0
  %525 = vmatmul.mubr.f32.gmra.mrb[0].mxu0 %v201
  %v526 = vpop.f32.mrb[0].mxu0
  %v527 = vadd.f32 %v95, %v526
  %v528 = vpop.f32.mrb[0].mxu0
  %529 = vmatprep.mubr.f32.mxu0 0.0
  %530 = vmatmul.mubr.f32.gmra.mrb[0].mxu0 %v204
  %v531 = vpop.f32.mrb[0].mxu0
  %v532 = vadd.f32 %v95, %v531
  %v533 = vpop.f32.mrb[0].mxu0
  %534 = vmatprep.mubr.f32.mxu0 0.0
  %535 = vmatmul.mubr.f32.gmra.mrb[0].mxu0 %v207
  %v536 = vpop.f32.mrb[0].mxu0
  %v537 = vadd.f32 %v95, %v536
  %v538 = vpop.f32.mrb[0].mxu0
  %539 = vmatprep.mubr.f32.mxu0 0.0
  %540 = vmatmul.mubr.f32.gmra.mrb[0].mxu0 %v210
  %v541 = vpop.f32.mrb[0].mxu0
  %v542 = vadd.f32 %v95, %v541
  %v543 = vpop.f32.mrb[0].mxu0
  %544 = vmatprep.mubr.f32.mxu0 0.0
  %545 = vmatmul.mubr.f32.gmra.mrb[0].mxu0 %v213
  %v546 = vpop.f32.mrb[0].mxu0
  %v547 = vadd.f32 %v95, %v546
  %v548 = vpop.f32.mrb[0].mxu0
  %549 = vmatprep.mubr.f32.mxu0 0.0
  %550 = vmatmul.mubr.f32.gmra.mrb[0].mxu0 %v216
  %v551 = vpop.f32.mrb[0].mxu0
  %v552 = vadd.f32 %v95, %v551
  %v553 = vpop.f32.mrb[0].mxu0
  %554 = vmatprep.mubr.f32.mxu0 0.0
  %555 = vmatmul.mubr.f32.gmra.mrb[0].mxu0 %v219
  %v556 = vpop.f32.mrb[0].mxu0
  %v557 = vadd.f32 %v95, %v556
  %v558 = vpop.f32.mrb[0].mxu0
  %559 = vmatprep.mubr.f32.mxu0 0.0
  %560 = vmatmul.mubr.f32.gmra.mrb[0].mxu0 %v222
  %v561 = vpop.f32.mrb[0].mxu0
  %v562 = vadd.f32 %v95, %v561
  %v563 = vpop.f32.mrb[0].mxu0
  %564 = vmatprep.mubr.f32.mxu0 0.0
  %565 = vmatmul.mubr.f32.gmra.mrb[0].mxu0 %v225
  %v566 = vpop.f32.mrb[0].mxu0
  %v567 = vadd.f32 %v95, %v566
  %v568 = vpop.f32.mrb[0].mxu0
  %569 = vmatprep.mubr.f32.mxu0 0.0
  %570 = vmatmul.mubr.f32.gmra.mrb[0].mxu0 %v228
  %v571 = vpop.f32.mrb[0].mxu0
  %v572 = vadd.f32 %v95, %v571
  %v573 = vpop.f32.mrb[0].mxu0
  %574 = vmatprep.mubr.f32.mxu0 0.0
  %575 = vmatmul.mubr.f32.gmra.mrb[0].mxu0 %v231
  %v576 = vpop.f32.mrb[0].mxu0
  %v577 = vadd.f32 %v95, %v576
  %v578 = vpop.f32.mrb[0].mxu0
  %579 = vmatprep.mubr.f32.mxu0 0.0
  %580 = vmatmul.mubr.f32.gmra.mrb[0].mxu0 %v234
  %v581 = vpop.f32.mrb[0].mxu0
  %v582 = vadd.f32 %v95, %v581
  %v583 = vpop.f32.mrb[0].mxu0
  %584 = vmatprep.mubr.f32.mxu0 0.0
  %585 = vmatmul.mubr.f32.gmra.mrb[0].mxu0 %v237
  %v586 = vpop.f32.mrb[0].mxu0
  %v587 = vadd.f32 %v95, %v586
  %v588 = vpop.f32.mrb[0].mxu0
  %589 = vmatprep.mubr.f32.mxu0 0.0
  %590 = vmatmul.mubr.f32.gmra.mrb[0].mxu0 %v240
  %v591 = vpop.f32.mrb[0].mxu0
  %v592 = vadd.f32 %v95, %v591
  %v593 = vpop.f32.mrb[0].mxu0
  %594 = vmatprep.mubr.f32.mxu0 0.0
  %595 = vmatmul.mubr.f32.gmra.mrb[0].mxu0 %v243
  %v596 = vpop.f32.mrb[0].mxu0
  %v597 = vadd.f32 %v95, %v596
  %v598 = vpop.f32.mrb[0].mxu0
  %599 = vmatprep.mubr.f32.mxu0 0.0
  %600 = vmatmul.mubr.f32.gmra.mrb[0].mxu0 %v246
  %v601 = vpop.f32.mrb[0].mxu0
  %v602 = vadd.f32 %v95, %v601
  %v603 = vpop.f32.mrb[0].mxu0
  %604 = vmatprep.mubr.f32.mxu0 0.0
  %605 = vmatmul.mubr.f32.gmra.mrb[0].mxu0 %v249
  %v606 = vpop.f32.mrb[0].mxu0
  %v607 = vadd.f32 %v95, %v606
  %v608 = vpop.f32.mrb[0].mxu0
  %609 = vmatprep.mubr.f32.mxu0 0.0
  %610 = vmatmul.mubr.f32.gmra.mrb[0].mxu0 %v252
  %v611 = vpop.f32.mrb[0].mxu0
  %v612 = vadd.f32 %v95, %v611
  %v613 = vpop.f32.mrb[0].mxu0
  %614 = vmatprep.mubr.f32.mxu0 0.0
  %615 = vmatmul.mubr.f32.gmra.mrb[0].mxu0 %v255
  %v616 = vpop.f32.mrb[0].mxu0
  %v617 = vadd.f32 %v95, %v616
  %v618 = vpop.f32.mrb[0].mxu0
  %619 = vmatprep.mubr.f32.mxu0 0.0
  %620 = vmatmul.mubr.f32.gmra.mrb[0].mxu0 %v258
  %v621 = vpop.f32.mrb[0].mxu0
  %v622 = vadd.f32 %v95, %v621
  %v623 = vpop.f32.mrb[0].mxu0
  %624 = vmatprep.mubr.f32.mxu0 0.0
  %625 = vmatmul.mubr.f32.gmra.mrb[0].mxu0 %v261
  %v626 = vpop.f32.mrb[0].mxu0
  %v627 = vadd.f32 %v95, %v626
  %v628 = vpop.f32.mrb[0].mxu0
  %629 = vmatprep.mubr.f32.mxu0 0.0
  %630 = vmatmul.mubr.f32.gmra.mrb[0].mxu0 %v264
  %v631 = vpop.f32.mrb[0].mxu0
  %v632 = vadd.f32 %v95, %v631
  %v633 = vpop.f32.mrb[0].mxu0
  %634 = vmatprep.mubr.f32.mxu0 0.0
  %635 = vmatmul.mubr.f32.gmra.mrb[0].mxu0 %v267
  %v636 = vpop.f32.mrb[0].mxu0
  %v637 = vadd.f32 %v95, %v636
  %v638 = vpop.f32.mrb[0].mxu0
  %639 = vmatprep.mubr.f32.mxu0 0.0
  %640 = vmatmul.mubr.f32.gmra.mrb[0].mxu0 %v270
  %v641 = vpop.f32.mrb[0].mxu0
  %v642 = vadd.f32 %v95, %v641
  %v643 = vpop.f32.mrb[0].mxu0
  %644 = vmatprep.mubr.f32.mxu0 0.0
  %645 = vmatmul.mubr.f32.gmra.mrb[0].mxu0 %v273
  %v646 = vpop.f32.mrb[0].mxu0
  %v647 = vadd.f32 %v95, %v646
  %v648 = vpop.f32.mrb[0].mxu0
  %649 = vmatprep.mubr.f32.mxu0 0.0
  %650 = vmatmul.mubr.f32.gmra.mrb[0].mxu0 %v276
  %v651 = vpop.f32.mrb[0].mxu0
  %v652 = vadd.f32 %v95, %v651
  %v653 = vpop.f32.mrb[0].mxu0
  %654 = vmatprep.mubr.f32.mxu0 0.0
  %655 = vmatmul.mubr.f32.gmra.mrb[0].mxu0 %v279
  %v656 = vpop.f32.mrb[0].mxu0
  %v657 = vadd.f32 %v95, %v656
  %v658 = vpop.f32.mrb[0].mxu0
  %659 = vmatprep.mubr.f32.mxu0 0.0
  %660 = vmatmul.mubr.f32.gmra.mrb[0].mxu0 %v282
  %v661 = vpop.f32.mrb[0].mxu0
  %v662 = vadd.f32 %v95, %v661
  %v663 = vpop.f32.mrb[0].mxu0
  %664 = vmatprep.mubr.f32.mxu0 0.0
  %665 = vmatmul.mubr.f32.gmra.mrb[0].mxu0 %v285
  %v666 = vpop.f32.mrb[0].mxu0
  %v667 = vadd.f32 %v95, %v666
  %v668 = vpop.f32.mrb[0].mxu0
  %669 = vmatprep.mubr.f32.mxu0 0.0
  %670 = vmatmul.mubr.f32.gmra.mrb[0].mxu0 %v288
  %v671 = vpop.f32.mrb[0].mxu0
  %v672 = vadd.f32 %v95, %v671
  %v673 = vpop.f32.mrb[0].mxu0
  %674 = vdwg.mxu0
  %vm675 = vcmp.ge.f32.partialorder %v357, 0.0
  %vm676 = vcmp.ge.f32.partialorder %v362, 0.0
  %vm677 = vcmp.ge.f32.partialorder %v367, 0.0
  %vm678 = vcmp.ge.f32.partialorder %v372, 0.0
  %vm679 = vcmp.ge.f32.partialorder %v377, 0.0
  %vm680 = vcmp.ge.f32.partialorder %v382, 0.0
  %vm681 = vcmp.ge.f32.partialorder %v387, 0.0
  %vm682 = vcmp.ge.f32.partialorder %v392, 0.0
  %vm683 = vcmp.ge.f32.partialorder %v397, 0.0
  %vm684 = vcmp.ge.f32.partialorder %v402, 0.0
  %vm685 = vcmp.ge.f32.partialorder %v407, 0.0
  %vm686 = vcmp.ge.f32.partialorder %v412, 0.0
  %vm687 = vcmp.ge.f32.partialorder %v417, 0.0
  %vm688 = vcmp.ge.f32.partialorder %v422, 0.0
  %vm689 = vcmp.ge.f32.partialorder %v427, 0.0
  %vm690 = vcmp.ge.f32.partialorder %v432, 0.0
  %vm691 = vcmp.ge.f32.partialorder %v437, 0.0
  %vm692 = vcmp.ge.f32.partialorder %v442, 0.0
  %vm693 = vcmp.ge.f32.partialorder %v447, 0.0
  %vm694 = vcmp.ge.f32.partialorder %v452, 0.0
  %vm695 = vcmp.ge.f32.partialorder %v457, 0.0
  %vm696 = vcmp.ge.f32.partialorder %v462, 0.0
  %vm697 = vcmp.ge.f32.partialorder %v467, 0.0
  %vm698 = vcmp.ge.f32.partialorder %v472, 0.0
  %vm699 = vcmp.ge.f32.partialorder %v477, 0.0
  %vm700 = vcmp.ge.f32.partialorder %v482, 0.0
  %vm701 = vcmp.ge.f32.partialorder %v487, 0.0
  %vm702 = vcmp.ge.f32.partialorder %v492, 0.0
  %vm703 = vcmp.ge.f32.partialorder %v497, 0.0
  %vm704 = vcmp.ge.f32.partialorder %v502, 0.0
  %vm705 = vcmp.ge.f32.partialorder %v507, 0.0
  %vm706 = vcmp.ge.f32.partialorder %v512, 0.0
  %vm707 = vcmp.ge.f32.partialorder %v517, 0.0
  %vm708 = vcmp.ge.f32.partialorder %v522, 0.0
  %vm709 = vcmp.ge.f32.partialorder %v527, 0.0
  %vm710 = vcmp.ge.f32.partialorder %v532, 0.0
  %vm711 = vcmp.ge.f32.partialorder %v537, 0.0
  %vm712 = vcmp.ge.f32.partialorder %v542, 0.0
  %vm713 = vcmp.ge.f32.partialorder %v547, 0.0
  %vm714 = vcmp.ge.f32.partialorder %v552, 0.0
  %vm715 = vcmp.ge.f32.partialorder %v557, 0.0
  %vm716 = vcmp.ge.f32.partialorder %v562, 0.0
  %vm717 = vcmp.ge.f32.partialorder %v567, 0.0
  %vm718 = vcmp.ge.f32.partialorder %v572, 0.0
  %vm719 = vcmp.ge.f32.partialorder %v577, 0.0
  %vm720 = vcmp.ge.f32.partialorder %v582, 0.0
  %vm721 = vcmp.ge.f32.partialorder %v587, 0.0
  %vm722 = vcmp.ge.f32.partialorder %v592, 0.0
  %vm723 = vcmp.ge.f32.partialorder %v597, 0.0
  %vm724 = vcmp.ge.f32.partialorder %v602, 0.0
  %vm725 = vcmp.ge.f32.partialorder %v607, 0.0
  %vm726 = vcmp.ge.f32.partialorder %v612, 0.0
  %vm727 = vcmp.ge.f32.partialorder %v617, 0.0
  %vm728 = vcmp.ge.f32.partialorder %v622, 0.0
  %vm729 = vcmp.ge.f32.partialorder %v627, 0.0
  %vm730 = vcmp.ge.f32.partialorder %v632, 0.0
  %vm731 = vcmp.ge.f32.partialorder %v637, 0.0
  %vm732 = vcmp.ge.f32.partialorder %v642, 0.0
  %vm733 = vcmp.ge.f32.partialorder %v647, 0.0
  %vm734 = vcmp.ge.f32.partialorder %v652, 0.0
  %vm735 = vcmp.ge.f32.partialorder %v657, 0.0
  %vm736 = vcmp.ge.f32.partialorder %v662, 0.0
  %vm737 = vcmp.ge.f32.partialorder %v667, 0.0
  %vm738 = vcmp.ge.f32.partialorder %v672, 0.0
  %v739 = vld [vmem:[%s3] sm:$0x1]
  %v741 = vlaneseq
  %v742 = vshrl.u32 %v741, 7
  %v743 = vsub.s32 0, %v742
  %v744 = vrot.slane %v739, %v743
  %v746 = vmul.f32 %v744, %v357
  %v747 = vmul.f32 %v744, %v362
  %v748 = vmul.f32 %v744, %v367
  %v749 = vmul.f32 %v744, %v372
  %v750 = vmul.f32 %v744, %v377
  %v751 = vmul.f32 %v744, %v382
  %v752 = vmul.f32 %v744, %v387
  %v753 = vmul.f32 %v744, %v392
  %v754 = vmul.f32 %v744, %v397
  %v755 = vmul.f32 %v744, %v402
  %v756 = vmul.f32 %v744, %v407
  %v757 = vmul.f32 %v744, %v412
  %v758 = vmul.f32 %v744, %v417
  %v759 = vmul.f32 %v744, %v422
  %v760 = vmul.f32 %v744, %v427
  %v761 = vmul.f32 %v744, %v432
  %v762 = vmul.f32 %v744, %v437
  %v763 = vmul.f32 %v744, %v442
  %v764 = vmul.f32 %v744, %v447
  %v765 = vmul.f32 %v744, %v452
  %v766 = vmul.f32 %v744, %v457
  %v767 = vmul.f32 %v744, %v462
  %v768 = vmul.f32 %v744, %v467
  %v769 = vmul.f32 %v744, %v472
  %v770 = vmul.f32 %v744, %v477
  %v771 = vmul.f32 %v744, %v482
  %v772 = vmul.f32 %v744, %v487
  %v773 = vmul.f32 %v744, %v492
  %v774 = vmul.f32 %v744, %v497
  %v775 = vmul.f32 %v744, %v502
  %v776 = vmul.f32 %v744, %v507
  %v777 = vmul.f32 %v744, %v512
  %v778 = vmul.f32 %v744, %v517
  %v779 = vmul.f32 %v744, %v522
  %v780 = vmul.f32 %v744, %v527
  %v781 = vmul.f32 %v744, %v532
  %v782 = vmul.f32 %v744, %v537
  %v783 = vmul.f32 %v744, %v542
  %v784 = vmul.f32 %v744, %v547
  %v785 = vmul.f32 %v744, %v552
  %v786 = vmul.f32 %v744, %v557
  %v787 = vmul.f32 %v744, %v562
  %v788 = vmul.f32 %v744, %v567
  %v789 = vmul.f32 %v744, %v572
  %v790 = vmul.f32 %v744, %v577
  %v791 = vmul.f32 %v744, %v582
  %v792 = vmul.f32 %v744, %v587
  %v793 = vmul.f32 %v744, %v592
  %v794 = vmul.f32 %v744, %v597
  %v795 = vmul.f32 %v744, %v602
  %v796 = vmul.f32 %v744, %v607
  %v797 = vmul.f32 %v744, %v612
  %v798 = vmul.f32 %v744, %v617
  %v799 = vmul.f32 %v744, %v622
  %v800 = vmul.f32 %v744, %v627
  %v801 = vmul.f32 %v744, %v632
  %v802 = vmul.f32 %v744, %v637
  %v803 = vmul.f32 %v744, %v642
  %v804 = vmul.f32 %v744, %v647
  %v805 = vmul.f32 %v744, %v652
  %v806 = vmul.f32 %v744, %v657
  %v807 = vmul.f32 %v744, %v662
  %v808 = vmul.f32 %v744, %v667
  %v809 = vmul.f32 %v744, %v672
  %v810 = vsel %vm675, %v357, %v746
  %v811 = vsel %vm676, %v362, %v747
  %v812 = vsel %vm677, %v367, %v748
  %v813 = vsel %vm678, %v372, %v749
  %v814 = vsel %vm679, %v377, %v750
  %v815 = vsel %vm680, %v382, %v751
  %v816 = vsel %vm681, %v387, %v752
  %v817 = vsel %vm682, %v392, %v753
  %v818 = vsel %vm683, %v397, %v754
  %v819 = vsel %vm684, %v402, %v755
  %v820 = vsel %vm685, %v407, %v756
  %v821 = vsel %vm686, %v412, %v757
  %v822 = vsel %vm687, %v417, %v758
  %v823 = vsel %vm688, %v422, %v759
  %v824 = vsel %vm689, %v427, %v760
  %v825 = vsel %vm690, %v432, %v761
  %v826 = vsel %vm691, %v437, %v762
  %v827 = vsel %vm692, %v442, %v763
  %v828 = vsel %vm693, %v447, %v764
  %v829 = vsel %vm694, %v452, %v765
  %v830 = vsel %vm695, %v457, %v766
  %v831 = vsel %vm696, %v462, %v767
  %v832 = vsel %vm697, %v467, %v768
  %v833 = vsel %vm698, %v472, %v769
  %v834 = vsel %vm699, %v477, %v770
  %v835 = vsel %vm700, %v482, %v771
  %v836 = vsel %vm701, %v487, %v772
  %v837 = vsel %vm702, %v492, %v773
  %v838 = vsel %vm703, %v497, %v774
  %v839 = vsel %vm704, %v502, %v775
  %v840 = vsel %vm705, %v507, %v776
  %v841 = vsel %vm706, %v512, %v777
  %v842 = vsel %vm707, %v517, %v778
  %v843 = vsel %vm708, %v522, %v779
  %v844 = vsel %vm709, %v527, %v780
  %v845 = vsel %vm710, %v532, %v781
  %v846 = vsel %vm711, %v537, %v782
  %v847 = vsel %vm712, %v542, %v783
  %v848 = vsel %vm713, %v547, %v784
  %v849 = vsel %vm714, %v552, %v785
  %v850 = vsel %vm715, %v557, %v786
  %v851 = vsel %vm716, %v562, %v787
  %v852 = vsel %vm717, %v567, %v788
  %v853 = vsel %vm718, %v572, %v789
  %v854 = vsel %vm719, %v577, %v790
  %v855 = vsel %vm720, %v582, %v791
  %v856 = vsel %vm721, %v587, %v792
  %v857 = vsel %vm722, %v592, %v793
  %v858 = vsel %vm723, %v597, %v794
  %v859 = vsel %vm724, %v602, %v795
  %v860 = vsel %vm725, %v607, %v796
  %v861 = vsel %vm726, %v612, %v797
  %v862 = vsel %vm727, %v617, %v798
  %v863 = vsel %vm728, %v622, %v799
  %v864 = vsel %vm729, %v627, %v800
  %v865 = vsel %vm730, %v632, %v801
  %v866 = vsel %vm731, %v637, %v802
  %v867 = vsel %vm732, %v642, %v803
  %v868 = vsel %vm733, %v647, %v804
  %v869 = vsel %vm734, %v652, %v805
  %v870 = vsel %vm735, %v657, %v806
  %v871 = vsel %vm736, %v662, %v807
  %v872 = vsel %vm737, %v667, %v808
  %v873 = vsel %vm738, %v672, %v809
  %vm874 = vcmask 97280
  %875 = vst.msk [vmem:[%s4] sm:$0xff] %vm874, %v810
  %876 = vst.msk [vmem:[%s4 + $0x8] sm:$0xff] %vm874, %v811
  %877 = vst.msk [vmem:[%s4 + $0x10] sm:$0xff] %vm874, %v812
  %878 = vst.msk [vmem:[%s4 + $0x18] sm:$0xff] %vm874, %v813
  %879 = vst.msk [vmem:[%s4 + $0x20] sm:$0xff] %vm874, %v814
  %880 = vst.msk [vmem:[%s4 + $0x28] sm:$0xff] %vm874, %v815
  %881 = vst.msk [vmem:[%s4 + $0x30] sm:$0xff] %vm874, %v816
  %882 = vst.msk [vmem:[%s4 + $0x38] sm:$0xff] %vm874, %v817
  %883 = vst.msk [vmem:[%s4 + $0x40] sm:$0xff] %vm874, %v818
  %884 = vst.msk [vmem:[%s4 + $0x48] sm:$0xff] %vm874, %v819
  %885 = vst.msk [vmem:[%s4 + $0x50] sm:$0xff] %vm874, %v820
  %886 = vst.msk [vmem:[%s4 + $0x58] sm:$0xff] %vm874, %v821
  %887 = vst.msk [vmem:[%s4 + $0x60] sm:$0xff] %vm874, %v822
  %888 = vst.msk [vmem:[%s4 + $0x68] sm:$0xff] %vm874, %v823
  %889 = vst.msk [vmem:[%s4 + $0x70] sm:$0xff] %vm874, %v824
  %890 = vst.msk [vmem:[%s4 + $0x78] sm:$0xff] %vm874, %v825
  %891 = vst.msk [vmem:[%s4 + $0x80] sm:$0xff] %vm874, %v826
  %892 = vst.msk [vmem:[%s4 + $0x88] sm:$0xff] %vm874, %v827
  %893 = vst.msk [vmem:[%s4 + $0x90] sm:$0xff] %vm874, %v828
  %894 = vst.msk [vmem:[%s4 + $0x98] sm:$0xff] %vm874, %v829
  %895 = vst.msk [vmem:[%s4 + $0xa0] sm:$0xff] %vm874, %v830
  %896 = vst.msk [vmem:[%s4 + $0xa8] sm:$0xff] %vm874, %v831
  %897 = vst.msk [vmem:[%s4 + $0xb0] sm:$0xff] %vm874, %v832
  %898 = vst.msk [vmem:[%s4 + $0xb8] sm:$0xff] %vm874, %v833
  %899 = vst.msk [vmem:[%s4 + $0xc0] sm:$0xff] %vm874, %v834
  %900 = vst.msk [vmem:[%s4 + $0xc8] sm:$0xff] %vm874, %v835
  %901 = vst.msk [vmem:[%s4 + $0xd0] sm:$0xff] %vm874, %v836
  %902 = vst.msk [vmem:[%s4 + $0xd8] sm:$0xff] %vm874, %v837
  %903 = vst.msk [vmem:[%s4 + $0xe0] sm:$0xff] %vm874, %v838
  %904 = vst.msk [vmem:[%s4 + $0xe8] sm:$0xff] %vm874, %v839
  %905 = vst.msk [vmem:[%s4 + $0xf0] sm:$0xff] %vm874, %v840
  %906 = vst.msk [vmem:[%s4 + $0xf8] sm:$0xff] %vm874, %v841
  %907 = vst.msk [vmem:[%s4 + $0x100] sm:$0xff] %vm874, %v842
  %908 = vst.msk [vmem:[%s4 + $0x108] sm:$0xff] %vm874, %v843
  %909 = vst.msk [vmem:[%s4 + $0x110] sm:$0xff] %vm874, %v844
  %910 = vst.msk [vmem:[%s4 + $0x118] sm:$0xff] %vm874, %v845
  %911 = vst.msk [vmem:[%s4 + $0x120] sm:$0xff] %vm874, %v846
  %912 = vst.msk [vmem:[%s4 + $0x128] sm:$0xff] %vm874, %v847
  %913 = vst.msk [vmem:[%s4 + $0x130] sm:$0xff] %vm874, %v848
  %914 = vst.msk [vmem:[%s4 + $0x138] sm:$0xff] %vm874, %v849
  %915 = vst.msk [vmem:[%s4 + $0x140] sm:$0xff] %vm874, %v850
  %916 = vst.msk [vmem:[%s4 + $0x148] sm:$0xff] %vm874, %v851
  %917 = vst.msk [vmem:[%s4 + $0x150] sm:$0xff] %vm874, %v852
  %918 = vst.msk [vmem:[%s4 + $0x158] sm:$0xff] %vm874, %v853
  %919 = vst.msk [vmem:[%s4 + $0x160] sm:$0xff] %vm874, %v854
  %920 = vst.msk [vmem:[%s4 + $0x168] sm:$0xff] %vm874, %v855
  %921 = vst.msk [vmem:[%s4 + $0x170] sm:$0xff] %vm874, %v856
  %922 = vst.msk [vmem:[%s4 + $0x178] sm:$0xff] %vm874, %v857
  %923 = vst.msk [vmem:[%s4 + $0x180] sm:$0xff] %vm874, %v858
  %924 = vst.msk [vmem:[%s4 + $0x188] sm:$0xff] %vm874, %v859
  %925 = vst.msk [vmem:[%s4 + $0x190] sm:$0xff] %vm874, %v860
  %926 = vst.msk [vmem:[%s4 + $0x198] sm:$0xff] %vm874, %v861
  %927 = vst.msk [vmem:[%s4 + $0x1a0] sm:$0xff] %vm874, %v862
  %928 = vst.msk [vmem:[%s4 + $0x1a8] sm:$0xff] %vm874, %v863
  %929 = vst.msk [vmem:[%s4 + $0x1b0] sm:$0xff] %vm874, %v864
  %930 = vst.msk [vmem:[%s4 + $0x1b8] sm:$0xff] %vm874, %v865
  %931 = vst.msk [vmem:[%s4 + $0x1c0] sm:$0xff] %vm874, %v866
  %932 = vst.msk [vmem:[%s4 + $0x1c8] sm:$0xff] %vm874, %v867
  %933 = vst.msk [vmem:[%s4 + $0x1d0] sm:$0xff] %vm874, %v868
  %934 = vst.msk [vmem:[%s4 + $0x1d8] sm:$0xff] %vm874, %v869
  %935 = vst.msk [vmem:[%s4 + $0x1e0] sm:$0xff] %vm874, %v870
  %936 = vst.msk [vmem:[%s4 + $0x1e8] sm:$0xff] %vm874, %v871
  %937 = vst.msk [vmem:[%s4 + $0x1f0] sm:$0xff] %vm874, %v872
  %938 = vst.msk [vmem:[%s4 + $0x1f8] sm:$0xff] %vm874, %v873
  // Predicated region
  $region18: #{pz_inception_forward.5} parent=0 // pred_check
    _
  $region19: #{pz_inception_forward.5} parent=0 // pred_check_branch
    %940 = sbr.rel (0) target = $region21
  $region20: #{pz_inception_forward.5} parent=0 // pred_region
    _
  $region21: #{pz_inception_forward.5} parent=0 // pred_fallthru
    _
  // Predicated region
  $region22: #{pz_inception_forward.5} parent=0 // pred_check
    _
  $region23: #{pz_inception_forward.5} parent=0 // pred_check_branch
    %942 = sbr.rel (0) target = $region25
  $region24: #{pz_inception_forward.5} parent=0 // pred_region
    _
  $region25: #{pz_inception_forward.5} parent=0 // pred_fallthru
    _

// kernel: pz_inception_forward.6
$region0: #{pz_inception_forward.6}
  #allocation0 [shape = 'u32[]', space=smem, size = 0x4, offset = 0x4, fixed_abs, tag = 'smem constant byte address 0x4 - core index']
  #allocation1 [shape = 'u32[144,128]{1,0:T(1,128)}', space=vmem, size = 0x12000, scoped, tag = 'internal scratch']
  %s0 = inlined_call_operand.vmem [shape: f32[2,17,136], index: 0, kind: input, shape index: {}]
  %s1 = inlined_call_operand.vmem [shape: f32[2,16,128], index: 1, kind: output, shape index: {}]
  %s2 = sld [smem:[#allocation0]]
  $region14: #{pz_inception_forward.6} parent=0
    _
  %s4 = ssub.s32 1, %s2
  %s5 = scalar_select 0, %s4, %s2
  // Predicated region
  $region2: #{pz_inception_forward.6} parent=0 // pred_check
    _
  $region3: #{pz_inception_forward.6} parent=0 // pred_check_branch
    %7 = sbr.rel (0) target = $region5
  $region4: #{pz_inception_forward.6} parent=0 // pred_region
    _
  $region5: #{pz_inception_forward.6} parent=0 // pred_fallthru
    _
  %v8 = vld [vmem:[%s0] sm:$0xff]
  %v9 = vld [vmem:[%s0 + $0x8] sm:$0xff]
  %v10 = vld [vmem:[%s0 + $0x10] sm:$0xff]
  %v11 = vld [vmem:[%s0 + $0x18] sm:$0xff]
  %v12 = vld [vmem:[%s0 + $0x20] sm:$0x1]
  %v13 = vld [vmem:[%s0 + $0x28] sm:$0x1]
  %v14 = vld [vmem:[%s0 + $0x30] sm:$0xff]
  %v15 = vld [vmem:[%s0 + $0x38] sm:$0xff]
  %v16 = vld [vmem:[%s0 + $0x40] sm:$0xff]
  %v17 = vld [vmem:[%s0 + $0x48] sm:$0xff]
  %v18 = vld [vmem:[%s0 + $0x50] sm:$0x1]
  %v19 = vld [vmem:[%s0 + $0x58] sm:$0x1]
  %28 = vrot.lane.b32.xlu0 %v8, 120
  %v29 = vpop.permute.xlu0 %28
  %30 = vrot.lane.b32.xlu0 %v9, 120
  %v31 = vpop.permute.xlu0 %30
  %32 = vrot.lane.b32.xlu0 %v10, 120
  %v33 = vpop.permute.xlu0 %32
  %34 = vrot.lane.b32.xlu0 %v11, 120
  %v35 = vpop.permute.xlu0 %34
  %36 = vrot.lane.b32.xlu0 %v14, 120
  %v37 = vpop.permute.xlu0 %36
  %38 = vrot.lane.b32.xlu0 %v15, 120
  %v39 = vpop.permute.xlu0 %38
  %40 = vrot.lane.b32.xlu0 %v16, 120
  %v41 = vpop.permute.xlu0 %40
  %42 = vrot.lane.b32.xlu0 %v17, 120
  %v43 = vpop.permute.xlu0 %42
  %vm44 = vcmask 982016
  %v45 = vsel %vm44, %v29, %v31
  %v46 = vsel %vm44, %v33, %v35
  %v47 = vsel %vm44, %v37, %v39
  %v48 = vsel %vm44, %v41, %v43
  %v53 = vadd.f32 %v8, %v45
  %v54 = vadd.f32 %v10, %v46
  %v55 = vadd.f32 %v14, %v47
  %v56 = vadd.f32 %v16, %v48
  %vm59 = vcmask 1046528
  %v60 = vrot.slane %v8, 1
  %v61 = vrot.slane %v10, 1
  %v62 = vsel %vm59, %v60, %v61
  %v63 = vrot.slane %v12, 1
  %v64 = vsel %vm59, %v61, %v63
  %v65 = vrot.slane %v14, 1
  %v66 = vrot.slane %v16, 1
  %v67 = vsel %vm59, %v65, %v66
  %v68 = vrot.slane %v18, 1
  %v69 = vsel %vm59, %v66, %v68
  %v74 = vadd.f32 %v53, %v62
  %v75 = vadd.f32 %v54, %v64
  %v76 = vadd.f32 %v55, %v67
  %v77 = vadd.f32 %v56, %v69
  %v80 = vrot.slane %v9, 1
  %v81 = vrot.slane %v11, 1
  %v82 = vsel %vm59, %v80, %v81
  %v83 = vrot.slane %v13, 1
  %v84 = vsel %vm59, %v81, %v83
  %v85 = vrot.slane %v15, 1
  %v86 = vrot.slane %v17, 1
  %v87 = vsel %vm59, %v85, %v86
  %v88 = vrot.slane %v19, 1
  %v89 = vsel %vm59, %v86, %v88
  %90 = vrot.lane.b32.xlu0 %v62, 120
  %v91 = vpop.permute.xlu0 %90
  %92 = vrot.lane.b32.xlu0 %v82, 120
  %v93 = vpop.permute.xlu0 %92
  %94 = vrot.lane.b32.xlu0 %v64, 120
  %v95 = vpop.permute.xlu0 %94
  %96 = vrot.lane.b32.xlu0 %v84, 120
  %v97 = vpop.permute.xlu0 %96
  %98 = vrot.lane.b32.xlu0 %v67, 120
  %v99 = vpop.permute.xlu0 %98
  %100 = vrot.lane.b32.xlu0 %v87, 120
  %v101 = vpop.permute.xlu0 %100
  %102 = vrot.lane.b32.xlu0 %v69, 120
  %v103 = vpop.permute.xlu0 %102
  %104 = vrot.lane.b32.xlu0 %v89, 120
  %v105 = vpop.permute.xlu0 %104
  %v106 = vsel %vm44, %v91, %v93
  %v107 = vsel %vm44, %v95, %v97
  %v108 = vsel %vm44, %v99, %v101
  %v109 = vsel %vm44, %v103, %v105
  %v114 = vadd.f32 %v74, %v106
  %v115 = vadd.f32 %v75, %v107
  %v116 = vadd.f32 %v76, %v108
  %v117 = vadd.f32 %v77, %v109
  %v118 = vmul.f32 %v114, 0.25
  %v119 = vmul.f32 %v115, 0.25
  %v120 = vmul.f32 %v116, 0.25
  %v121 = vmul.f32 %v117, 0.25
  %122 = vst [vmem:[%s1] sm:$0xff] %v118
  %123 = vst [vmem:[%s1 + $0x8] sm:$0xff] %v119
  %124 = vst [vmem:[%s1 + $0x10] sm:$0xff] %v120
  %125 = vst [vmem:[%s1 + $0x18] sm:$0xff] %v121
  // Predicated region
  $region6: #{pz_inception_forward.6} parent=0 // pred_check
    _
  $region7: #{pz_inception_forward.6} parent=0 // pred_check_branch
    %127 = sbr.rel (0) target = $region9
  $region8: #{pz_inception_forward.6} parent=0 // pred_region
    _
  $region9: #{pz_inception_forward.6} parent=0 // pred_fallthru
    _
  // Predicated region
  $region10: #{pz_inception_forward.6} parent=0 // pred_check
    _
  $region11: #{pz_inception_forward.6} parent=0 // pred_check_branch
    %129 = sbr.rel (0) target = $region13
  $region12: #{pz_inception_forward.6} parent=0 // pred_region
    _
  $region13: #{pz_inception_forward.6} parent=0 // pred_fallthru
    _

</llo_original>
